<compile_context>
chip_gen: v5e
topology: v5e:2x2
jax: 0.10.0
libtpu: 0.0.40
codegen_flags: <defaults>
</compile_context>

<pallas_src>
import math

import jax
import jax.numpy as jnp
from jax.experimental import pallas as pl
from jax.experimental.pallas import tpu as pltpu

# ----- module hyper-parameters (defaults of the PyTorch module, small demo dims) ---------
SEQ_LEN = 8          # in_shape[0]
D_MODEL = 64         # in_shape[1]
NHEAD = 8
HEAD_DIM = D_MODEL // NHEAD
DIM_FF = 2048        # nn.TransformerEncoderLayer default dim_feedforward
HIDDEN = 64          # hidden_size
LN_EPS = 1e-5        # nn.LayerNorm default eps
BATCH = 4


def _layernorm(x, g, b):
    mu = jnp.mean(x, axis=-1, keepdims=True)
    xc = x - mu
    var = jnp.mean(xc * xc, axis=-1, keepdims=True)
    return xc * jax.lax.rsqrt(var + LN_EPS) * g + b


# ------------------------------------ fused kernel ---------------------------------------
def fused_transformer_kernel(
    x_ref, pe_ref, segsum_ref, segexp_ref,
    wq_ref, bq_ref, wk_ref, bk_ref, wv_ref, bv_ref,
    wo_ref, bo_ref, g1_ref, be1_ref,
    wff1_ref, bff1_ref, wff2_ref, bff2_ref, g2_ref, be2_ref,
    wf1_ref, bf1_ref, wf2_ref, bf2_ref,
    wc1_ref, bc1_ref, wc2_ref, bc2_ref, wc3_ref, bc3_ref,
    out_ref, y_scr,
):
    f32 = jnp.float32
    B, S, D = x_ref.shape

    # ---- positional encoding + QKV in-projection (all VMEM resident) --------------------
    src = x_ref[...] + pe_ref[...][None, :, :]          # (B,S,D); pe broadcast over batch
    src2d = src.reshape(B * S, D)                        # row = b*S + s

    q2d = jnp.dot(src2d, wq_ref[...], preferred_element_type=f32) + bq_ref[...]
    k2d = jnp.dot(src2d, wk_ref[...], preferred_element_type=f32) + bk_ref[...]
    v2d = jnp.dot(src2d, wv_ref[...], preferred_element_type=f32) + bv_ref[...]

    scale = 1.0 / math.sqrt(HEAD_DIM)
    q3 = (q2d * scale).reshape(B, S, D)
    k3 = k2d.reshape(B, S, D)
    v3 = v2d.reshape(B, S, D)

    # ---- self-attention over the leading axis (batch_first=False semantics) -------------
    # scores[i,j,s,h] = sum_{d in head h} q[i,s,d] * k[j,s,d]; the per-head reduction and
    # the head->lane expansion are block-diagonal matmuls, so the lane axis stays D=64.
    prod = jnp.concatenate(
        [q3[i] * k3[j] for i in range(B) for j in range(B)], axis=0)           # (B*B*S, D)
    scores = jnp.dot(prod, segsum_ref[...], preferred_element_type=f32)        # (B*B*S, H)

    o_blocks = []
    for i in range(B):
        s_ij = [scores[(i * B + j) * S:(i * B + j + 1) * S, :] for j in range(B)]
        m = s_ij[0]
        for j in range(1, B):
            m = jnp.maximum(m, s_ij[j])
        p_ij = [jnp.exp(sj - m) for sj in s_ij]
        denom = p_ij[0]
        for j in range(1, B):
            denom = denom + p_ij[j]
        inv = pl.reciprocal(denom, approx=True)                                # (S, H), EUP
        p_cat = jnp.concatenate([pj * inv for pj in p_ij], axis=0)             # (B*S, H)
        w = jnp.dot(p_cat, segexp_ref[...], preferred_element_type=f32)        # (B*S, D)
        o_i = w[0:S, :] * v3[0]
        for j in range(1, B):
            o_i = o_i + w[j * S:(j + 1) * S, :] * v3[j]
        o_blocks.append(o_i)                                                   # (S, D)
    attn2d = jnp.concatenate(o_blocks, axis=0)                                 # (B*S, D)

    # ---- out-projection + residual + LN1 + FFN(relu) + residual + LN2 -------------------
    a = jnp.dot(attn2d, wo_ref[...], preferred_element_type=f32) + bo_ref[...]
    h1 = _layernorm(src2d + a, g1_ref[...], be1_ref[...])
    # FFN weights live in HBM/VMEM as bf16 (half the DMA); upcast for f32-accurate matmul.
    ff = jnp.dot(h1, wff1_ref[...].astype(f32), preferred_element_type=f32) + bff1_ref[...]
    ff = jnp.maximum(ff, 0.0)
    ff = jnp.dot(ff, wff2_ref[...].astype(f32), preferred_element_type=f32) + bff2_ref[...]
    y2d = _layernorm(h1 + ff, g2_ref[...], be2_ref[...])                       # (B*S, D)
    y_scr[...] = y2d

    # ---- heads on x_flat = (B, S*D):  x_flat @ W == sum_s y[:, s, :] @ W[s*D:(s+1)*D] ---
    # The (B, S*D) flatten is realised with strided-sublane reads from the VMEM scratch
    # (rows s, s+S, s+2S, ... are exactly y[b, s, :] for b = 0..B-1).
    accf = jnp.zeros((B, HIDDEN), f32) + bf1_ref[...]
    accc = jnp.zeros((B, HIDDEN), f32) + bc1_ref[...]
    for s in range(S):
        rows_s = y_scr[pl.ds(s, B, stride=S), :]                               # (B, D)
        accf = accf + jnp.dot(rows_s, wf1_ref[s], preferred_element_type=f32)
        accc = accc + jnp.dot(rows_s, wc1_ref[s], preferred_element_type=f32)

    feats = jnp.tanh(
        jnp.dot(jnp.tanh(accf), wf2_ref[...], preferred_element_type=f32) + bf2_ref[...])
    hc = jnp.tanh(
        jnp.dot(jnp.tanh(accc), wc2_ref[...], preferred_element_type=f32) + bc2_ref[...])
    value = jnp.dot(hc, wc3_ref[...], preferred_element_type=f32) + bc3_ref[...]   # (B, 1)

    # lane-dense packed output: [ value | zero pad | features ] -> (B, 128)
    out_ref[...] = jnp.concatenate(
        [value, jnp.zeros((B, HIDDEN - 1), f32), feats], axis=1)


# ------------------------------------- wrapper -------------------------------------------
def transformer_base_forward(x, p):
    B, S, D = x.shape
    f32 = jnp.float32

    # block-diagonal head-sum (D,H) / head-expand (H,D) matrices: head split/merge on MXU
    lane_head = jnp.arange(D, dtype=jnp.int32) // HEAD_DIM
    heads = jnp.arange(NHEAD, dtype=jnp.int32)
    seg_sum = (lane_head[:, None] == heads[None, :]).astype(f32)    # (D, H)
    seg_exp = (heads[:, None] == lane_head[None, :]).astype(f32)    # (H, D)

    wf1_3 = p["wf1"].reshape(S, D, HIDDEN)    # free row-major reshape of the weight
    wc1_3 = p["wc1"].reshape(S, D, HIDDEN)

    inputs = (
        x, p["pe"], seg_sum, seg_exp,
        p["w_q"], p["b_q"], p["w_k"], p["b_k"], p["w_v"], p["b_v"],
        p["w_out"], p["b_out"], p["ln1_g"], p["ln1_b"],
        p["w_ff1"], p["b_ff1"], p["w_ff2"], p["b_ff2"], p["ln2_g"], p["ln2_b"],
        wf1_3, p["bf1"], p["wf2"], p["bf2"],
        wc1_3, p["bc1"], p["wc2"], p["bc2"], p["wc3"], p["bc3"],
    )
    packed = pl.pallas_call(
        fused_transformer_kernel,
        out_shape=jax.ShapeDtypeStruct((B, 2 * HIDDEN), f32),
        in_specs=[pl.BlockSpec(memory_space=pltpu.MemorySpace.VMEM) for _ in inputs],
        out_specs=pl.BlockSpec(memory_space=pltpu.MemorySpace.VMEM),
        scratch_shapes=[pltpu.VMEM((B * S, D), f32)],
    )(*inputs)

    value = packed[:, 0:1]            # (B, 1)
    feats = packed[:, HIDDEN:]        # (B, HIDDEN)
    return value, feats


# ----------------------------- parameters (synthetic) ------------------------------------
def init_params(key):
    S, D, HID, F = SEQ_LEN, D_MODEL, HIDDEN, DIM_FF
    ks = jax.random.split(key, 20)

    def w(k, shape, scale=0.05, dtype=jnp.float32):
        return (scale * jax.random.normal(k, shape)).astype(dtype)

    # PositionalEncoding buffer (exact formula from the PyTorch module)
    position = jnp.arange(S, dtype=jnp.float32)[:, None]
    div_term = jnp.exp(jnp.arange(0, D, 2, dtype=jnp.float32) * (-math.log(10000.0) / D))
    pe = jnp.zeros((S, D), jnp.float32)
    pe = pe.at[:, 0::2].set(jnp.sin(position * div_term))
    pe = pe.at[:, 1::2].set(jnp.cos(position * div_term))

    return dict(
        pe=pe,
        # attention in/out projections (all linear weights stored transposed: (in, out))
        w_q=w(ks[0], (D, D)), b_q=w(ks[1], (1, D), 0.01),
        w_k=w(ks[2], (D, D)), b_k=w(ks[3], (1, D), 0.01),
        w_v=w(ks[4], (D, D)), b_v=w(ks[5], (1, D), 0.01),
        w_out=w(ks[6], (D, D)), b_out=w(ks[7], (1, D), 0.01),
        ln1_g=jnp.ones((1, D), jnp.float32), ln1_b=jnp.zeros((1, D), jnp.float32),
        # FFN weights stored in bf16 (halves the dominant HBM->VMEM weight traffic)
        w_ff1=w(ks[8], (D, F), dtype=jnp.bfloat16), b_ff1=w(ks[9], (1, F), 0.01),
        w_ff2=w(ks[10], (F, D), dtype=jnp.bfloat16), b_ff2=w(ks[11], (1, D), 0.01),
        ln2_g=jnp.ones((1, D), jnp.float32), ln2_b=jnp.zeros((1, D), jnp.float32),
        # features head: Linear(S*D, HID) -> tanh -> Linear(HID, HID) -> tanh
        wf1=w(ks[12], (S * D, HID)), bf1=w(ks[13], (1, HID), 0.01),
        wf2=w(ks[14], (HID, HID)), bf2=w(ks[15], (1, HID), 0.01),
        # critic head: Linear(S*D, HID) -> tanh -> Linear(HID, HID) -> tanh -> Linear(HID,1)
        wc1=w(ks[16], (S * D, HID)), bc1=jnp.zeros((1, HID), jnp.float32),
        wc2=w(ks[17], (HID, HID)), bc2=jnp.zeros((1, HID), jnp.float32),
        wc3=w(ks[18], (HID, 1)), bc3=jnp.zeros((1, 1), jnp.float32),
    )


# ----------------------------- pure-JAX reference ----------------------------------------
def reference_forward(x, p):
    B, S, D = x.shape
    H, hd = NHEAD, HEAD_DIM
    hp = jax.lax.Precision.HIGHEST
    f32 = jnp.float32

    def lin(t, w_, b_):
        return jnp.einsum("bsd,de->bse", t, w_.astype(f32), precision=hp) + b_[0]

    src = x + p["pe"][None]
    q = lin(src, p["w_q"], p["b_q"])
    k = lin(src, p["w_k"], p["b_k"])
    v = lin(src, p["w_v"], p["b_v"])
    qh, kh, vh = (t.reshape(B, S, H, hd) for t in (q, k, v))
    scores = jnp.einsum("ishd,jshd->shij", qh, kh, precision=hp) / math.sqrt(hd)
    pr = jax.nn.softmax(scores, axis=-1)
    o = jnp.einsum("shij,jshd->ishd", pr, vh, precision=hp).reshape(B, S, D)
    a = lin(o, p["w_out"], p["b_out"])

    def ln(t, g, b):
        mu = t.mean(-1, keepdims=True)
        var = ((t - mu) ** 2).mean(-1, keepdims=True)
        return (t - mu) / jnp.sqrt(var + LN_EPS) * g[0] + b[0]

    h = ln(src + a, p["ln1_g"], p["ln1_b"])
    f = jnp.maximum(lin(h, p["w_ff1"], p["b_ff1"]), 0.0)
    f = lin(f, p["w_ff2"], p["b_ff2"])
    y = ln(h + f, p["ln2_g"], p["ln2_b"])

    xf = y.reshape(B, S * D)
    dot = lambda a_, b_: jnp.dot(a_, b_, precision=hp)
    feat = jnp.tanh(dot(jnp.tanh(dot(xf, p["wf1"]) + p["bf1"]), p["wf2"]) + p["bf2"])
    val = jnp.tanh(dot(jnp.tanh(dot(xf, p["wc1"]) + p["bc1"]), p["wc2"]) + p["bc2"])
    val = dot(val, p["wc3"]) + p["bc3"]
    return val, feat


# --------------------------------------- main --------------------------------------------
if __name__ == "__main__":
    key = jax.random.PRNGKey(0)
    kp, kx = jax.random.split(key)
    params = init_params(kp)
    x = jax.random.normal(kx, (BATCH, SEQ_LEN, D_MODEL), jnp.float32)

    fwd = jax.jit(transformer_base_forward)
    value, features = jax.block_until_ready(fwd(x, params))

    assert value.shape == (BATCH, 1) and features.shape == (BATCH, HIDDEN)

    v_ref, f_ref = reference_forward(x, params)
    err = max(float(jnp.max(jnp.abs(value - v_ref))),
              float(jnp.max(jnp.abs(features - f_ref))))
    assert err < 2e-2, f"mismatch vs pure-JAX reference: {err}"

    print("KERNEL_OK")
</pallas_src>

<mosaic_0001>
module attributes {stable_mosaic.version = 11 : i64} {
  func.func @fused_transformer_kernel(%arg0: memref<4x8x64xf32, #tpu.memory_space<vmem>>, %arg1: memref<8x64xf32, #tpu.memory_space<vmem>>, %arg2: memref<64x8xf32, #tpu.memory_space<vmem>>, %arg3: memref<8x64xf32, #tpu.memory_space<vmem>>, %arg4: memref<64x64xf32, #tpu.memory_space<vmem>>, %arg5: memref<1x64xf32, #tpu.memory_space<vmem>>, %arg6: memref<64x64xf32, #tpu.memory_space<vmem>>, %arg7: memref<1x64xf32, #tpu.memory_space<vmem>>, %arg8: memref<64x64xf32, #tpu.memory_space<vmem>>, %arg9: memref<1x64xf32, #tpu.memory_space<vmem>>, %arg10: memref<64x64xf32, #tpu.memory_space<vmem>>, %arg11: memref<1x64xf32, #tpu.memory_space<vmem>>, %arg12: memref<1x64xf32, #tpu.memory_space<vmem>>, %arg13: memref<1x64xf32, #tpu.memory_space<vmem>>, %arg14: memref<64x2048xbf16, #tpu.memory_space<vmem>>, %arg15: memref<1x2048xf32, #tpu.memory_space<vmem>>, %arg16: memref<2048x64xbf16, #tpu.memory_space<vmem>>, %arg17: memref<1x64xf32, #tpu.memory_space<vmem>>, %arg18: memref<1x64xf32, #tpu.memory_space<vmem>>, %arg19: memref<1x64xf32, #tpu.memory_space<vmem>>, %arg20: memref<8x64x64xf32, #tpu.memory_space<vmem>>, %arg21: memref<1x64xf32, #tpu.memory_space<vmem>>, %arg22: memref<64x64xf32, #tpu.memory_space<vmem>>, %arg23: memref<1x64xf32, #tpu.memory_space<vmem>>, %arg24: memref<8x64x64xf32, #tpu.memory_space<vmem>>, %arg25: memref<1x64xf32, #tpu.memory_space<vmem>>, %arg26: memref<64x64xf32, #tpu.memory_space<vmem>>, %arg27: memref<1x64xf32, #tpu.memory_space<vmem>>, %arg28: memref<64x1xf32, #tpu.memory_space<vmem>>, %arg29: memref<1x1xf32, #tpu.memory_space<vmem>>, %arg30: memref<4x128xf32, #tpu.memory_space<vmem>>, %arg31: memref<32x64xf32, #tpu.memory_space<vmem>>) attributes {dimension_semantics = [], scalar_prefetch = 0 : i64, scratch_operands = 1 : i64, tpu.core_type = #tpu.core_type<tc>} {
    %c0 = arith.constant 0 : index
    %c0_0 = arith.constant 0 : index
    %c0_1 = arith.constant 0 : index
    %0 = vector.load %arg0[%c0, %c0_0, %c0_1] : memref<4x8x64xf32, #tpu.memory_space<vmem>>, vector<4x8x64xf32>
    %c0_2 = arith.constant 0 : index
    %c0_3 = arith.constant 0 : index
    %1 = vector.load %arg1[%c0_2, %c0_3] : memref<8x64xf32, #tpu.memory_space<vmem>>, vector<8x64xf32>
    %2 = vector.shape_cast %1 : vector<8x64xf32> to vector<1x8x64xf32>
    %3 = vector.broadcast %2 : vector<1x8x64xf32> to vector<4x8x64xf32>
    %4 = arith.addf %0, %3 : vector<4x8x64xf32>
    %5 = vector.shape_cast %4 : vector<4x8x64xf32> to vector<32x64xf32>
    %c0_4 = arith.constant 0 : index
    %c0_5 = arith.constant 0 : index
    %6 = vector.load %arg4[%c0_4, %c0_5] : memref<64x64xf32, #tpu.memory_space<vmem>>, vector<64x64xf32>
    %cst = arith.constant dense<0.000000e+00> : vector<32x64xf32>
    %7 = tpu.matmul %5, %6, %cst {dimension_numbers = #tpu.dot_dimension_numbers<[1], [0], [0], [1], [0, 0, 1, 1], [], []>} : vector<32x64xf32>, vector<64x64xf32>, vector<32x64xf32> -> vector<32x64xf32>
    %c0_6 = arith.constant 0 : index
    %c0_7 = arith.constant 0 : index
    %8 = vector.load %arg5[%c0_6, %c0_7] : memref<1x64xf32, #tpu.memory_space<vmem>>, vector<1x64xf32>
    %9 = vector.broadcast %8 : vector<1x64xf32> to vector<32x64xf32>
    %10 = arith.addf %7, %9 : vector<32x64xf32>
    %c0_8 = arith.constant 0 : index
    %c0_9 = arith.constant 0 : index
    %11 = vector.load %arg6[%c0_8, %c0_9] : memref<64x64xf32, #tpu.memory_space<vmem>>, vector<64x64xf32>
    %cst_10 = arith.constant dense<0.000000e+00> : vector<32x64xf32>
    %12 = tpu.matmul %5, %11, %cst_10 {dimension_numbers = #tpu.dot_dimension_numbers<[1], [0], [0], [1], [0, 0, 1, 1], [], []>} : vector<32x64xf32>, vector<64x64xf32>, vector<32x64xf32> -> vector<32x64xf32>
    %c0_11 = arith.constant 0 : index
    %c0_12 = arith.constant 0 : index
    %13 = vector.load %arg7[%c0_11, %c0_12] : memref<1x64xf32, #tpu.memory_space<vmem>>, vector<1x64xf32>
    %14 = vector.broadcast %13 : vector<1x64xf32> to vector<32x64xf32>
    %15 = arith.addf %12, %14 : vector<32x64xf32>
    %c0_13 = arith.constant 0 : index
    %c0_14 = arith.constant 0 : index
    %16 = vector.load %arg8[%c0_13, %c0_14] : memref<64x64xf32, #tpu.memory_space<vmem>>, vector<64x64xf32>
    %cst_15 = arith.constant dense<0.000000e+00> : vector<32x64xf32>
    %17 = tpu.matmul %5, %16, %cst_15 {dimension_numbers = #tpu.dot_dimension_numbers<[1], [0], [0], [1], [0, 0, 1, 1], [], []>} : vector<32x64xf32>, vector<64x64xf32>, vector<32x64xf32> -> vector<32x64xf32>
    %c0_16 = arith.constant 0 : index
    %c0_17 = arith.constant 0 : index
    %18 = vector.load %arg9[%c0_16, %c0_17] : memref<1x64xf32, #tpu.memory_space<vmem>>, vector<1x64xf32>
    %19 = vector.broadcast %18 : vector<1x64xf32> to vector<32x64xf32>
    %20 = arith.addf %17, %19 : vector<32x64xf32>
    %cst_18 = arith.constant 0.353553385 : f32
    %21 = vector.broadcast %cst_18 : f32 to vector<32x64xf32>
    %22 = arith.mulf %10, %21 : vector<32x64xf32>
    %23 = vector.shape_cast %22 : vector<32x64xf32> to vector<4x8x64xf32>
    %24 = vector.shape_cast %15 : vector<32x64xf32> to vector<4x8x64xf32>
    %25 = vector.shape_cast %20 : vector<32x64xf32> to vector<4x8x64xf32>
    %26 = vector.extract_strided_slice %23 {offsets = [0, 0, 0], sizes = [1, 8, 64], strides = [1, 1, 1]} : vector<4x8x64xf32> to vector<1x8x64xf32>
    %27 = vector.shape_cast %26 : vector<1x8x64xf32> to vector<8x64xf32>
    %28 = vector.extract_strided_slice %24 {offsets = [0, 0, 0], sizes = [1, 8, 64], strides = [1, 1, 1]} : vector<4x8x64xf32> to vector<1x8x64xf32>
    %29 = vector.shape_cast %28 : vector<1x8x64xf32> to vector<8x64xf32>
    %30 = arith.mulf %27, %29 : vector<8x64xf32>
    %31 = vector.extract_strided_slice %23 {offsets = [0, 0, 0], sizes = [1, 8, 64], strides = [1, 1, 1]} : vector<4x8x64xf32> to vector<1x8x64xf32>
    %32 = vector.shape_cast %31 : vector<1x8x64xf32> to vector<8x64xf32>
    %33 = vector.extract_strided_slice %24 {offsets = [1, 0, 0], sizes = [1, 8, 64], strides = [1, 1, 1]} : vector<4x8x64xf32> to vector<1x8x64xf32>
    %34 = vector.shape_cast %33 : vector<1x8x64xf32> to vector<8x64xf32>
    %35 = arith.mulf %32, %34 : vector<8x64xf32>
    %36 = vector.extract_strided_slice %23 {offsets = [0, 0, 0], sizes = [1, 8, 64], strides = [1, 1, 1]} : vector<4x8x64xf32> to vector<1x8x64xf32>
    %37 = vector.shape_cast %36 : vector<1x8x64xf32> to vector<8x64xf32>
    %38 = vector.extract_strided_slice %24 {offsets = [2, 0, 0], sizes = [1, 8, 64], strides = [1, 1, 1]} : vector<4x8x64xf32> to vector<1x8x64xf32>
    %39 = vector.shape_cast %38 : vector<1x8x64xf32> to vector<8x64xf32>
    %40 = arith.mulf %37, %39 : vector<8x64xf32>
    %41 = vector.extract_strided_slice %23 {offsets = [0, 0, 0], sizes = [1, 8, 64], strides = [1, 1, 1]} : vector<4x8x64xf32> to vector<1x8x64xf32>
    %42 = vector.shape_cast %41 : vector<1x8x64xf32> to vector<8x64xf32>
    %43 = vector.extract_strided_slice %24 {offsets = [3, 0, 0], sizes = [1, 8, 64], strides = [1, 1, 1]} : vector<4x8x64xf32> to vector<1x8x64xf32>
    %44 = vector.shape_cast %43 : vector<1x8x64xf32> to vector<8x64xf32>
    %45 = arith.mulf %42, %44 : vector<8x64xf32>
    %46 = vector.extract_strided_slice %23 {offsets = [1, 0, 0], sizes = [1, 8, 64], strides = [1, 1, 1]} : vector<4x8x64xf32> to vector<1x8x64xf32>
    %47 = vector.shape_cast %46 : vector<1x8x64xf32> to vector<8x64xf32>
    %48 = vector.extract_strided_slice %24 {offsets = [0, 0, 0], sizes = [1, 8, 64], strides = [1, 1, 1]} : vector<4x8x64xf32> to vector<1x8x64xf32>
    %49 = vector.shape_cast %48 : vector<1x8x64xf32> to vector<8x64xf32>
    %50 = arith.mulf %47, %49 : vector<8x64xf32>
    %51 = vector.extract_strided_slice %23 {offsets = [1, 0, 0], sizes = [1, 8, 64], strides = [1, 1, 1]} : vector<4x8x64xf32> to vector<1x8x64xf32>
    %52 = vector.shape_cast %51 : vector<1x8x64xf32> to vector<8x64xf32>
    %53 = vector.extract_strided_slice %24 {offsets = [1, 0, 0], sizes = [1, 8, 64], strides = [1, 1, 1]} : vector<4x8x64xf32> to vector<1x8x64xf32>
    %54 = vector.shape_cast %53 : vector<1x8x64xf32> to vector<8x64xf32>
    %55 = arith.mulf %52, %54 : vector<8x64xf32>
    %56 = vector.extract_strided_slice %23 {offsets = [1, 0, 0], sizes = [1, 8, 64], strides = [1, 1, 1]} : vector<4x8x64xf32> to vector<1x8x64xf32>
    %57 = vector.shape_cast %56 : vector<1x8x64xf32> to vector<8x64xf32>
    %58 = vector.extract_strided_slice %24 {offsets = [2, 0, 0], sizes = [1, 8, 64], strides = [1, 1, 1]} : vector<4x8x64xf32> to vector<1x8x64xf32>
    %59 = vector.shape_cast %58 : vector<1x8x64xf32> to vector<8x64xf32>
    %60 = arith.mulf %57, %59 : vector<8x64xf32>
    %61 = vector.extract_strided_slice %23 {offsets = [1, 0, 0], sizes = [1, 8, 64], strides = [1, 1, 1]} : vector<4x8x64xf32> to vector<1x8x64xf32>
    %62 = vector.shape_cast %61 : vector<1x8x64xf32> to vector<8x64xf32>
    %63 = vector.extract_strided_slice %24 {offsets = [3, 0, 0], sizes = [1, 8, 64], strides = [1, 1, 1]} : vector<4x8x64xf32> to vector<1x8x64xf32>
    %64 = vector.shape_cast %63 : vector<1x8x64xf32> to vector<8x64xf32>
    %65 = arith.mulf %62, %64 : vector<8x64xf32>
    %66 = vector.extract_strided_slice %23 {offsets = [2, 0, 0], sizes = [1, 8, 64], strides = [1, 1, 1]} : vector<4x8x64xf32> to vector<1x8x64xf32>
    %67 = vector.shape_cast %66 : vector<1x8x64xf32> to vector<8x64xf32>
    %68 = vector.extract_strided_slice %24 {offsets = [0, 0, 0], sizes = [1, 8, 64], strides = [1, 1, 1]} : vector<4x8x64xf32> to vector<1x8x64xf32>
    %69 = vector.shape_cast %68 : vector<1x8x64xf32> to vector<8x64xf32>
    %70 = arith.mulf %67, %69 : vector<8x64xf32>
    %71 = vector.extract_strided_slice %23 {offsets = [2, 0, 0], sizes = [1, 8, 64], strides = [1, 1, 1]} : vector<4x8x64xf32> to vector<1x8x64xf32>
    %72 = vector.shape_cast %71 : vector<1x8x64xf32> to vector<8x64xf32>
    %73 = vector.extract_strided_slice %24 {offsets = [1, 0, 0], sizes = [1, 8, 64], strides = [1, 1, 1]} : vector<4x8x64xf32> to vector<1x8x64xf32>
    %74 = vector.shape_cast %73 : vector<1x8x64xf32> to vector<8x64xf32>
    %75 = arith.mulf %72, %74 : vector<8x64xf32>
    %76 = vector.extract_strided_slice %23 {offsets = [2, 0, 0], sizes = [1, 8, 64], strides = [1, 1, 1]} : vector<4x8x64xf32> to vector<1x8x64xf32>
    %77 = vector.shape_cast %76 : vector<1x8x64xf32> to vector<8x64xf32>
    %78 = vector.extract_strided_slice %24 {offsets = [2, 0, 0], sizes = [1, 8, 64], strides = [1, 1, 1]} : vector<4x8x64xf32> to vector<1x8x64xf32>
    %79 = vector.shape_cast %78 : vector<1x8x64xf32> to vector<8x64xf32>
    %80 = arith.mulf %77, %79 : vector<8x64xf32>
    %81 = vector.extract_strided_slice %23 {offsets = [2, 0, 0], sizes = [1, 8, 64], strides = [1, 1, 1]} : vector<4x8x64xf32> to vector<1x8x64xf32>
    %82 = vector.shape_cast %81 : vector<1x8x64xf32> to vector<8x64xf32>
    %83 = vector.extract_strided_slice %24 {offsets = [3, 0, 0], sizes = [1, 8, 64], strides = [1, 1, 1]} : vector<4x8x64xf32> to vector<1x8x64xf32>
    %84 = vector.shape_cast %83 : vector<1x8x64xf32> to vector<8x64xf32>
    %85 = arith.mulf %82, %84 : vector<8x64xf32>
    %86 = vector.extract_strided_slice %23 {offsets = [3, 0, 0], sizes = [1, 8, 64], strides = [1, 1, 1]} : vector<4x8x64xf32> to vector<1x8x64xf32>
    %87 = vector.shape_cast %86 : vector<1x8x64xf32> to vector<8x64xf32>
    %88 = vector.extract_strided_slice %24 {offsets = [0, 0, 0], sizes = [1, 8, 64], strides = [1, 1, 1]} : vector<4x8x64xf32> to vector<1x8x64xf32>
    %89 = vector.shape_cast %88 : vector<1x8x64xf32> to vector<8x64xf32>
    %90 = arith.mulf %87, %89 : vector<8x64xf32>
    %91 = vector.extract_strided_slice %23 {offsets = [3, 0, 0], sizes = [1, 8, 64], strides = [1, 1, 1]} : vector<4x8x64xf32> to vector<1x8x64xf32>
    %92 = vector.shape_cast %91 : vector<1x8x64xf32> to vector<8x64xf32>
    %93 = vector.extract_strided_slice %24 {offsets = [1, 0, 0], sizes = [1, 8, 64], strides = [1, 1, 1]} : vector<4x8x64xf32> to vector<1x8x64xf32>
    %94 = vector.shape_cast %93 : vector<1x8x64xf32> to vector<8x64xf32>
    %95 = arith.mulf %92, %94 : vector<8x64xf32>
    %96 = vector.extract_strided_slice %23 {offsets = [3, 0, 0], sizes = [1, 8, 64], strides = [1, 1, 1]} : vector<4x8x64xf32> to vector<1x8x64xf32>
    %97 = vector.shape_cast %96 : vector<1x8x64xf32> to vector<8x64xf32>
    %98 = vector.extract_strided_slice %24 {offsets = [2, 0, 0], sizes = [1, 8, 64], strides = [1, 1, 1]} : vector<4x8x64xf32> to vector<1x8x64xf32>
    %99 = vector.shape_cast %98 : vector<1x8x64xf32> to vector<8x64xf32>
    %100 = arith.mulf %97, %99 : vector<8x64xf32>
    %101 = vector.extract_strided_slice %23 {offsets = [3, 0, 0], sizes = [1, 8, 64], strides = [1, 1, 1]} : vector<4x8x64xf32> to vector<1x8x64xf32>
    %102 = vector.shape_cast %101 : vector<1x8x64xf32> to vector<8x64xf32>
    %103 = vector.extract_strided_slice %24 {offsets = [3, 0, 0], sizes = [1, 8, 64], strides = [1, 1, 1]} : vector<4x8x64xf32> to vector<1x8x64xf32>
    %104 = vector.shape_cast %103 : vector<1x8x64xf32> to vector<8x64xf32>
    %105 = arith.mulf %102, %104 : vector<8x64xf32>
    %106 = tpu.concatenate %30, %35, %40, %45, %50, %55, %60, %65, %70, %75, %80, %85, %90, %95, %100, %105 in 0 : vector<8x64xf32>, vector<8x64xf32>, vector<8x64xf32>, vector<8x64xf32>, vector<8x64xf32>, vector<8x64xf32>, vector<8x64xf32>, vector<8x64xf32>, vector<8x64xf32>, vector<8x64xf32>, vector<8x64xf32>, vector<8x64xf32>, vector<8x64xf32>, vector<8x64xf32>, vector<8x64xf32>, vector<8x64xf32> -> vector<128x64xf32>
    %c0_19 = arith.constant 0 : index
    %c0_20 = arith.constant 0 : index
    %107 = vector.load %arg2[%c0_19, %c0_20] : memref<64x8xf32, #tpu.memory_space<vmem>>, vector<64x8xf32>
    %cst_21 = arith.constant dense<0.000000e+00> : vector<128x8xf32>
    %108 = tpu.matmul %106, %107, %cst_21 {dimension_numbers = #tpu.dot_dimension_numbers<[1], [0], [0], [1], [0, 0, 1, 1], [], []>} : vector<128x64xf32>, vector<64x8xf32>, vector<128x8xf32> -> vector<128x8xf32>
    %109 = vector.extract_strided_slice %108 {offsets = [0, 0], sizes = [8, 8], strides = [1, 1]} : vector<128x8xf32> to vector<8x8xf32>
    %110 = vector.extract_strided_slice %108 {offsets = [8, 0], sizes = [8, 8], strides = [1, 1]} : vector<128x8xf32> to vector<8x8xf32>
    %111 = vector.extract_strided_slice %108 {offsets = [16, 0], sizes = [8, 8], strides = [1, 1]} : vector<128x8xf32> to vector<8x8xf32>
    %112 = vector.extract_strided_slice %108 {offsets = [24, 0], sizes = [8, 8], strides = [1, 1]} : vector<128x8xf32> to vector<8x8xf32>
    %113 = arith.maximumf %109, %110 : vector<8x8xf32>
    %114 = arith.maximumf %113, %111 : vector<8x8xf32>
    %115 = arith.maximumf %114, %112 : vector<8x8xf32>
    %116 = arith.subf %109, %115 : vector<8x8xf32>
    %117 = math.exp %116 : vector<8x8xf32>
    %118 = arith.subf %110, %115 : vector<8x8xf32>
    %119 = math.exp %118 : vector<8x8xf32>
    %120 = arith.subf %111, %115 : vector<8x8xf32>
    %121 = math.exp %120 : vector<8x8xf32>
    %122 = arith.subf %112, %115 : vector<8x8xf32>
    %123 = math.exp %122 : vector<8x8xf32>
    %124 = arith.addf %117, %119 : vector<8x8xf32>
    %125 = arith.addf %124, %121 : vector<8x8xf32>
    %126 = arith.addf %125, %123 : vector<8x8xf32>
    %127 = tpu.reciprocal %126 {approx = true} : vector<8x8xf32> -> vector<8x8xf32>
    %128 = arith.mulf %117, %127 : vector<8x8xf32>
    %129 = arith.mulf %119, %127 : vector<8x8xf32>
    %130 = arith.mulf %121, %127 : vector<8x8xf32>
    %131 = arith.mulf %123, %127 : vector<8x8xf32>
    %132 = tpu.concatenate %128, %129, %130, %131 in 0 : vector<8x8xf32>, vector<8x8xf32>, vector<8x8xf32>, vector<8x8xf32> -> vector<32x8xf32>
    %c0_22 = arith.constant 0 : index
    %c0_23 = arith.constant 0 : index
    %133 = vector.load %arg3[%c0_22, %c0_23] : memref<8x64xf32, #tpu.memory_space<vmem>>, vector<8x64xf32>
    %cst_24 = arith.constant dense<0.000000e+00> : vector<32x64xf32>
    %134 = tpu.matmul %132, %133, %cst_24 {dimension_numbers = #tpu.dot_dimension_numbers<[1], [0], [0], [1], [0, 0, 1, 1], [], []>} : vector<32x8xf32>, vector<8x64xf32>, vector<32x64xf32> -> vector<32x64xf32>
    %135 = vector.extract_strided_slice %134 {offsets = [0, 0], sizes = [8, 64], strides = [1, 1]} : vector<32x64xf32> to vector<8x64xf32>
    %136 = vector.extract_strided_slice %25 {offsets = [0, 0, 0], sizes = [1, 8, 64], strides = [1, 1, 1]} : vector<4x8x64xf32> to vector<1x8x64xf32>
    %137 = vector.shape_cast %136 : vector<1x8x64xf32> to vector<8x64xf32>
    %138 = arith.mulf %135, %137 : vector<8x64xf32>
    %139 = vector.extract_strided_slice %134 {offsets = [8, 0], sizes = [8, 64], strides = [1, 1]} : vector<32x64xf32> to vector<8x64xf32>
    %140 = vector.extract_strided_slice %25 {offsets = [1, 0, 0], sizes = [1, 8, 64], strides = [1, 1, 1]} : vector<4x8x64xf32> to vector<1x8x64xf32>
    %141 = vector.shape_cast %140 : vector<1x8x64xf32> to vector<8x64xf32>
    %142 = arith.mulf %139, %141 : vector<8x64xf32>
    %143 = arith.addf %138, %142 : vector<8x64xf32>
    %144 = vector.extract_strided_slice %134 {offsets = [16, 0], sizes = [8, 64], strides = [1, 1]} : vector<32x64xf32> to vector<8x64xf32>
    %145 = vector.extract_strided_slice %25 {offsets = [2, 0, 0], sizes = [1, 8, 64], strides = [1, 1, 1]} : vector<4x8x64xf32> to vector<1x8x64xf32>
    %146 = vector.shape_cast %145 : vector<1x8x64xf32> to vector<8x64xf32>
    %147 = arith.mulf %144, %146 : vector<8x64xf32>
    %148 = arith.addf %143, %147 : vector<8x64xf32>
    %149 = vector.extract_strided_slice %134 {offsets = [24, 0], sizes = [8, 64], strides = [1, 1]} : vector<32x64xf32> to vector<8x64xf32>
    %150 = vector.extract_strided_slice %25 {offsets = [3, 0, 0], sizes = [1, 8, 64], strides = [1, 1, 1]} : vector<4x8x64xf32> to vector<1x8x64xf32>
    %151 = vector.shape_cast %150 : vector<1x8x64xf32> to vector<8x64xf32>
    %152 = arith.mulf %149, %151 : vector<8x64xf32>
    %153 = arith.addf %148, %152 : vector<8x64xf32>
    %154 = vector.extract_strided_slice %108 {offsets = [32, 0], sizes = [8, 8], strides = [1, 1]} : vector<128x8xf32> to vector<8x8xf32>
    %155 = vector.extract_strided_slice %108 {offsets = [40, 0], sizes = [8, 8], strides = [1, 1]} : vector<128x8xf32> to vector<8x8xf32>
    %156 = vector.extract_strided_slice %108 {offsets = [48, 0], sizes = [8, 8], strides = [1, 1]} : vector<128x8xf32> to vector<8x8xf32>
    %157 = vector.extract_strided_slice %108 {offsets = [56, 0], sizes = [8, 8], strides = [1, 1]} : vector<128x8xf32> to vector<8x8xf32>
    %158 = arith.maximumf %154, %155 : vector<8x8xf32>
    %159 = arith.maximumf %158, %156 : vector<8x8xf32>
    %160 = arith.maximumf %159, %157 : vector<8x8xf32>
    %161 = arith.subf %154, %160 : vector<8x8xf32>
    %162 = math.exp %161 : vector<8x8xf32>
    %163 = arith.subf %155, %160 : vector<8x8xf32>
    %164 = math.exp %163 : vector<8x8xf32>
    %165 = arith.subf %156, %160 : vector<8x8xf32>
    %166 = math.exp %165 : vector<8x8xf32>
    %167 = arith.subf %157, %160 : vector<8x8xf32>
    %168 = math.exp %167 : vector<8x8xf32>
    %169 = arith.addf %162, %164 : vector<8x8xf32>
    %170 = arith.addf %169, %166 : vector<8x8xf32>
    %171 = arith.addf %170, %168 : vector<8x8xf32>
    %172 = tpu.reciprocal %171 {approx = true} : vector<8x8xf32> -> vector<8x8xf32>
    %173 = arith.mulf %162, %172 : vector<8x8xf32>
    %174 = arith.mulf %164, %172 : vector<8x8xf32>
    %175 = arith.mulf %166, %172 : vector<8x8xf32>
    %176 = arith.mulf %168, %172 : vector<8x8xf32>
    %177 = tpu.concatenate %173, %174, %175, %176 in 0 : vector<8x8xf32>, vector<8x8xf32>, vector<8x8xf32>, vector<8x8xf32> -> vector<32x8xf32>
    %c0_25 = arith.constant 0 : index
    %c0_26 = arith.constant 0 : index
    %178 = vector.load %arg3[%c0_25, %c0_26] : memref<8x64xf32, #tpu.memory_space<vmem>>, vector<8x64xf32>
    %cst_27 = arith.constant dense<0.000000e+00> : vector<32x64xf32>
    %179 = tpu.matmul %177, %178, %cst_27 {dimension_numbers = #tpu.dot_dimension_numbers<[1], [0], [0], [1], [0, 0, 1, 1], [], []>} : vector<32x8xf32>, vector<8x64xf32>, vector<32x64xf32> -> vector<32x64xf32>
    %180 = vector.extract_strided_slice %179 {offsets = [0, 0], sizes = [8, 64], strides = [1, 1]} : vector<32x64xf32> to vector<8x64xf32>
    %181 = vector.extract_strided_slice %25 {offsets = [0, 0, 0], sizes = [1, 8, 64], strides = [1, 1, 1]} : vector<4x8x64xf32> to vector<1x8x64xf32>
    %182 = vector.shape_cast %181 : vector<1x8x64xf32> to vector<8x64xf32>
    %183 = arith.mulf %180, %182 : vector<8x64xf32>
    %184 = vector.extract_strided_slice %179 {offsets = [8, 0], sizes = [8, 64], strides = [1, 1]} : vector<32x64xf32> to vector<8x64xf32>
    %185 = vector.extract_strided_slice %25 {offsets = [1, 0, 0], sizes = [1, 8, 64], strides = [1, 1, 1]} : vector<4x8x64xf32> to vector<1x8x64xf32>
    %186 = vector.shape_cast %185 : vector<1x8x64xf32> to vector<8x64xf32>
    %187 = arith.mulf %184, %186 : vector<8x64xf32>
    %188 = arith.addf %183, %187 : vector<8x64xf32>
    %189 = vector.extract_strided_slice %179 {offsets = [16, 0], sizes = [8, 64], strides = [1, 1]} : vector<32x64xf32> to vector<8x64xf32>
    %190 = vector.extract_strided_slice %25 {offsets = [2, 0, 0], sizes = [1, 8, 64], strides = [1, 1, 1]} : vector<4x8x64xf32> to vector<1x8x64xf32>
    %191 = vector.shape_cast %190 : vector<1x8x64xf32> to vector<8x64xf32>
    %192 = arith.mulf %189, %191 : vector<8x64xf32>
    %193 = arith.addf %188, %192 : vector<8x64xf32>
    %194 = vector.extract_strided_slice %179 {offsets = [24, 0], sizes = [8, 64], strides = [1, 1]} : vector<32x64xf32> to vector<8x64xf32>
    %195 = vector.extract_strided_slice %25 {offsets = [3, 0, 0], sizes = [1, 8, 64], strides = [1, 1, 1]} : vector<4x8x64xf32> to vector<1x8x64xf32>
    %196 = vector.shape_cast %195 : vector<1x8x64xf32> to vector<8x64xf32>
    %197 = arith.mulf %194, %196 : vector<8x64xf32>
    %198 = arith.addf %193, %197 : vector<8x64xf32>
    %199 = vector.extract_strided_slice %108 {offsets = [64, 0], sizes = [8, 8], strides = [1, 1]} : vector<128x8xf32> to vector<8x8xf32>
    %200 = vector.extract_strided_slice %108 {offsets = [72, 0], sizes = [8, 8], strides = [1, 1]} : vector<128x8xf32> to vector<8x8xf32>
    %201 = vector.extract_strided_slice %108 {offsets = [80, 0], sizes = [8, 8], strides = [1, 1]} : vector<128x8xf32> to vector<8x8xf32>
    %202 = vector.extract_strided_slice %108 {offsets = [88, 0], sizes = [8, 8], strides = [1, 1]} : vector<128x8xf32> to vector<8x8xf32>
    %203 = arith.maximumf %199, %200 : vector<8x8xf32>
    %204 = arith.maximumf %203, %201 : vector<8x8xf32>
    %205 = arith.maximumf %204, %202 : vector<8x8xf32>
    %206 = arith.subf %199, %205 : vector<8x8xf32>
    %207 = math.exp %206 : vector<8x8xf32>
    %208 = arith.subf %200, %205 : vector<8x8xf32>
    %209 = math.exp %208 : vector<8x8xf32>
    %210 = arith.subf %201, %205 : vector<8x8xf32>
    %211 = math.exp %210 : vector<8x8xf32>
    %212 = arith.subf %202, %205 : vector<8x8xf32>
    %213 = math.exp %212 : vector<8x8xf32>
    %214 = arith.addf %207, %209 : vector<8x8xf32>
    %215 = arith.addf %214, %211 : vector<8x8xf32>
    %216 = arith.addf %215, %213 : vector<8x8xf32>
    %217 = tpu.reciprocal %216 {approx = true} : vector<8x8xf32> -> vector<8x8xf32>
    %218 = arith.mulf %207, %217 : vector<8x8xf32>
    %219 = arith.mulf %209, %217 : vector<8x8xf32>
    %220 = arith.mulf %211, %217 : vector<8x8xf32>
    %221 = arith.mulf %213, %217 : vector<8x8xf32>
    %222 = tpu.concatenate %218, %219, %220, %221 in 0 : vector<8x8xf32>, vector<8x8xf32>, vector<8x8xf32>, vector<8x8xf32> -> vector<32x8xf32>
    %c0_28 = arith.constant 0 : index
    %c0_29 = arith.constant 0 : index
    %223 = vector.load %arg3[%c0_28, %c0_29] : memref<8x64xf32, #tpu.memory_space<vmem>>, vector<8x64xf32>
    %cst_30 = arith.constant dense<0.000000e+00> : vector<32x64xf32>
    %224 = tpu.matmul %222, %223, %cst_30 {dimension_numbers = #tpu.dot_dimension_numbers<[1], [0], [0], [1], [0, 0, 1, 1], [], []>} : vector<32x8xf32>, vector<8x64xf32>, vector<32x64xf32> -> vector<32x64xf32>
    %225 = vector.extract_strided_slice %224 {offsets = [0, 0], sizes = [8, 64], strides = [1, 1]} : vector<32x64xf32> to vector<8x64xf32>
    %226 = vector.extract_strided_slice %25 {offsets = [0, 0, 0], sizes = [1, 8, 64], strides = [1, 1, 1]} : vector<4x8x64xf32> to vector<1x8x64xf32>
    %227 = vector.shape_cast %226 : vector<1x8x64xf32> to vector<8x64xf32>
    %228 = arith.mulf %225, %227 : vector<8x64xf32>
    %229 = vector.extract_strided_slice %224 {offsets = [8, 0], sizes = [8, 64], strides = [1, 1]} : vector<32x64xf32> to vector<8x64xf32>
    %230 = vector.extract_strided_slice %25 {offsets = [1, 0, 0], sizes = [1, 8, 64], strides = [1, 1, 1]} : vector<4x8x64xf32> to vector<1x8x64xf32>
    %231 = vector.shape_cast %230 : vector<1x8x64xf32> to vector<8x64xf32>
    %232 = arith.mulf %229, %231 : vector<8x64xf32>
    %233 = arith.addf %228, %232 : vector<8x64xf32>
    %234 = vector.extract_strided_slice %224 {offsets = [16, 0], sizes = [8, 64], strides = [1, 1]} : vector<32x64xf32> to vector<8x64xf32>
    %235 = vector.extract_strided_slice %25 {offsets = [2, 0, 0], sizes = [1, 8, 64], strides = [1, 1, 1]} : vector<4x8x64xf32> to vector<1x8x64xf32>
    %236 = vector.shape_cast %235 : vector<1x8x64xf32> to vector<8x64xf32>
    %237 = arith.mulf %234, %236 : vector<8x64xf32>
    %238 = arith.addf %233, %237 : vector<8x64xf32>
    %239 = vector.extract_strided_slice %224 {offsets = [24, 0], sizes = [8, 64], strides = [1, 1]} : vector<32x64xf32> to vector<8x64xf32>
    %240 = vector.extract_strided_slice %25 {offsets = [3, 0, 0], sizes = [1, 8, 64], strides = [1, 1, 1]} : vector<4x8x64xf32> to vector<1x8x64xf32>
    %241 = vector.shape_cast %240 : vector<1x8x64xf32> to vector<8x64xf32>
    %242 = arith.mulf %239, %241 : vector<8x64xf32>
    %243 = arith.addf %238, %242 : vector<8x64xf32>
    %244 = vector.extract_strided_slice %108 {offsets = [96, 0], sizes = [8, 8], strides = [1, 1]} : vector<128x8xf32> to vector<8x8xf32>
    %245 = vector.extract_strided_slice %108 {offsets = [104, 0], sizes = [8, 8], strides = [1, 1]} : vector<128x8xf32> to vector<8x8xf32>
    %246 = vector.extract_strided_slice %108 {offsets = [112, 0], sizes = [8, 8], strides = [1, 1]} : vector<128x8xf32> to vector<8x8xf32>
    %247 = vector.extract_strided_slice %108 {offsets = [120, 0], sizes = [8, 8], strides = [1, 1]} : vector<128x8xf32> to vector<8x8xf32>
    %248 = arith.maximumf %244, %245 : vector<8x8xf32>
    %249 = arith.maximumf %248, %246 : vector<8x8xf32>
    %250 = arith.maximumf %249, %247 : vector<8x8xf32>
    %251 = arith.subf %244, %250 : vector<8x8xf32>
    %252 = math.exp %251 : vector<8x8xf32>
    %253 = arith.subf %245, %250 : vector<8x8xf32>
    %254 = math.exp %253 : vector<8x8xf32>
    %255 = arith.subf %246, %250 : vector<8x8xf32>
    %256 = math.exp %255 : vector<8x8xf32>
    %257 = arith.subf %247, %250 : vector<8x8xf32>
    %258 = math.exp %257 : vector<8x8xf32>
    %259 = arith.addf %252, %254 : vector<8x8xf32>
    %260 = arith.addf %259, %256 : vector<8x8xf32>
    %261 = arith.addf %260, %258 : vector<8x8xf32>
    %262 = tpu.reciprocal %261 {approx = true} : vector<8x8xf32> -> vector<8x8xf32>
    %263 = arith.mulf %252, %262 : vector<8x8xf32>
    %264 = arith.mulf %254, %262 : vector<8x8xf32>
    %265 = arith.mulf %256, %262 : vector<8x8xf32>
    %266 = arith.mulf %258, %262 : vector<8x8xf32>
    %267 = tpu.concatenate %263, %264, %265, %266 in 0 : vector<8x8xf32>, vector<8x8xf32>, vector<8x8xf32>, vector<8x8xf32> -> vector<32x8xf32>
    %c0_31 = arith.constant 0 : index
    %c0_32 = arith.constant 0 : index
    %268 = vector.load %arg3[%c0_31, %c0_32] : memref<8x64xf32, #tpu.memory_space<vmem>>, vector<8x64xf32>
    %cst_33 = arith.constant dense<0.000000e+00> : vector<32x64xf32>
    %269 = tpu.matmul %267, %268, %cst_33 {dimension_numbers = #tpu.dot_dimension_numbers<[1], [0], [0], [1], [0, 0, 1, 1], [], []>} : vector<32x8xf32>, vector<8x64xf32>, vector<32x64xf32> -> vector<32x64xf32>
    %270 = vector.extract_strided_slice %269 {offsets = [0, 0], sizes = [8, 64], strides = [1, 1]} : vector<32x64xf32> to vector<8x64xf32>
    %271 = vector.extract_strided_slice %25 {offsets = [0, 0, 0], sizes = [1, 8, 64], strides = [1, 1, 1]} : vector<4x8x64xf32> to vector<1x8x64xf32>
    %272 = vector.shape_cast %271 : vector<1x8x64xf32> to vector<8x64xf32>
    %273 = arith.mulf %270, %272 : vector<8x64xf32>
    %274 = vector.extract_strided_slice %269 {offsets = [8, 0], sizes = [8, 64], strides = [1, 1]} : vector<32x64xf32> to vector<8x64xf32>
    %275 = vector.extract_strided_slice %25 {offsets = [1, 0, 0], sizes = [1, 8, 64], strides = [1, 1, 1]} : vector<4x8x64xf32> to vector<1x8x64xf32>
    %276 = vector.shape_cast %275 : vector<1x8x64xf32> to vector<8x64xf32>
    %277 = arith.mulf %274, %276 : vector<8x64xf32>
    %278 = arith.addf %273, %277 : vector<8x64xf32>
    %279 = vector.extract_strided_slice %269 {offsets = [16, 0], sizes = [8, 64], strides = [1, 1]} : vector<32x64xf32> to vector<8x64xf32>
    %280 = vector.extract_strided_slice %25 {offsets = [2, 0, 0], sizes = [1, 8, 64], strides = [1, 1, 1]} : vector<4x8x64xf32> to vector<1x8x64xf32>
    %281 = vector.shape_cast %280 : vector<1x8x64xf32> to vector<8x64xf32>
    %282 = arith.mulf %279, %281 : vector<8x64xf32>
    %283 = arith.addf %278, %282 : vector<8x64xf32>
    %284 = vector.extract_strided_slice %269 {offsets = [24, 0], sizes = [8, 64], strides = [1, 1]} : vector<32x64xf32> to vector<8x64xf32>
    %285 = vector.extract_strided_slice %25 {offsets = [3, 0, 0], sizes = [1, 8, 64], strides = [1, 1, 1]} : vector<4x8x64xf32> to vector<1x8x64xf32>
    %286 = vector.shape_cast %285 : vector<1x8x64xf32> to vector<8x64xf32>
    %287 = arith.mulf %284, %286 : vector<8x64xf32>
    %288 = arith.addf %283, %287 : vector<8x64xf32>
    %289 = tpu.concatenate %153, %198, %243, %288 in 0 : vector<8x64xf32>, vector<8x64xf32>, vector<8x64xf32>, vector<8x64xf32> -> vector<32x64xf32>
    %c0_34 = arith.constant 0 : index
    %c0_35 = arith.constant 0 : index
    %290 = vector.load %arg10[%c0_34, %c0_35] : memref<64x64xf32, #tpu.memory_space<vmem>>, vector<64x64xf32>
    %cst_36 = arith.constant dense<0.000000e+00> : vector<32x64xf32>
    %291 = tpu.matmul %289, %290, %cst_36 {dimension_numbers = #tpu.dot_dimension_numbers<[1], [0], [0], [1], [0, 0, 1, 1], [], []>} : vector<32x64xf32>, vector<64x64xf32>, vector<32x64xf32> -> vector<32x64xf32>
    %c0_37 = arith.constant 0 : index
    %c0_38 = arith.constant 0 : index
    %292 = vector.load %arg11[%c0_37, %c0_38] : memref<1x64xf32, #tpu.memory_space<vmem>>, vector<1x64xf32>
    %293 = vector.broadcast %292 : vector<1x64xf32> to vector<32x64xf32>
    %294 = arith.addf %291, %293 : vector<32x64xf32>
    %295 = arith.addf %5, %294 : vector<32x64xf32>
    %c0_39 = arith.constant 0 : index
    %c0_40 = arith.constant 0 : index
    %296 = vector.load %arg12[%c0_39, %c0_40] : memref<1x64xf32, #tpu.memory_space<vmem>>, vector<1x64xf32>
    %c0_41 = arith.constant 0 : index
    %c0_42 = arith.constant 0 : index
    %297 = vector.load %arg13[%c0_41, %c0_42] : memref<1x64xf32, #tpu.memory_space<vmem>>, vector<1x64xf32>
    %cst_43 = arith.constant dense<0.000000e+00> : vector<32xf32>
    %298 = vector.multi_reduction <add>, %295, %cst_43 [1] : vector<32x64xf32> to vector<32xf32>
    %299 = vector.shape_cast %298 : vector<32xf32> to vector<32x1xf32>
    %cst_44 = arith.constant 6.400000e+01 : f32
    %300 = vector.broadcast %cst_44 : f32 to vector<32x1xf32>
    %301 = arith.divf %299, %300 : vector<32x1xf32>
    %302 = vector.broadcast %301 : vector<32x1xf32> to vector<32x64xf32>
    %303 = arith.subf %295, %302 : vector<32x64xf32>
    %304 = arith.mulf %303, %303 : vector<32x64xf32>
    %cst_45 = arith.constant dense<0.000000e+00> : vector<32xf32>
    %305 = vector.multi_reduction <add>, %304, %cst_45 [1] : vector<32x64xf32> to vector<32xf32>
    %306 = vector.shape_cast %305 : vector<32xf32> to vector<32x1xf32>
    %cst_46 = arith.constant 6.400000e+01 : f32
    %307 = vector.broadcast %cst_46 : f32 to vector<32x1xf32>
    %308 = arith.divf %306, %307 : vector<32x1xf32>
    %cst_47 = arith.constant 9.99999974E-6 : f32
    %309 = vector.broadcast %cst_47 : f32 to vector<32x1xf32>
    %310 = arith.addf %308, %309 : vector<32x1xf32>
    %311 = math.rsqrt %310 : vector<32x1xf32>
    %312 = vector.broadcast %311 : vector<32x1xf32> to vector<32x64xf32>
    %313 = arith.mulf %303, %312 : vector<32x64xf32>
    %314 = vector.broadcast %296 : vector<1x64xf32> to vector<32x64xf32>
    %315 = arith.mulf %313, %314 : vector<32x64xf32>
    %316 = vector.broadcast %297 : vector<1x64xf32> to vector<32x64xf32>
    %317 = arith.addf %315, %316 : vector<32x64xf32>
    %c0_48 = arith.constant 0 : index
    %c0_49 = arith.constant 0 : index
    %318 = vector.load %arg14[%c0_48, %c0_49] : memref<64x2048xbf16, #tpu.memory_space<vmem>>, vector<64x2048xbf16>
    %319 = arith.extf %318 : vector<64x2048xbf16> to vector<64x2048xf32>
    %cst_50 = arith.constant dense<0.000000e+00> : vector<32x2048xf32>
    %320 = tpu.matmul %317, %319, %cst_50 {dimension_numbers = #tpu.dot_dimension_numbers<[1], [0], [0], [1], [0, 0, 1, 1], [], []>} : vector<32x64xf32>, vector<64x2048xf32>, vector<32x2048xf32> -> vector<32x2048xf32>
    %c0_51 = arith.constant 0 : index
    %c0_52 = arith.constant 0 : index
    %321 = vector.load %arg15[%c0_51, %c0_52] : memref<1x2048xf32, #tpu.memory_space<vmem>>, vector<1x2048xf32>
    %322 = vector.broadcast %321 : vector<1x2048xf32> to vector<32x2048xf32>
    %323 = arith.addf %320, %322 : vector<32x2048xf32>
    %cst_53 = arith.constant 0.000000e+00 : f32
    %324 = vector.broadcast %cst_53 : f32 to vector<32x2048xf32>
    %325 = arith.maximumf %323, %324 : vector<32x2048xf32>
    %c0_54 = arith.constant 0 : index
    %c0_55 = arith.constant 0 : index
    %326 = vector.load %arg16[%c0_54, %c0_55] : memref<2048x64xbf16, #tpu.memory_space<vmem>>, vector<2048x64xbf16>
    %327 = arith.extf %326 : vector<2048x64xbf16> to vector<2048x64xf32>
    %cst_56 = arith.constant dense<0.000000e+00> : vector<32x64xf32>
    %328 = tpu.matmul %325, %327, %cst_56 {dimension_numbers = #tpu.dot_dimension_numbers<[1], [0], [0], [1], [0, 0, 1, 1], [], []>} : vector<32x2048xf32>, vector<2048x64xf32>, vector<32x64xf32> -> vector<32x64xf32>
    %c0_57 = arith.constant 0 : index
    %c0_58 = arith.constant 0 : index
    %329 = vector.load %arg17[%c0_57, %c0_58] : memref<1x64xf32, #tpu.memory_space<vmem>>, vector<1x64xf32>
    %330 = vector.broadcast %329 : vector<1x64xf32> to vector<32x64xf32>
    %331 = arith.addf %328, %330 : vector<32x64xf32>
    %332 = arith.addf %317, %331 : vector<32x64xf32>
    %c0_59 = arith.constant 0 : index
    %c0_60 = arith.constant 0 : index
    %333 = vector.load %arg18[%c0_59, %c0_60] : memref<1x64xf32, #tpu.memory_space<vmem>>, vector<1x64xf32>
    %c0_61 = arith.constant 0 : index
    %c0_62 = arith.constant 0 : index
    %334 = vector.load %arg19[%c0_61, %c0_62] : memref<1x64xf32, #tpu.memory_space<vmem>>, vector<1x64xf32>
    %cst_63 = arith.constant dense<0.000000e+00> : vector<32xf32>
    %335 = vector.multi_reduction <add>, %332, %cst_63 [1] : vector<32x64xf32> to vector<32xf32>
    %336 = vector.shape_cast %335 : vector<32xf32> to vector<32x1xf32>
    %cst_64 = arith.constant 6.400000e+01 : f32
    %337 = vector.broadcast %cst_64 : f32 to vector<32x1xf32>
    %338 = arith.divf %336, %337 : vector<32x1xf32>
    %339 = vector.broadcast %338 : vector<32x1xf32> to vector<32x64xf32>
    %340 = arith.subf %332, %339 : vector<32x64xf32>
    %341 = arith.mulf %340, %340 : vector<32x64xf32>
    %cst_65 = arith.constant dense<0.000000e+00> : vector<32xf32>
    %342 = vector.multi_reduction <add>, %341, %cst_65 [1] : vector<32x64xf32> to vector<32xf32>
    %343 = vector.shape_cast %342 : vector<32xf32> to vector<32x1xf32>
    %cst_66 = arith.constant 6.400000e+01 : f32
    %344 = vector.broadcast %cst_66 : f32 to vector<32x1xf32>
    %345 = arith.divf %343, %344 : vector<32x1xf32>
    %cst_67 = arith.constant 9.99999974E-6 : f32
    %346 = vector.broadcast %cst_67 : f32 to vector<32x1xf32>
    %347 = arith.addf %345, %346 : vector<32x1xf32>
    %348 = math.rsqrt %347 : vector<32x1xf32>
    %349 = vector.broadcast %348 : vector<32x1xf32> to vector<32x64xf32>
    %350 = arith.mulf %340, %349 : vector<32x64xf32>
    %351 = vector.broadcast %333 : vector<1x64xf32> to vector<32x64xf32>
    %352 = arith.mulf %350, %351 : vector<32x64xf32>
    %353 = vector.broadcast %334 : vector<1x64xf32> to vector<32x64xf32>
    %354 = arith.addf %352, %353 : vector<32x64xf32>
    %c0_68 = arith.constant 0 : index
    %c0_69 = arith.constant 0 : index
    %355 = vector.load %arg31[%c0_68, %c0_69] : memref<32x64xf32, #tpu.memory_space<vmem>>, vector<32x64xf32>
    tpu.vector_store %arg31[%c0_68, %c0_69], %354 {strides = array<i32>} : memref<32x64xf32, #tpu.memory_space<vmem>>, vector<32x64xf32>,
    %cst_70 = arith.constant 0.000000e+00 : f32
    %356 = vector.broadcast %cst_70 : f32 to vector<4x64xf32>
    %c0_71 = arith.constant 0 : index
    %c0_72 = arith.constant 0 : index
    %357 = vector.load %arg21[%c0_71, %c0_72] : memref<1x64xf32, #tpu.memory_space<vmem>>, vector<1x64xf32>
    %358 = vector.broadcast %357 : vector<1x64xf32> to vector<4x64xf32>
    %359 = arith.addf %356, %358 : vector<4x64xf32>
    %cst_73 = arith.constant 0.000000e+00 : f32
    %360 = vector.broadcast %cst_73 : f32 to vector<4x64xf32>
    %c0_74 = arith.constant 0 : index
    %c0_75 = arith.constant 0 : index
    %361 = vector.load %arg25[%c0_74, %c0_75] : memref<1x64xf32, #tpu.memory_space<vmem>>, vector<1x64xf32>
    %362 = vector.broadcast %361 : vector<1x64xf32> to vector<4x64xf32>
    %363 = arith.addf %360, %362 : vector<4x64xf32>
    %c0_76 = arith.constant 0 : index
    %c0_77 = arith.constant 0 : index
    %364 = tpu.strided_load %arg31[%c0_76, %c0_77] {strides = array<i32: 8, 1>} : memref<32x64xf32, #tpu.memory_space<vmem>>, vector<4x64xf32>
    %c0_78 = arith.constant 0 : index
    %c0_79 = arith.constant 0 : index
    %c0_80 = arith.constant 0 : index
    %365 = vector.load %arg20[%c0_78, %c0_79, %c0_80] : memref<8x64x64xf32, #tpu.memory_space<vmem>>, vector<1x64x64xf32>
    %366 = vector.shape_cast %365 : vector<1x64x64xf32> to vector<64x64xf32>
    %cst_81 = arith.constant dense<0.000000e+00> : vector<4x64xf32>
    %367 = tpu.matmul %364, %366, %cst_81 {dimension_numbers = #tpu.dot_dimension_numbers<[1], [0], [0], [1], [0, 0, 1, 1], [], []>} : vector<4x64xf32>, vector<64x64xf32>, vector<4x64xf32> -> vector<4x64xf32>
    %368 = arith.addf %359, %367 : vector<4x64xf32>
    %c0_82 = arith.constant 0 : index
    %c0_83 = arith.constant 0 : index
    %c0_84 = arith.constant 0 : index
    %369 = vector.load %arg24[%c0_82, %c0_83, %c0_84] : memref<8x64x64xf32, #tpu.memory_space<vmem>>, vector<1x64x64xf32>
    %370 = vector.shape_cast %369 : vector<1x64x64xf32> to vector<64x64xf32>
    %cst_85 = arith.constant dense<0.000000e+00> : vector<4x64xf32>
    %371 = tpu.matmul %364, %370, %cst_85 {dimension_numbers = #tpu.dot_dimension_numbers<[1], [0], [0], [1], [0, 0, 1, 1], [], []>} : vector<4x64xf32>, vector<64x64xf32>, vector<4x64xf32> -> vector<4x64xf32>
    %372 = arith.addf %363, %371 : vector<4x64xf32>
    %c1 = arith.constant 1 : index
    %c0_86 = arith.constant 0 : index
    %373 = tpu.strided_load %arg31[%c1, %c0_86] {strides = array<i32: 8, 1>} : memref<32x64xf32, #tpu.memory_space<vmem>>, vector<4x64xf32>
    %c1_87 = arith.constant 1 : index
    %c0_88 = arith.constant 0 : index
    %c0_89 = arith.constant 0 : index
    %374 = vector.load %arg20[%c1_87, %c0_88, %c0_89] : memref<8x64x64xf32, #tpu.memory_space<vmem>>, vector<1x64x64xf32>
    %375 = vector.shape_cast %374 : vector<1x64x64xf32> to vector<64x64xf32>
    %cst_90 = arith.constant dense<0.000000e+00> : vector<4x64xf32>
    %376 = tpu.matmul %373, %375, %cst_90 {dimension_numbers = #tpu.dot_dimension_numbers<[1], [0], [0], [1], [0, 0, 1, 1], [], []>} : vector<4x64xf32>, vector<64x64xf32>, vector<4x64xf32> -> vector<4x64xf32>
    %377 = arith.addf %368, %376 : vector<4x64xf32>
    %c1_91 = arith.constant 1 : index
    %c0_92 = arith.constant 0 : index
    %c0_93 = arith.constant 0 : index
    %378 = vector.load %arg24[%c1_91, %c0_92, %c0_93] : memref<8x64x64xf32, #tpu.memory_space<vmem>>, vector<1x64x64xf32>
    %379 = vector.shape_cast %378 : vector<1x64x64xf32> to vector<64x64xf32>
    %cst_94 = arith.constant dense<0.000000e+00> : vector<4x64xf32>
    %380 = tpu.matmul %373, %379, %cst_94 {dimension_numbers = #tpu.dot_dimension_numbers<[1], [0], [0], [1], [0, 0, 1, 1], [], []>} : vector<4x64xf32>, vector<64x64xf32>, vector<4x64xf32> -> vector<4x64xf32>
    %381 = arith.addf %372, %380 : vector<4x64xf32>
    %c2 = arith.constant 2 : index
    %c0_95 = arith.constant 0 : index
    %382 = tpu.strided_load %arg31[%c2, %c0_95] {strides = array<i32: 8, 1>} : memref<32x64xf32, #tpu.memory_space<vmem>>, vector<4x64xf32>
    %c2_96 = arith.constant 2 : index
    %c0_97 = arith.constant 0 : index
    %c0_98 = arith.constant 0 : index
    %383 = vector.load %arg20[%c2_96, %c0_97, %c0_98] : memref<8x64x64xf32, #tpu.memory_space<vmem>>, vector<1x64x64xf32>
    %384 = vector.shape_cast %383 : vector<1x64x64xf32> to vector<64x64xf32>
    %cst_99 = arith.constant dense<0.000000e+00> : vector<4x64xf32>
    %385 = tpu.matmul %382, %384, %cst_99 {dimension_numbers = #tpu.dot_dimension_numbers<[1], [0], [0], [1], [0, 0, 1, 1], [], []>} : vector<4x64xf32>, vector<64x64xf32>, vector<4x64xf32> -> vector<4x64xf32>
    %386 = arith.addf %377, %385 : vector<4x64xf32>
    %c2_100 = arith.constant 2 : index
    %c0_101 = arith.constant 0 : index
    %c0_102 = arith.constant 0 : index
    %387 = vector.load %arg24[%c2_100, %c0_101, %c0_102] : memref<8x64x64xf32, #tpu.memory_space<vmem>>, vector<1x64x64xf32>
    %388 = vector.shape_cast %387 : vector<1x64x64xf32> to vector<64x64xf32>
    %cst_103 = arith.constant dense<0.000000e+00> : vector<4x64xf32>
    %389 = tpu.matmul %382, %388, %cst_103 {dimension_numbers = #tpu.dot_dimension_numbers<[1], [0], [0], [1], [0, 0, 1, 1], [], []>} : vector<4x64xf32>, vector<64x64xf32>, vector<4x64xf32> -> vector<4x64xf32>
    %390 = arith.addf %381, %389 : vector<4x64xf32>
    %c3 = arith.constant 3 : index
    %c0_104 = arith.constant 0 : index
    %391 = tpu.strided_load %arg31[%c3, %c0_104] {strides = array<i32: 8, 1>} : memref<32x64xf32, #tpu.memory_space<vmem>>, vector<4x64xf32>
    %c3_105 = arith.constant 3 : index
    %c0_106 = arith.constant 0 : index
    %c0_107 = arith.constant 0 : index
    %392 = vector.load %arg20[%c3_105, %c0_106, %c0_107] : memref<8x64x64xf32, #tpu.memory_space<vmem>>, vector<1x64x64xf32>
    %393 = vector.shape_cast %392 : vector<1x64x64xf32> to vector<64x64xf32>
    %cst_108 = arith.constant dense<0.000000e+00> : vector<4x64xf32>
    %394 = tpu.matmul %391, %393, %cst_108 {dimension_numbers = #tpu.dot_dimension_numbers<[1], [0], [0], [1], [0, 0, 1, 1], [], []>} : vector<4x64xf32>, vector<64x64xf32>, vector<4x64xf32> -> vector<4x64xf32>
    %395 = arith.addf %386, %394 : vector<4x64xf32>
    %c3_109 = arith.constant 3 : index
    %c0_110 = arith.constant 0 : index
    %c0_111 = arith.constant 0 : index
    %396 = vector.load %arg24[%c3_109, %c0_110, %c0_111] : memref<8x64x64xf32, #tpu.memory_space<vmem>>, vector<1x64x64xf32>
    %397 = vector.shape_cast %396 : vector<1x64x64xf32> to vector<64x64xf32>
    %cst_112 = arith.constant dense<0.000000e+00> : vector<4x64xf32>
    %398 = tpu.matmul %391, %397, %cst_112 {dimension_numbers = #tpu.dot_dimension_numbers<[1], [0], [0], [1], [0, 0, 1, 1], [], []>} : vector<4x64xf32>, vector<64x64xf32>, vector<4x64xf32> -> vector<4x64xf32>
    %399 = arith.addf %390, %398 : vector<4x64xf32>
    %c4 = arith.constant 4 : index
    %c0_113 = arith.constant 0 : index
    %400 = tpu.strided_load %arg31[%c4, %c0_113] {strides = array<i32: 8, 1>} : memref<32x64xf32, #tpu.memory_space<vmem>>, vector<4x64xf32>
    %c4_114 = arith.constant 4 : index
    %c0_115 = arith.constant 0 : index
    %c0_116 = arith.constant 0 : index
    %401 = vector.load %arg20[%c4_114, %c0_115, %c0_116] : memref<8x64x64xf32, #tpu.memory_space<vmem>>, vector<1x64x64xf32>
    %402 = vector.shape_cast %401 : vector<1x64x64xf32> to vector<64x64xf32>
    %cst_117 = arith.constant dense<0.000000e+00> : vector<4x64xf32>
    %403 = tpu.matmul %400, %402, %cst_117 {dimension_numbers = #tpu.dot_dimension_numbers<[1], [0], [0], [1], [0, 0, 1, 1], [], []>} : vector<4x64xf32>, vector<64x64xf32>, vector<4x64xf32> -> vector<4x64xf32>
    %404 = arith.addf %395, %403 : vector<4x64xf32>
    %c4_118 = arith.constant 4 : index
    %c0_119 = arith.constant 0 : index
    %c0_120 = arith.constant 0 : index
    %405 = vector.load %arg24[%c4_118, %c0_119, %c0_120] : memref<8x64x64xf32, #tpu.memory_space<vmem>>, vector<1x64x64xf32>
    %406 = vector.shape_cast %405 : vector<1x64x64xf32> to vector<64x64xf32>
    %cst_121 = arith.constant dense<0.000000e+00> : vector<4x64xf32>
    %407 = tpu.matmul %400, %406, %cst_121 {dimension_numbers = #tpu.dot_dimension_numbers<[1], [0], [0], [1], [0, 0, 1, 1], [], []>} : vector<4x64xf32>, vector<64x64xf32>, vector<4x64xf32> -> vector<4x64xf32>
    %408 = arith.addf %399, %407 : vector<4x64xf32>
    %c5 = arith.constant 5 : index
    %c0_122 = arith.constant 0 : index
    %409 = tpu.strided_load %arg31[%c5, %c0_122] {strides = array<i32: 8, 1>} : memref<32x64xf32, #tpu.memory_space<vmem>>, vector<4x64xf32>
    %c5_123 = arith.constant 5 : index
    %c0_124 = arith.constant 0 : index
    %c0_125 = arith.constant 0 : index
    %410 = vector.load %arg20[%c5_123, %c0_124, %c0_125] : memref<8x64x64xf32, #tpu.memory_space<vmem>>, vector<1x64x64xf32>
    %411 = vector.shape_cast %410 : vector<1x64x64xf32> to vector<64x64xf32>
    %cst_126 = arith.constant dense<0.000000e+00> : vector<4x64xf32>
    %412 = tpu.matmul %409, %411, %cst_126 {dimension_numbers = #tpu.dot_dimension_numbers<[1], [0], [0], [1], [0, 0, 1, 1], [], []>} : vector<4x64xf32>, vector<64x64xf32>, vector<4x64xf32> -> vector<4x64xf32>
    %413 = arith.addf %404, %412 : vector<4x64xf32>
    %c5_127 = arith.constant 5 : index
    %c0_128 = arith.constant 0 : index
    %c0_129 = arith.constant 0 : index
    %414 = vector.load %arg24[%c5_127, %c0_128, %c0_129] : memref<8x64x64xf32, #tpu.memory_space<vmem>>, vector<1x64x64xf32>
    %415 = vector.shape_cast %414 : vector<1x64x64xf32> to vector<64x64xf32>
    %cst_130 = arith.constant dense<0.000000e+00> : vector<4x64xf32>
    %416 = tpu.matmul %409, %415, %cst_130 {dimension_numbers = #tpu.dot_dimension_numbers<[1], [0], [0], [1], [0, 0, 1, 1], [], []>} : vector<4x64xf32>, vector<64x64xf32>, vector<4x64xf32> -> vector<4x64xf32>
    %417 = arith.addf %408, %416 : vector<4x64xf32>
    %c6 = arith.constant 6 : index
    %c0_131 = arith.constant 0 : index
    %418 = tpu.strided_load %arg31[%c6, %c0_131] {strides = array<i32: 8, 1>} : memref<32x64xf32, #tpu.memory_space<vmem>>, vector<4x64xf32>
    %c6_132 = arith.constant 6 : index
    %c0_133 = arith.constant 0 : index
    %c0_134 = arith.constant 0 : index
    %419 = vector.load %arg20[%c6_132, %c0_133, %c0_134] : memref<8x64x64xf32, #tpu.memory_space<vmem>>, vector<1x64x64xf32>
    %420 = vector.shape_cast %419 : vector<1x64x64xf32> to vector<64x64xf32>
    %cst_135 = arith.constant dense<0.000000e+00> : vector<4x64xf32>
    %421 = tpu.matmul %418, %420, %cst_135 {dimension_numbers = #tpu.dot_dimension_numbers<[1], [0], [0], [1], [0, 0, 1, 1], [], []>} : vector<4x64xf32>, vector<64x64xf32>, vector<4x64xf32> -> vector<4x64xf32>
    %422 = arith.addf %413, %421 : vector<4x64xf32>
    %c6_136 = arith.constant 6 : index
    %c0_137 = arith.constant 0 : index
    %c0_138 = arith.constant 0 : index
    %423 = vector.load %arg24[%c6_136, %c0_137, %c0_138] : memref<8x64x64xf32, #tpu.memory_space<vmem>>, vector<1x64x64xf32>
    %424 = vector.shape_cast %423 : vector<1x64x64xf32> to vector<64x64xf32>
    %cst_139 = arith.constant dense<0.000000e+00> : vector<4x64xf32>
    %425 = tpu.matmul %418, %424, %cst_139 {dimension_numbers = #tpu.dot_dimension_numbers<[1], [0], [0], [1], [0, 0, 1, 1], [], []>} : vector<4x64xf32>, vector<64x64xf32>, vector<4x64xf32> -> vector<4x64xf32>
    %426 = arith.addf %417, %425 : vector<4x64xf32>
    %c7 = arith.constant 7 : index
    %c0_140 = arith.constant 0 : index
    %427 = tpu.strided_load %arg31[%c7, %c0_140] {strides = array<i32: 8, 1>} : memref<32x64xf32, #tpu.memory_space<vmem>>, vector<4x64xf32>
    %c7_141 = arith.constant 7 : index
    %c0_142 = arith.constant 0 : index
    %c0_143 = arith.constant 0 : index
    %428 = vector.load %arg20[%c7_141, %c0_142, %c0_143] : memref<8x64x64xf32, #tpu.memory_space<vmem>>, vector<1x64x64xf32>
    %429 = vector.shape_cast %428 : vector<1x64x64xf32> to vector<64x64xf32>
    %cst_144 = arith.constant dense<0.000000e+00> : vector<4x64xf32>
    %430 = tpu.matmul %427, %429, %cst_144 {dimension_numbers = #tpu.dot_dimension_numbers<[1], [0], [0], [1], [0, 0, 1, 1], [], []>} : vector<4x64xf32>, vector<64x64xf32>, vector<4x64xf32> -> vector<4x64xf32>
    %431 = arith.addf %422, %430 : vector<4x64xf32>
    %c7_145 = arith.constant 7 : index
    %c0_146 = arith.constant 0 : index
    %c0_147 = arith.constant 0 : index
    %432 = vector.load %arg24[%c7_145, %c0_146, %c0_147] : memref<8x64x64xf32, #tpu.memory_space<vmem>>, vector<1x64x64xf32>
    %433 = vector.shape_cast %432 : vector<1x64x64xf32> to vector<64x64xf32>
    %cst_148 = arith.constant dense<0.000000e+00> : vector<4x64xf32>
    %434 = tpu.matmul %427, %433, %cst_148 {dimension_numbers = #tpu.dot_dimension_numbers<[1], [0], [0], [1], [0, 0, 1, 1], [], []>} : vector<4x64xf32>, vector<64x64xf32>, vector<4x64xf32> -> vector<4x64xf32>
    %435 = arith.addf %426, %434 : vector<4x64xf32>
    %436 = math.tanh %431 : vector<4x64xf32>
    %c0_149 = arith.constant 0 : index
    %c0_150 = arith.constant 0 : index
    %437 = vector.load %arg22[%c0_149, %c0_150] : memref<64x64xf32, #tpu.memory_space<vmem>>, vector<64x64xf32>
    %cst_151 = arith.constant dense<0.000000e+00> : vector<4x64xf32>
    %438 = tpu.matmul %436, %437, %cst_151 {dimension_numbers = #tpu.dot_dimension_numbers<[1], [0], [0], [1], [0, 0, 1, 1], [], []>} : vector<4x64xf32>, vector<64x64xf32>, vector<4x64xf32> -> vector<4x64xf32>
    %c0_152 = arith.constant 0 : index
    %c0_153 = arith.constant 0 : index
    %439 = vector.load %arg23[%c0_152, %c0_153] : memref<1x64xf32, #tpu.memory_space<vmem>>, vector<1x64xf32>
    %440 = vector.broadcast %439 : vector<1x64xf32> to vector<4x64xf32>
    %441 = arith.addf %438, %440 : vector<4x64xf32>
    %442 = math.tanh %441 : vector<4x64xf32>
    %443 = math.tanh %435 : vector<4x64xf32>
    %c0_154 = arith.constant 0 : index
    %c0_155 = arith.constant 0 : index
    %444 = vector.load %arg26[%c0_154, %c0_155] : memref<64x64xf32, #tpu.memory_space<vmem>>, vector<64x64xf32>
    %cst_156 = arith.constant dense<0.000000e+00> : vector<4x64xf32>
    %445 = tpu.matmul %443, %444, %cst_156 {dimension_numbers = #tpu.dot_dimension_numbers<[1], [0], [0], [1], [0, 0, 1, 1], [], []>} : vector<4x64xf32>, vector<64x64xf32>, vector<4x64xf32> -> vector<4x64xf32>
    %c0_157 = arith.constant 0 : index
    %c0_158 = arith.constant 0 : index
    %446 = vector.load %arg27[%c0_157, %c0_158] : memref<1x64xf32, #tpu.memory_space<vmem>>, vector<1x64xf32>
    %447 = vector.broadcast %446 : vector<1x64xf32> to vector<4x64xf32>
    %448 = arith.addf %445, %447 : vector<4x64xf32>
    %449 = math.tanh %448 : vector<4x64xf32>
    %c0_159 = arith.constant 0 : index
    %c0_160 = arith.constant 0 : index
    %450 = vector.load %arg28[%c0_159, %c0_160] : memref<64x1xf32, #tpu.memory_space<vmem>>, vector<64x1xf32>
    %cst_161 = arith.constant dense<0.000000e+00> : vector<4x1xf32>
    %451 = tpu.matmul %449, %450, %cst_161 {dimension_numbers = #tpu.dot_dimension_numbers<[1], [0], [0], [1], [0, 0, 1, 1], [], []>} : vector<4x64xf32>, vector<64x1xf32>, vector<4x1xf32> -> vector<4x1xf32>
    %c0_162 = arith.constant 0 : index
    %c0_163 = arith.constant 0 : index
    %452 = vector.load %arg29[%c0_162, %c0_163] : memref<1x1xf32, #tpu.memory_space<vmem>>, vector<1x1xf32>
    %453 = vector.broadcast %452 : vector<1x1xf32> to vector<4x1xf32>
    %454 = arith.addf %451, %453 : vector<4x1xf32>
    %cst_164 = arith.constant 0.000000e+00 : f32
    %455 = vector.broadcast %cst_164 : f32 to vector<4x63xf32>
    %456 = tpu.concatenate %454, %455, %442 in 1 : vector<4x1xf32>, vector<4x63xf32>, vector<4x64xf32> -> vector<4x128xf32>
    %c0_165 = arith.constant 0 : index
    %c0_166 = arith.constant 0 : index
    %457 = vector.load %arg30[%c0_165, %c0_166] : memref<4x128xf32, #tpu.memory_space<vmem>>, vector<4x128xf32>
    tpu.vector_store %arg30[%c0_165, %c0_166], %456 {strides = array<i32>} : memref<4x128xf32, #tpu.memory_space<vmem>>, vector<4x128xf32>,
    return
  }
}

</mosaic_0001>

<llo_original>
// kernel: transformer_base_forward.1
$region0: #{transformer_base_forward.1}
  #allocation0 [shape = 'u32[]', space=smem, size = 0x4, offset = 0x4, fixed_abs, tag = 'smem constant byte address 0x4 - core index']
  #allocation1 [shape = 'u32[72,128]{1,0:T(1,128)}', space=vmem, size = 0x9000, scoped, tag = 'internal scratch']
  #allocation2 [shape = 'f32[32,64]{1,0:T(8,128)}', space=vmem, size = 0x4000, scoped, tag = 'scratch operand']
  #allocation3 [shape = 'f32[1,1]{1,0:T(1,128)S(1)}', space=vmem, size = 0x200, scoped, tag = 'scoped memory for transformer_base_forward.1']
  %s0 = inlined_call_operand.smem [shape: u32[31], index: -1, kind: input, shape index: {}]
  %s1 = sld [smem:[%s0]]
  %s2 = scalar_lea.smem %s0, 1
  %s3 = sld [smem:[%s2]]
  %s4 = scalar_lea.smem %s0, 2
  %s5 = sld [smem:[%s4]]
  %s6 = scalar_lea.smem %s0, 3
  %s7 = sld [smem:[%s6]]
  %s8 = scalar_lea.smem %s0, 4
  %s9 = sld [smem:[%s8]]
  %s10 = scalar_lea.smem %s0, 5
  %s11 = sld [smem:[%s10]]
  %s12 = scalar_lea.smem %s0, 6
  %s13 = sld [smem:[%s12]]
  %s14 = scalar_lea.smem %s0, 7
  %s15 = sld [smem:[%s14]]
  %s16 = scalar_lea.smem %s0, 8
  %s17 = sld [smem:[%s16]]
  %s18 = scalar_lea.smem %s0, 9
  %s19 = sld [smem:[%s18]]
  %s20 = scalar_lea.smem %s0, 10
  %s21 = sld [smem:[%s20]]
  %s22 = scalar_lea.smem %s0, 11
  %s23 = sld [smem:[%s22]]
  %s24 = scalar_lea.smem %s0, 12
  %s25 = sld [smem:[%s24]]
  %s26 = scalar_lea.smem %s0, 13
  %s27 = sld [smem:[%s26]]
  %s28 = scalar_lea.smem %s0, 14
  %s29 = sld [smem:[%s28]]
  %s30 = scalar_lea.smem %s0, 15
  %s31 = sld [smem:[%s30]]
  %s32 = scalar_lea.smem %s0, 16
  %s33 = sld [smem:[%s32]]
  %s34 = scalar_lea.smem %s0, 17
  %s35 = sld [smem:[%s34]]
  %s36 = scalar_lea.smem %s0, 18
  %s37 = sld [smem:[%s36]]
  %s38 = scalar_lea.smem %s0, 19
  %s39 = sld [smem:[%s38]]
  %s40 = scalar_lea.smem %s0, 20
  %s41 = sld [smem:[%s40]]
  %s42 = scalar_lea.smem %s0, 21
  %s43 = sld [smem:[%s42]]
  %s44 = scalar_lea.smem %s0, 22
  %s45 = sld [smem:[%s44]]
  %s46 = scalar_lea.smem %s0, 23
  %s47 = sld [smem:[%s46]]
  %s48 = scalar_lea.smem %s0, 24
  %s49 = sld [smem:[%s48]]
  %s50 = scalar_lea.smem %s0, 25
  %s51 = sld [smem:[%s50]]
  %s52 = scalar_lea.smem %s0, 26
  %s53 = sld [smem:[%s52]]
  %s54 = scalar_lea.smem %s0, 27
  %s55 = sld [smem:[%s54]]
  %s56 = scalar_lea.smem %s0, 28
  %s57 = sld [smem:[%s56]]
  %s58 = scalar_lea.smem %s0, 29
  %s59 = sld [smem:[%s58]]
  %s60 = scalar_lea.smem %s0, 30
  %s61 = sld [smem:[%s60]]
  %s62 = sld [smem:[#allocation0]]
  $region130: #{transformer_base_forward.1} parent=0
    _
  %s64 = ssub.s32 1, %s62
  %s65 = scalar_select 0, %s64, %s62
  %v66 = vstv %s59
  %67 = vst [vmem:[#allocation3] sm:$0x1] %v66
  // Predicated region
  $region2: #{transformer_base_forward.1} parent=0 // pred_check
    _
  $region3: #{transformer_base_forward.1} parent=0 // pred_check_branch
    %69 = sbr.rel (0) target = $region5
  $region4: #{transformer_base_forward.1} parent=0 // pred_region
    _
  $region5: #{transformer_base_forward.1} parent=0 // pred_fallthru
    _
  // Predicated region
  $region6: #{transformer_base_forward.1} parent=0 // pred_check
    _
  $region7: #{transformer_base_forward.1} parent=0 // pred_check_branch
    %71 = sbr.rel (0) target = $region9
  $region8: #{transformer_base_forward.1} parent=0 // pred_region
    _
  $region9: #{transformer_base_forward.1} parent=0 // pred_fallthru
    _
  // Predicated region
  $region10: #{transformer_base_forward.1} parent=0 // pred_check
    _
  $region11: #{transformer_base_forward.1} parent=0 // pred_check_branch
    %73 = sbr.rel (0) target = $region13
  $region12: #{transformer_base_forward.1} parent=0 // pred_region
    _
  $region13: #{transformer_base_forward.1} parent=0 // pred_fallthru
    _
  // Predicated region
  $region14: #{transformer_base_forward.1} parent=0 // pred_check
    _
  $region15: #{transformer_base_forward.1} parent=0 // pred_check_branch
    %75 = sbr.rel (0) target = $region17
  $region16: #{transformer_base_forward.1} parent=0 // pred_region
    _
  $region17: #{transformer_base_forward.1} parent=0 // pred_fallthru
    _
  // Predicated region
  $region18: #{transformer_base_forward.1} parent=0 // pred_check
    _
  $region19: #{transformer_base_forward.1} parent=0 // pred_check_branch
    %77 = sbr.rel (0) target = $region21
  $region20: #{transformer_base_forward.1} parent=0 // pred_region
    _
  $region21: #{transformer_base_forward.1} parent=0 // pred_fallthru
    _
  // Predicated region
  $region22: #{transformer_base_forward.1} parent=0 // pred_check
    _
  $region23: #{transformer_base_forward.1} parent=0 // pred_check_branch
    %79 = sbr.rel (0) target = $region25
  $region24: #{transformer_base_forward.1} parent=0 // pred_region
    _
  $region25: #{transformer_base_forward.1} parent=0 // pred_fallthru
    _
  // Predicated region
  $region26: #{transformer_base_forward.1} parent=0 // pred_check
    _
  $region27: #{transformer_base_forward.1} parent=0 // pred_check_branch
    %81 = sbr.rel (0) target = $region29
  $region28: #{transformer_base_forward.1} parent=0 // pred_region
    _
  $region29: #{transformer_base_forward.1} parent=0 // pred_fallthru
    _
  // Predicated region
  $region30: #{transformer_base_forward.1} parent=0 // pred_check
    _
  $region31: #{transformer_base_forward.1} parent=0 // pred_check_branch
    %83 = sbr.rel (0) target = $region33
  $region32: #{transformer_base_forward.1} parent=0 // pred_region
    _
  $region33: #{transformer_base_forward.1} parent=0 // pred_fallthru
    _
  // Predicated region
  $region34: #{transformer_base_forward.1} parent=0 // pred_check
    _
  $region35: #{transformer_base_forward.1} parent=0 // pred_check_branch
    %85 = sbr.rel (0) target = $region37
  $region36: #{transformer_base_forward.1} parent=0 // pred_region
    _
  $region37: #{transformer_base_forward.1} parent=0 // pred_fallthru
    _
  // Predicated region
  $region38: #{transformer_base_forward.1} parent=0 // pred_check
    _
  $region39: #{transformer_base_forward.1} parent=0 // pred_check_branch
    %87 = sbr.rel (0) target = $region41
  $region40: #{transformer_base_forward.1} parent=0 // pred_region
    _
  $region41: #{transformer_base_forward.1} parent=0 // pred_fallthru
    _
  // Predicated region
  $region42: #{transformer_base_forward.1} parent=0 // pred_check
    _
  $region43: #{transformer_base_forward.1} parent=0 // pred_check_branch
    %89 = sbr.rel (0) target = $region45
  $region44: #{transformer_base_forward.1} parent=0 // pred_region
    _
  $region45: #{transformer_base_forward.1} parent=0 // pred_fallthru
    _
  // Predicated region
  $region46: #{transformer_base_forward.1} parent=0 // pred_check
    _
  $region47: #{transformer_base_forward.1} parent=0 // pred_check_branch
    %91 = sbr.rel (0) target = $region49
  $region48: #{transformer_base_forward.1} parent=0 // pred_region
    _
  $region49: #{transformer_base_forward.1} parent=0 // pred_fallthru
    _
  // Predicated region
  $region50: #{transformer_base_forward.1} parent=0 // pred_check
    _
  $region51: #{transformer_base_forward.1} parent=0 // pred_check_branch
    %93 = sbr.rel (0) target = $region53
  $region52: #{transformer_base_forward.1} parent=0 // pred_region
    _
  $region53: #{transformer_base_forward.1} parent=0 // pred_fallthru
    _
  // Predicated region
  $region54: #{transformer_base_forward.1} parent=0 // pred_check
    _
  $region55: #{transformer_base_forward.1} parent=0 // pred_check_branch
    %95 = sbr.rel (0) target = $region57
  $region56: #{transformer_base_forward.1} parent=0 // pred_region
    _
  $region57: #{transformer_base_forward.1} parent=0 // pred_fallthru
    _
  // Predicated region
  $region58: #{transformer_base_forward.1} parent=0 // pred_check
    _
  $region59: #{transformer_base_forward.1} parent=0 // pred_check_branch
    %97 = sbr.rel (0) target = $region61
  $region60: #{transformer_base_forward.1} parent=0 // pred_region
    _
  $region61: #{transformer_base_forward.1} parent=0 // pred_fallthru
    _
  // Predicated region
  $region62: #{transformer_base_forward.1} parent=0 // pred_check
    _
  $region63: #{transformer_base_forward.1} parent=0 // pred_check_branch
    %99 = sbr.rel (0) target = $region65
  $region64: #{transformer_base_forward.1} parent=0 // pred_region
    _
  $region65: #{transformer_base_forward.1} parent=0 // pred_fallthru
    _
  // Predicated region
  $region66: #{transformer_base_forward.1} parent=0 // pred_check
    _
  $region67: #{transformer_base_forward.1} parent=0 // pred_check_branch
    %101 = sbr.rel (0) target = $region69
  $region68: #{transformer_base_forward.1} parent=0 // pred_region
    _
  $region69: #{transformer_base_forward.1} parent=0 // pred_fallthru
    _
  // Predicated region
  $region70: #{transformer_base_forward.1} parent=0 // pred_check
    _
  $region71: #{transformer_base_forward.1} parent=0 // pred_check_branch
    %103 = sbr.rel (0) target = $region73
  $region72: #{transformer_base_forward.1} parent=0 // pred_region
    _
  $region73: #{transformer_base_forward.1} parent=0 // pred_fallthru
    _
  // Predicated region
  $region74: #{transformer_base_forward.1} parent=0 // pred_check
    _
  $region75: #{transformer_base_forward.1} parent=0 // pred_check_branch
    %105 = sbr.rel (0) target = $region77
  $region76: #{transformer_base_forward.1} parent=0 // pred_region
    _
  $region77: #{transformer_base_forward.1} parent=0 // pred_fallthru
    _
  // Predicated region
  $region78: #{transformer_base_forward.1} parent=0 // pred_check
    _
  $region79: #{transformer_base_forward.1} parent=0 // pred_check_branch
    %107 = sbr.rel (0) target = $region81
  $region80: #{transformer_base_forward.1} parent=0 // pred_region
    _
  $region81: #{transformer_base_forward.1} parent=0 // pred_fallthru
    _
  // Predicated region
  $region82: #{transformer_base_forward.1} parent=0 // pred_check
    _
  $region83: #{transformer_base_forward.1} parent=0 // pred_check_branch
    %109 = sbr.rel (0) target = $region85
  $region84: #{transformer_base_forward.1} parent=0 // pred_region
    _
  $region85: #{transformer_base_forward.1} parent=0 // pred_fallthru
    _
  // Predicated region
  $region86: #{transformer_base_forward.1} parent=0 // pred_check
    _
  $region87: #{transformer_base_forward.1} parent=0 // pred_check_branch
    %111 = sbr.rel (0) target = $region89
  $region88: #{transformer_base_forward.1} parent=0 // pred_region
    _
  $region89: #{transformer_base_forward.1} parent=0 // pred_fallthru
    _
  // Predicated region
  $region90: #{transformer_base_forward.1} parent=0 // pred_check
    _
  $region91: #{transformer_base_forward.1} parent=0 // pred_check_branch
    %113 = sbr.rel (0) target = $region93
  $region92: #{transformer_base_forward.1} parent=0 // pred_region
    _
  $region93: #{transformer_base_forward.1} parent=0 // pred_fallthru
    _
  // Predicated region
  $region94: #{transformer_base_forward.1} parent=0 // pred_check
    _
  $region95: #{transformer_base_forward.1} parent=0 // pred_check_branch
    %115 = sbr.rel (0) target = $region97
  $region96: #{transformer_base_forward.1} parent=0 // pred_region
    _
  $region97: #{transformer_base_forward.1} parent=0 // pred_fallthru
    _
  // Predicated region
  $region98: #{transformer_base_forward.1} parent=0 // pred_check
    _
  $region99: #{transformer_base_forward.1} parent=0 // pred_check_branch
    %117 = sbr.rel (0) target = $region101
  $region100: #{transformer_base_forward.1} parent=0 // pred_region
    _
  $region101: #{transformer_base_forward.1} parent=0 // pred_fallthru
    _
  // Predicated region
  $region102: #{transformer_base_forward.1} parent=0 // pred_check
    _
  $region103: #{transformer_base_forward.1} parent=0 // pred_check_branch
    %119 = sbr.rel (0) target = $region105
  $region104: #{transformer_base_forward.1} parent=0 // pred_region
    _
  $region105: #{transformer_base_forward.1} parent=0 // pred_fallthru
    _
  // Predicated region
  $region106: #{transformer_base_forward.1} parent=0 // pred_check
    _
  $region107: #{transformer_base_forward.1} parent=0 // pred_check_branch
    %121 = sbr.rel (0) target = $region109
  $region108: #{transformer_base_forward.1} parent=0 // pred_region
    _
  $region109: #{transformer_base_forward.1} parent=0 // pred_fallthru
    _
  // Predicated region
  $region110: #{transformer_base_forward.1} parent=0 // pred_check
    _
  $region111: #{transformer_base_forward.1} parent=0 // pred_check_branch
    %123 = sbr.rel (0) target = $region113
  $region112: #{transformer_base_forward.1} parent=0 // pred_region
    _
  $region113: #{transformer_base_forward.1} parent=0 // pred_fallthru
    _
  // Predicated region
  $region114: #{transformer_base_forward.1} parent=0 // pred_check
    _
  $region115: #{transformer_base_forward.1} parent=0 // pred_check_branch
    %125 = sbr.rel (0) target = $region117
  $region116: #{transformer_base_forward.1} parent=0 // pred_region
    _
  $region117: #{transformer_base_forward.1} parent=0 // pred_fallthru
    _
  // Predicated region
  $region118: #{transformer_base_forward.1} parent=0 // pred_check
    _
  $region119: #{transformer_base_forward.1} parent=0 // pred_check_branch
    %127 = sbr.rel (0) target = $region121
  $region120: #{transformer_base_forward.1} parent=0 // pred_region
    _
  $region121: #{transformer_base_forward.1} parent=0 // pred_fallthru
    _
  %v128 = vld [vmem:[%s1] sm:$0xff]
  %v129 = vld [vmem:[%s1 + $0x8] sm:$0xff]
  %v130 = vld [vmem:[%s1 + $0x10] sm:$0xff]
  %v131 = vld [vmem:[%s1 + $0x18] sm:$0xff]
  %v132 = vld [vmem:[%s3] sm:$0xff]
  %v133 = vadd.f32 %v128, %v132
  %v134 = vadd.f32 %v129, %v132
  %v135 = vadd.f32 %v130, %v132
  %v136 = vadd.f32 %v131, %v132
  %v137 = vld [vmem:[%s9] sm:$0xff]
  %v138 = vld [vmem:[%s9 + $0x8] sm:$0xff]
  %v139 = vld [vmem:[%s9 + $0x10] sm:$0xff]
  %v140 = vld [vmem:[%s9 + $0x18] sm:$0xff]
  %v141 = vld [vmem:[%s9 + $0x20] sm:$0xff]
  %v142 = vld [vmem:[%s9 + $0x28] sm:$0xff]
  %v143 = vld [vmem:[%s9 + $0x30] sm:$0xff]
  %v144 = vld [vmem:[%s9 + $0x38] sm:$0xff]
  %v145 = vld [vmem:[%s11] sm:$0x1]
  %v147 = vperm.slane %v145, 0
  %vm149 = vcmask 523264
  %v151 = vsel %vm149, %v133, 0
  %v154 = vsel %vm149, %v134, 0
  %v157 = vsel %vm149, %v135, 0
  %v160 = vsel %vm149, %v136, 0
  %162 = vmatpush.msra.mxu0 0.0
  %163 = vmatpush.msra.mxu0 0.0
  %164 = vmatpush.msra.mxu0 0.0
  %165 = vmatpush.msra.mxu0 0.0
  %166 = vmatpush.msra.mxu0 0.0
  %167 = vmatpush.msra.mxu0 0.0
  %168 = vmatpush.msra.mxu0 0.0
  %169 = vmatpush.msra.mxu0 0.0
  %170 = vmatpush.msra.mxu0 %v144
  %171 = vmatpush.msra.mxu0 %v143
  %172 = vmatpush.msra.mxu0 %v142
  %173 = vmatpush.msra.mxu0 %v141
  %174 = vmatpush.msra.mxu0 %v140
  %175 = vmatpush.msra.mxu0 %v139
  %176 = vmatpush.msra.mxu0 %v138
  %177 = vmatpush.msra.mxu0 %v137
  %178 = vmatmul.f32.gmra.mxu0 %v151
  %v179 = vpop.f32.mrf.mxu0
  %v180 = vadd.f32 %v147, %v179
  %181 = vmatmul.f32.gmra.mxu0 %v154
  %v182 = vpop.f32.mrf.mxu0
  %v183 = vadd.f32 %v147, %v182
  %184 = vmatmul.f32.gmra.mxu0 %v157
  %v185 = vpop.f32.mrf.mxu0
  %v186 = vadd.f32 %v147, %v185
  %187 = vmatmul.f32.gmra.mxu0 %v160
  %v188 = vpop.f32.mrf.mxu0
  %v189 = vadd.f32 %v147, %v188
  %190 = vdwg.mxu0
  %v191 = vld [vmem:[%s13] sm:$0xff]
  %v192 = vld [vmem:[%s13 + $0x8] sm:$0xff]
  %v193 = vld [vmem:[%s13 + $0x10] sm:$0xff]
  %v194 = vld [vmem:[%s13 + $0x18] sm:$0xff]
  %v195 = vld [vmem:[%s13 + $0x20] sm:$0xff]
  %v196 = vld [vmem:[%s13 + $0x28] sm:$0xff]
  %v197 = vld [vmem:[%s13 + $0x30] sm:$0xff]
  %v198 = vld [vmem:[%s13 + $0x38] sm:$0xff]
  %v199 = vld [vmem:[%s15] sm:$0x1]
  %v201 = vperm.slane %v199, 0
  %203 = vmatpush.msra.mxu0 0.0
  %204 = vmatpush.msra.mxu0 0.0
  %205 = vmatpush.msra.mxu0 0.0
  %206 = vmatpush.msra.mxu0 0.0
  %207 = vmatpush.msra.mxu0 0.0
  %208 = vmatpush.msra.mxu0 0.0
  %209 = vmatpush.msra.mxu0 0.0
  %210 = vmatpush.msra.mxu0 0.0
  %211 = vmatpush.msra.mxu0 %v198
  %212 = vmatpush.msra.mxu0 %v197
  %213 = vmatpush.msra.mxu0 %v196
  %214 = vmatpush.msra.mxu0 %v195
  %215 = vmatpush.msra.mxu0 %v194
  %216 = vmatpush.msra.mxu0 %v193
  %217 = vmatpush.msra.mxu0 %v192
  %218 = vmatpush.msra.mxu0 %v191
  %219 = vmatmul.f32.gmra.mxu0 %v151
  %v220 = vpop.f32.mrf.mxu0
  %v221 = vadd.f32 %v201, %v220
  %222 = vmatmul.f32.gmra.mxu0 %v154
  %v223 = vpop.f32.mrf.mxu0
  %v224 = vadd.f32 %v201, %v223
  %225 = vmatmul.f32.gmra.mxu0 %v157
  %v226 = vpop.f32.mrf.mxu0
  %v227 = vadd.f32 %v201, %v226
  %228 = vmatmul.f32.gmra.mxu0 %v160
  %v229 = vpop.f32.mrf.mxu0
  %v230 = vadd.f32 %v201, %v229
  %231 = vdwg.mxu0
  %v232 = vld [vmem:[%s17] sm:$0xff]
  %v233 = vld [vmem:[%s17 + $0x8] sm:$0xff]
  %v234 = vld [vmem:[%s17 + $0x10] sm:$0xff]
  %v235 = vld [vmem:[%s17 + $0x18] sm:$0xff]
  %v236 = vld [vmem:[%s17 + $0x20] sm:$0xff]
  %v237 = vld [vmem:[%s17 + $0x28] sm:$0xff]
  %v238 = vld [vmem:[%s17 + $0x30] sm:$0xff]
  %v239 = vld [vmem:[%s17 + $0x38] sm:$0xff]
  %v240 = vld [vmem:[%s19] sm:$0x1]
  %v242 = vperm.slane %v240, 0
  %244 = vmatpush.msra.mxu0 0.0
  %245 = vmatpush.msra.mxu0 0.0
  %246 = vmatpush.msra.mxu0 0.0
  %247 = vmatpush.msra.mxu0 0.0
  %248 = vmatpush.msra.mxu0 0.0
  %249 = vmatpush.msra.mxu0 0.0
  %250 = vmatpush.msra.mxu0 0.0
  %251 = vmatpush.msra.mxu0 0.0
  %252 = vmatpush.msra.mxu0 %v239
  %253 = vmatpush.msra.mxu0 %v238
  %254 = vmatpush.msra.mxu0 %v237
  %255 = vmatpush.msra.mxu0 %v236
  %256 = vmatpush.msra.mxu0 %v235
  %257 = vmatpush.msra.mxu0 %v234
  %258 = vmatpush.msra.mxu0 %v233
  %259 = vmatpush.msra.mxu0 %v232
  %260 = vmatmul.f32.gmra.mxu0 %v151
  %v261 = vpop.f32.mrf.mxu0
  %v262 = vadd.f32 %v242, %v261
  %263 = vmatmul.f32.gmra.mxu0 %v154
  %v264 = vpop.f32.mrf.mxu0
  %v265 = vadd.f32 %v242, %v264
  %266 = vmatmul.f32.gmra.mxu0 %v157
  %v267 = vpop.f32.mrf.mxu0
  %v268 = vadd.f32 %v242, %v267
  %269 = vmatmul.f32.gmra.mxu0 %v160
  %v270 = vpop.f32.mrf.mxu0
  %v271 = vadd.f32 %v242, %v270
  %272 = vdwg.mxu0
  %v273 = vmul.f32 %v180, 0.35355338
  %v274 = vmul.f32 %v183, 0.35355338
  %v275 = vmul.f32 %v186, 0.35355338
  %v276 = vmul.f32 %v189, 0.35355338
  %v277 = vmul.f32 %v273, %v221
  %v278 = vmul.f32 %v273, %v224
  %v279 = vmul.f32 %v273, %v227
  %v280 = vmul.f32 %v273, %v230
  %v281 = vmul.f32 %v274, %v221
  %v282 = vmul.f32 %v274, %v224
  %v283 = vmul.f32 %v274, %v227
  %v284 = vmul.f32 %v274, %v230
  %v285 = vmul.f32 %v275, %v221
  %v286 = vmul.f32 %v275, %v224
  %v287 = vmul.f32 %v275, %v227
  %v288 = vmul.f32 %v275, %v230
  %v289 = vmul.f32 %v276, %v221
  %v290 = vmul.f32 %v276, %v224
  %v291 = vmul.f32 %v276, %v227
  %v292 = vmul.f32 %v276, %v230
  %v293 = vld [vmem:[%s5] sm:$0xff]
  %v294 = vld [vmem:[%s5 + $0x8] sm:$0xff]
  %v295 = vld [vmem:[%s5 + $0x10] sm:$0xff]
  %v296 = vld [vmem:[%s5 + $0x18] sm:$0xff]
  %v297 = vld [vmem:[%s5 + $0x20] sm:$0xff]
  %v298 = vld [vmem:[%s5 + $0x28] sm:$0xff]
  %v299 = vld [vmem:[%s5 + $0x30] sm:$0xff]
  %v300 = vld [vmem:[%s5 + $0x38] sm:$0xff]
  %v302 = vsel %vm149, %v277, 0
  %v305 = vsel %vm149, %v278, 0
  %v308 = vsel %vm149, %v279, 0
  %v311 = vsel %vm149, %v280, 0
  %v314 = vsel %vm149, %v281, 0
  %v317 = vsel %vm149, %v282, 0
  %v320 = vsel %vm149, %v283, 0
  %v323 = vsel %vm149, %v284, 0
  %v326 = vsel %vm149, %v285, 0
  %v329 = vsel %vm149, %v286, 0
  %v332 = vsel %vm149, %v287, 0
  %v335 = vsel %vm149, %v288, 0
  %v338 = vsel %vm149, %v289, 0
  %v341 = vsel %vm149, %v290, 0
  %v344 = vsel %vm149, %v291, 0
  %v347 = vsel %vm149, %v292, 0
  %349 = vmatpush.msra.mxu0 0.0
  %350 = vmatpush.msra.mxu0 0.0
  %351 = vmatpush.msra.mxu0 0.0
  %352 = vmatpush.msra.mxu0 0.0
  %353 = vmatpush.msra.mxu0 0.0
  %354 = vmatpush.msra.mxu0 0.0
  %355 = vmatpush.msra.mxu0 0.0
  %356 = vmatpush.msra.mxu0 0.0
  %357 = vmatpush.msra.mxu0 %v300
  %358 = vmatpush.msra.mxu0 %v299
  %359 = vmatpush.msra.mxu0 %v298
  %360 = vmatpush.msra.mxu0 %v297
  %361 = vmatpush.msra.mxu0 %v296
  %362 = vmatpush.msra.mxu0 %v295
  %363 = vmatpush.msra.mxu0 %v294
  %364 = vmatpush.msra.mxu0 %v293
  %365 = vmatmul.f32.gmra.mxu0 %v302
  %v366 = vpop.f32.mrf.mxu0
  %v367 = vadd.f32 0.0, %v366
  %368 = vmatmul.f32.gmra.mxu0 %v305
  %v369 = vpop.f32.mrf.mxu0
  %v370 = vadd.f32 0.0, %v369
  %371 = vmatmul.f32.gmra.mxu0 %v308
  %v372 = vpop.f32.mrf.mxu0
  %v373 = vadd.f32 0.0, %v372
  %374 = vmatmul.f32.gmra.mxu0 %v311
  %v375 = vpop.f32.mrf.mxu0
  %v376 = vadd.f32 0.0, %v375
  %377 = vmatmul.f32.gmra.mxu0 %v314
  %v378 = vpop.f32.mrf.mxu0
  %v379 = vadd.f32 0.0, %v378
  %380 = vmatmul.f32.gmra.mxu0 %v317
  %v381 = vpop.f32.mrf.mxu0
  %v382 = vadd.f32 0.0, %v381
  %383 = vmatmul.f32.gmra.mxu0 %v320
  %v384 = vpop.f32.mrf.mxu0
  %v385 = vadd.f32 0.0, %v384
  %386 = vmatmul.f32.gmra.mxu0 %v323
  %v387 = vpop.f32.mrf.mxu0
  %v388 = vadd.f32 0.0, %v387
  %389 = vmatmul.f32.gmra.mxu0 %v326
  %v390 = vpop.f32.mrf.mxu0
  %v391 = vadd.f32 0.0, %v390
  %392 = vmatmul.f32.gmra.mxu0 %v329
  %v393 = vpop.f32.mrf.mxu0
  %v394 = vadd.f32 0.0, %v393
  %395 = vmatmul.f32.gmra.mxu0 %v332
  %v396 = vpop.f32.mrf.mxu0
  %v397 = vadd.f32 0.0, %v396
  %398 = vmatmul.f32.gmra.mxu0 %v335
  %v399 = vpop.f32.mrf.mxu0
  %v400 = vadd.f32 0.0, %v399
  %401 = vmatmul.f32.gmra.mxu0 %v338
  %v402 = vpop.f32.mrf.mxu0
  %v403 = vadd.f32 0.0, %v402
  %404 = vmatmul.f32.gmra.mxu0 %v341
  %v405 = vpop.f32.mrf.mxu0
  %v406 = vadd.f32 0.0, %v405
  %407 = vmatmul.f32.gmra.mxu0 %v344
  %v408 = vpop.f32.mrf.mxu0
  %v409 = vadd.f32 0.0, %v408
  %410 = vmatmul.f32.gmra.mxu0 %v347
  %v411 = vpop.f32.mrf.mxu0
  %v412 = vadd.f32 0.0, %v411
  %413 = vdwg.mxu0
  %v414 = vmax.f32 %v367, %v370
  %v415 = vmax.f32 %v414, %v373
  %v416 = vmax.f32 %v415, %v376
  %v417 = vsub.f32 %v367, %v416
  %v418 = vmul.f32 %v417, 1.442695
  %v419 = vpow.pop %v418
  %v420 = vsub.f32 %v370, %v416
  %v421 = vmul.f32 %v420, 1.442695
  %v422 = vpow.pop %v421
  %v423 = vsub.f32 %v373, %v416
  %v424 = vmul.f32 %v423, 1.442695
  %v425 = vpow.pop %v424
  %v426 = vsub.f32 %v376, %v416
  %v427 = vmul.f32 %v426, 1.442695
  %v428 = vpow.pop %v427
  %v429 = vadd.f32 %v419, %v422
  %v430 = vadd.f32 %v429, %v425
  %v431 = vadd.f32 %v430, %v428
  %v432 = vrcp.pop %v431
  %v433 = vmul.f32 %v419, %v432
  %v434 = vmul.f32 %v422, %v432
  %v435 = vmul.f32 %v425, %v432
  %v436 = vmul.f32 %v428, %v432
  %v437 = vld [vmem:[%s7] sm:$0xff]
  %vm438 = vcmask 64512
  %v440 = vsel %vm438, %v433, 0
  %v443 = vsel %vm438, %v434, 0
  %v446 = vsel %vm438, %v435, 0
  %v449 = vsel %vm438, %v436, 0
  %451 = vmatpush.msra.mxu0 0.0
  %452 = vmatpush.msra.mxu0 0.0
  %453 = vmatpush.msra.mxu0 0.0
  %454 = vmatpush.msra.mxu0 0.0
  %455 = vmatpush.msra.mxu0 0.0
  %456 = vmatpush.msra.mxu0 0.0
  %457 = vmatpush.msra.mxu0 0.0
  %458 = vmatpush.msra.mxu0 0.0
  %459 = vmatpush.msra.mxu0 0.0
  %460 = vmatpush.msra.mxu0 0.0
  %461 = vmatpush.msra.mxu0 0.0
  %462 = vmatpush.msra.mxu0 0.0
  %463 = vmatpush.msra.mxu0 0.0
  %464 = vmatpush.msra.mxu0 0.0
  %465 = vmatpush.msra.mxu0 0.0
  %466 = vmatpush.msra.mxu0 %v437
  %467 = vmatmul.f32.gmra.mxu0 %v440
  %v468 = vpop.f32.mrf.mxu0
  %v469 = vadd.f32 0.0, %v468
  %470 = vmatmul.f32.gmra.mxu0 %v443
  %v471 = vpop.f32.mrf.mxu0
  %v472 = vadd.f32 0.0, %v471
  %473 = vmatmul.f32.gmra.mxu0 %v446
  %v474 = vpop.f32.mrf.mxu0
  %v475 = vadd.f32 0.0, %v474
  %476 = vmatmul.f32.gmra.mxu0 %v449
  %v477 = vpop.f32.mrf.mxu0
  %v478 = vadd.f32 0.0, %v477
  %479 = vdwg.mxu0
  %v480 = vmul.f32 %v469, %v262
  %v481 = vmul.f32 %v472, %v265
  %v482 = vadd.f32 %v480, %v481
  %v483 = vmul.f32 %v475, %v268
  %v484 = vadd.f32 %v482, %v483
  %v485 = vmul.f32 %v478, %v271
  %v486 = vadd.f32 %v484, %v485
  %v487 = vmax.f32 %v379, %v382
  %v488 = vmax.f32 %v487, %v385
  %v489 = vmax.f32 %v488, %v388
  %v490 = vsub.f32 %v379, %v489
  %v491 = vmul.f32 %v490, 1.442695
  %v492 = vpow.pop %v491
  %v493 = vsub.f32 %v382, %v489
  %v494 = vmul.f32 %v493, 1.442695
  %v495 = vpow.pop %v494
  %v496 = vsub.f32 %v385, %v489
  %v497 = vmul.f32 %v496, 1.442695
  %v498 = vpow.pop %v497
  %v499 = vsub.f32 %v388, %v489
  %v500 = vmul.f32 %v499, 1.442695
  %v501 = vpow.pop %v500
  %v502 = vadd.f32 %v492, %v495
  %v503 = vadd.f32 %v502, %v498
  %v504 = vadd.f32 %v503, %v501
  %v505 = vrcp.pop %v504
  %v506 = vmul.f32 %v492, %v505
  %v507 = vmul.f32 %v495, %v505
  %v508 = vmul.f32 %v498, %v505
  %v509 = vmul.f32 %v501, %v505
  %v511 = vsel %vm438, %v506, 0
  %v514 = vsel %vm438, %v507, 0
  %v517 = vsel %vm438, %v508, 0
  %v520 = vsel %vm438, %v509, 0
  %522 = vmatpush.msra.mxu0 0.0
  %523 = vmatpush.msra.mxu0 0.0
  %524 = vmatpush.msra.mxu0 0.0
  %525 = vmatpush.msra.mxu0 0.0
  %526 = vmatpush.msra.mxu0 0.0
  %527 = vmatpush.msra.mxu0 0.0
  %528 = vmatpush.msra.mxu0 0.0
  %529 = vmatpush.msra.mxu0 0.0
  %530 = vmatpush.msra.mxu0 0.0
  %531 = vmatpush.msra.mxu0 0.0
  %532 = vmatpush.msra.mxu0 0.0
  %533 = vmatpush.msra.mxu0 0.0
  %534 = vmatpush.msra.mxu0 0.0
  %535 = vmatpush.msra.mxu0 0.0
  %536 = vmatpush.msra.mxu0 0.0
  %537 = vmatpush.msra.mxu0 %v437
  %538 = vmatmul.f32.gmra.mxu0 %v511
  %v539 = vpop.f32.mrf.mxu0
  %v540 = vadd.f32 0.0, %v539
  %541 = vmatmul.f32.gmra.mxu0 %v514
  %v542 = vpop.f32.mrf.mxu0
  %v543 = vadd.f32 0.0, %v542
  %544 = vmatmul.f32.gmra.mxu0 %v517
  %v545 = vpop.f32.mrf.mxu0
  %v546 = vadd.f32 0.0, %v545
  %547 = vmatmul.f32.gmra.mxu0 %v520
  %v548 = vpop.f32.mrf.mxu0
  %v549 = vadd.f32 0.0, %v548
  %550 = vdwg.mxu0
  %v551 = vmul.f32 %v540, %v262
  %v552 = vmul.f32 %v543, %v265
  %v553 = vadd.f32 %v551, %v552
  %v554 = vmul.f32 %v546, %v268
  %v555 = vadd.f32 %v553, %v554
  %v556 = vmul.f32 %v549, %v271
  %v557 = vadd.f32 %v555, %v556
  %v558 = vmax.f32 %v391, %v394
  %v559 = vmax.f32 %v558, %v397
  %v560 = vmax.f32 %v559, %v400
  %v561 = vsub.f32 %v391, %v560
  %v562 = vmul.f32 %v561, 1.442695
  %v563 = vpow.pop %v562
  %v564 = vsub.f32 %v394, %v560
  %v565 = vmul.f32 %v564, 1.442695
  %v566 = vpow.pop %v565
  %v567 = vsub.f32 %v397, %v560
  %v568 = vmul.f32 %v567, 1.442695
  %v569 = vpow.pop %v568
  %v570 = vsub.f32 %v400, %v560
  %v571 = vmul.f32 %v570, 1.442695
  %v572 = vpow.pop %v571
  %v573 = vadd.f32 %v563, %v566
  %v574 = vadd.f32 %v573, %v569
  %v575 = vadd.f32 %v574, %v572
  %v576 = vrcp.pop %v575
  %v577 = vmul.f32 %v563, %v576
  %v578 = vmul.f32 %v566, %v576
  %v579 = vmul.f32 %v569, %v576
  %v580 = vmul.f32 %v572, %v576
  %v582 = vsel %vm438, %v577, 0
  %v585 = vsel %vm438, %v578, 0
  %v588 = vsel %vm438, %v579, 0
  %v591 = vsel %vm438, %v580, 0
  %593 = vmatpush.msra.mxu0 0.0
  %594 = vmatpush.msra.mxu0 0.0
  %595 = vmatpush.msra.mxu0 0.0
  %596 = vmatpush.msra.mxu0 0.0
  %597 = vmatpush.msra.mxu0 0.0
  %598 = vmatpush.msra.mxu0 0.0
  %599 = vmatpush.msra.mxu0 0.0
  %600 = vmatpush.msra.mxu0 0.0
  %601 = vmatpush.msra.mxu0 0.0
  %602 = vmatpush.msra.mxu0 0.0
  %603 = vmatpush.msra.mxu0 0.0
  %604 = vmatpush.msra.mxu0 0.0
  %605 = vmatpush.msra.mxu0 0.0
  %606 = vmatpush.msra.mxu0 0.0
  %607 = vmatpush.msra.mxu0 0.0
  %608 = vmatpush.msra.mxu0 %v437
  %609 = vmatmul.f32.gmra.mxu0 %v582
  %v610 = vpop.f32.mrf.mxu0
  %v611 = vadd.f32 0.0, %v610
  %612 = vmatmul.f32.gmra.mxu0 %v585
  %v613 = vpop.f32.mrf.mxu0
  %v614 = vadd.f32 0.0, %v613
  %615 = vmatmul.f32.gmra.mxu0 %v588
  %v616 = vpop.f32.mrf.mxu0
  %v617 = vadd.f32 0.0, %v616
  %618 = vmatmul.f32.gmra.mxu0 %v591
  %v619 = vpop.f32.mrf.mxu0
  %v620 = vadd.f32 0.0, %v619
  %621 = vdwg.mxu0
  %v622 = vmul.f32 %v611, %v262
  %v623 = vmul.f32 %v614, %v265
  %v624 = vadd.f32 %v622, %v623
  %v625 = vmul.f32 %v617, %v268
  %v626 = vadd.f32 %v624, %v625
  %v627 = vmul.f32 %v620, %v271
  %v628 = vadd.f32 %v626, %v627
  %v629 = vmax.f32 %v403, %v406
  %v630 = vmax.f32 %v629, %v409
  %v631 = vmax.f32 %v630, %v412
  %v632 = vsub.f32 %v403, %v631
  %v633 = vmul.f32 %v632, 1.442695
  %v634 = vpow.pop %v633
  %v635 = vsub.f32 %v406, %v631
  %v636 = vmul.f32 %v635, 1.442695
  %v637 = vpow.pop %v636
  %v638 = vsub.f32 %v409, %v631
  %v639 = vmul.f32 %v638, 1.442695
  %v640 = vpow.pop %v639
  %v641 = vsub.f32 %v412, %v631
  %v642 = vmul.f32 %v641, 1.442695
  %v643 = vpow.pop %v642
  %v644 = vadd.f32 %v634, %v637
  %v645 = vadd.f32 %v644, %v640
  %v646 = vadd.f32 %v645, %v643
  %v647 = vrcp.pop %v646
  %v648 = vmul.f32 %v634, %v647
  %v649 = vmul.f32 %v637, %v647
  %v650 = vmul.f32 %v640, %v647
  %v651 = vmul.f32 %v643, %v647
  %v653 = vsel %vm438, %v648, 0
  %v656 = vsel %vm438, %v649, 0
  %v659 = vsel %vm438, %v650, 0
  %v662 = vsel %vm438, %v651, 0
  %664 = vmatpush.msra.mxu0 0.0
  %665 = vmatpush.msra.mxu0 0.0
  %666 = vmatpush.msra.mxu0 0.0
  %667 = vmatpush.msra.mxu0 0.0
  %668 = vmatpush.msra.mxu0 0.0
  %669 = vmatpush.msra.mxu0 0.0
  %670 = vmatpush.msra.mxu0 0.0
  %671 = vmatpush.msra.mxu0 0.0
  %672 = vmatpush.msra.mxu0 0.0
  %673 = vmatpush.msra.mxu0 0.0
  %674 = vmatpush.msra.mxu0 0.0
  %675 = vmatpush.msra.mxu0 0.0
  %676 = vmatpush.msra.mxu0 0.0
  %677 = vmatpush.msra.mxu0 0.0
  %678 = vmatpush.msra.mxu0 0.0
  %679 = vmatpush.msra.mxu0 %v437
  %680 = vmatmul.f32.gmra.mxu0 %v653
  %v681 = vpop.f32.mrf.mxu0
  %v682 = vadd.f32 0.0, %v681
  %683 = vmatmul.f32.gmra.mxu0 %v656
  %v684 = vpop.f32.mrf.mxu0
  %v685 = vadd.f32 0.0, %v684
  %686 = vmatmul.f32.gmra.mxu0 %v659
  %v687 = vpop.f32.mrf.mxu0
  %v688 = vadd.f32 0.0, %v687
  %689 = vmatmul.f32.gmra.mxu0 %v662
  %v690 = vpop.f32.mrf.mxu0
  %v691 = vadd.f32 0.0, %v690
  %692 = vdwg.mxu0
  %v693 = vmul.f32 %v682, %v262
  %v694 = vmul.f32 %v685, %v265
  %v695 = vadd.f32 %v693, %v694
  %v696 = vmul.f32 %v688, %v268
  %v697 = vadd.f32 %v695, %v696
  %v698 = vmul.f32 %v691, %v271
  %v699 = vadd.f32 %v697, %v698
  %v700 = vld [vmem:[%s21] sm:$0xff]
  %v701 = vld [vmem:[%s21 + $0x8] sm:$0xff]
  %v702 = vld [vmem:[%s21 + $0x10] sm:$0xff]
  %v703 = vld [vmem:[%s21 + $0x18] sm:$0xff]
  %v704 = vld [vmem:[%s21 + $0x20] sm:$0xff]
  %v705 = vld [vmem:[%s21 + $0x28] sm:$0xff]
  %v706 = vld [vmem:[%s21 + $0x30] sm:$0xff]
  %v707 = vld [vmem:[%s21 + $0x38] sm:$0xff]
  %v708 = vld [vmem:[%s23] sm:$0x1]
  %v710 = vperm.slane %v708, 0
  %v713 = vsel %vm149, %v486, 0
  %v716 = vsel %vm149, %v557, 0
  %v719 = vsel %vm149, %v628, 0
  %v722 = vsel %vm149, %v699, 0
  %724 = vmatpush.msra.mxu0 0.0
  %725 = vmatpush.msra.mxu0 0.0
  %726 = vmatpush.msra.mxu0 0.0
  %727 = vmatpush.msra.mxu0 0.0
  %728 = vmatpush.msra.mxu0 0.0
  %729 = vmatpush.msra.mxu0 0.0
  %730 = vmatpush.msra.mxu0 0.0
  %731 = vmatpush.msra.mxu0 0.0
  %732 = vmatpush.msra.mxu0 %v707
  %733 = vmatpush.msra.mxu0 %v706
  %734 = vmatpush.msra.mxu0 %v705
  %735 = vmatpush.msra.mxu0 %v704
  %736 = vmatpush.msra.mxu0 %v703
  %737 = vmatpush.msra.mxu0 %v702
  %738 = vmatpush.msra.mxu0 %v701
  %739 = vmatpush.msra.mxu0 %v700
  %740 = vmatmul.f32.gmra.mxu0 %v713
  %v741 = vpop.f32.mrf.mxu0
  %v742 = vadd.f32 %v710, %v741
  %743 = vmatmul.f32.gmra.mxu0 %v716
  %v744 = vpop.f32.mrf.mxu0
  %v745 = vadd.f32 %v710, %v744
  %746 = vmatmul.f32.gmra.mxu0 %v719
  %v747 = vpop.f32.mrf.mxu0
  %v748 = vadd.f32 %v710, %v747
  %749 = vmatmul.f32.gmra.mxu0 %v722
  %v750 = vpop.f32.mrf.mxu0
  %v751 = vadd.f32 %v710, %v750
  %752 = vdwg.mxu0
  %v753 = vadd.f32 %v133, %v742
  %v754 = vadd.f32 %v134, %v745
  %v755 = vadd.f32 %v135, %v748
  %v756 = vadd.f32 %v136, %v751
  %v757 = vld [vmem:[%s25] sm:$0x1]
  %v758 = vld [vmem:[%s27] sm:$0x1]
  %v759 = vsel %vm149, %v753, 0.0
  %760 = vadd.xlane.f32.xlu0 %v759
  %v761 = vpop.xlane.xlu0 %760
  %v762 = vsel %vm149, %v754, 0.0
  %763 = vadd.xlane.f32.xlu0 %v762
  %v764 = vpop.xlane.xlu0 %763
  %v765 = vsel %vm149, %v755, 0.0
  %766 = vadd.xlane.f32.xlu0 %v765
  %v767 = vpop.xlane.xlu0 %766
  %v768 = vsel %vm149, %v756, 0.0
  %769 = vadd.xlane.f32.xlu0 %v768
  %v770 = vpop.xlane.xlu0 %769
  %v771 = vrcp.pop 64.0
  %v772 = vmul.f32 64.0, %v771
  %v773 = vsub.f32 1.0, %v772
  %v774 = vmul.f32 %v771, %v773
  %v775 = vadd.f32 %v771, %v774
  %vm776 = vweird.f32 %v771
  %v777 = vsel %vm776, %v771, %v775
  %v778 = vmul.f32 %v761, %v777
  %v779 = vmul.f32 %v764, %v777
  %v780 = vmul.f32 %v767, %v777
  %v781 = vmul.f32 %v770, %v777
  %v782 = vsub.f32 %v753, %v778
  %v783 = vsub.f32 %v754, %v779
  %v784 = vsub.f32 %v755, %v780
  %v785 = vsub.f32 %v756, %v781
  %v786 = vmul.f32 %v782, %v782
  %v787 = vmul.f32 %v783, %v783
  %v788 = vmul.f32 %v784, %v784
  %v789 = vmul.f32 %v785, %v785
  %v790 = vsel %vm149, %v786, 0.0
  %791 = vadd.xlane.f32.xlu0 %v790
  %v792 = vpop.xlane.xlu0 %791
  %v793 = vsel %vm149, %v787, 0.0
  %794 = vadd.xlane.f32.xlu0 %v793
  %v795 = vpop.xlane.xlu0 %794
  %v796 = vsel %vm149, %v788, 0.0
  %797 = vadd.xlane.f32.xlu0 %v796
  %v798 = vpop.xlane.xlu0 %797
  %v799 = vsel %vm149, %v789, 0.0
  %800 = vadd.xlane.f32.xlu0 %v799
  %v801 = vpop.xlane.xlu0 %800
  %v802 = vmul.f32 %v792, %v777
  %v803 = vmul.f32 %v795, %v777
  %v804 = vmul.f32 %v798, %v777
  %v805 = vmul.f32 %v801, %v777
  %v806 = vadd.f32 %v802, 1e-05
  %v807 = vadd.f32 %v803, 1e-05
  %v808 = vadd.f32 %v804, 1e-05
  %v809 = vadd.f32 %v805, 1e-05
  %v810 = vrsqrt.pop %v806
  %v811 = vmul.f32 %v810, %v806
  %v812 = vmul.f32 %v811, %v810
  %v813 = vmul.f32 0.5, %v812
  %v814 = vsub.f32 1.5, %v813
  %v815 = vmul.f32 %v810, %v814
  %vm816 = vweird.f32 %v806
  %vm817 = vweird.f32 %v810
  %vm818 = vmor %vm816, %vm817
  %v819 = vsel %vm818, %v810, %v815
  %v820 = vrsqrt.pop %v807
  %v821 = vmul.f32 %v820, %v807
  %v822 = vmul.f32 %v821, %v820
  %v823 = vmul.f32 0.5, %v822
  %v824 = vsub.f32 1.5, %v823
  %v825 = vmul.f32 %v820, %v824
  %vm826 = vweird.f32 %v807
  %vm827 = vweird.f32 %v820
  %vm828 = vmor %vm826, %vm827
  %v829 = vsel %vm828, %v820, %v825
  %v830 = vrsqrt.pop %v808
  %v831 = vmul.f32 %v830, %v808
  %v832 = vmul.f32 %v831, %v830
  %v833 = vmul.f32 0.5, %v832
  %v834 = vsub.f32 1.5, %v833
  %v835 = vmul.f32 %v830, %v834
  %vm836 = vweird.f32 %v808
  %vm837 = vweird.f32 %v830
  %vm838 = vmor %vm836, %vm837
  %v839 = vsel %vm838, %v830, %v835
  %v840 = vrsqrt.pop %v809
  %v841 = vmul.f32 %v840, %v809
  %v842 = vmul.f32 %v841, %v840
  %v843 = vmul.f32 0.5, %v842
  %v844 = vsub.f32 1.5, %v843
  %v845 = vmul.f32 %v840, %v844
  %vm846 = vweird.f32 %v809
  %vm847 = vweird.f32 %v840
  %vm848 = vmor %vm846, %vm847
  %v849 = vsel %vm848, %v840, %v845
  %v850 = vmul.f32 %v782, %v819
  %v851 = vmul.f32 %v783, %v829
  %v852 = vmul.f32 %v784, %v839
  %v853 = vmul.f32 %v785, %v849
  %v855 = vperm.slane %v757, 0
  %v857 = vmul.f32 %v850, %v855
  %v858 = vmul.f32 %v851, %v855
  %v859 = vmul.f32 %v852, %v855
  %v860 = vmul.f32 %v853, %v855
  %v862 = vperm.slane %v758, 0
  %v864 = vadd.f32 %v857, %v862
  %v865 = vadd.f32 %v858, %v862
  %v866 = vadd.f32 %v859, %v862
  %v867 = vadd.f32 %v860, %v862
  %v868 = vld [vmem:[%s29] sm:$0xff]
  %v869 = vld [vmem:[%s29 + $0x8] sm:$0xff]
  %v870 = vld [vmem:[%s29 + $0x10] sm:$0xff]
  %v871 = vld [vmem:[%s29 + $0x18] sm:$0xff]
  %v872 = vld [vmem:[%s29 + $0x20] sm:$0xff]
  %v873 = vld [vmem:[%s29 + $0x28] sm:$0xff]
  %v874 = vld [vmem:[%s29 + $0x30] sm:$0xff]
  %v875 = vld [vmem:[%s29 + $0x38] sm:$0xff]
  %v876 = vld [vmem:[%s29 + $0x40] sm:$0xff]
  %v877 = vld [vmem:[%s29 + $0x48] sm:$0xff]
  %v878 = vld [vmem:[%s29 + $0x50] sm:$0xff]
  %v879 = vld [vmem:[%s29 + $0x58] sm:$0xff]
  %v880 = vld [vmem:[%s29 + $0x60] sm:$0xff]
  %v881 = vld [vmem:[%s29 + $0x68] sm:$0xff]
  %v882 = vld [vmem:[%s29 + $0x70] sm:$0xff]
  %v883 = vld [vmem:[%s29 + $0x78] sm:$0xff]
  %v884 = vld [vmem:[%s29 + $0x80] sm:$0xff]
  %v885 = vld [vmem:[%s29 + $0x88] sm:$0xff]
  %v886 = vld [vmem:[%s29 + $0x90] sm:$0xff]
  %v887 = vld [vmem:[%s29 + $0x98] sm:$0xff]
  %v888 = vld [vmem:[%s29 + $0xa0] sm:$0xff]
  %v889 = vld [vmem:[%s29 + $0xa8] sm:$0xff]
  %v890 = vld [vmem:[%s29 + $0xb0] sm:$0xff]
  %v891 = vld [vmem:[%s29 + $0xb8] sm:$0xff]
  %v892 = vld [vmem:[%s29 + $0xc0] sm:$0xff]
  %v893 = vld [vmem:[%s29 + $0xc8] sm:$0xff]
  %v894 = vld [vmem:[%s29 + $0xd0] sm:$0xff]
  %v895 = vld [vmem:[%s29 + $0xd8] sm:$0xff]
  %v896 = vld [vmem:[%s29 + $0xe0] sm:$0xff]
  %v897 = vld [vmem:[%s29 + $0xe8] sm:$0xff]
  %v898 = vld [vmem:[%s29 + $0xf0] sm:$0xff]
  %v899 = vld [vmem:[%s29 + $0xf8] sm:$0xff]
  %v900 = vld [vmem:[%s29 + $0x100] sm:$0xff]
  %v901 = vld [vmem:[%s29 + $0x108] sm:$0xff]
  %v902 = vld [vmem:[%s29 + $0x110] sm:$0xff]
  %v903 = vld [vmem:[%s29 + $0x118] sm:$0xff]
  %v904 = vld [vmem:[%s29 + $0x120] sm:$0xff]
  %v905 = vld [vmem:[%s29 + $0x128] sm:$0xff]
  %v906 = vld [vmem:[%s29 + $0x130] sm:$0xff]
  %v907 = vld [vmem:[%s29 + $0x138] sm:$0xff]
  %v908 = vld [vmem:[%s29 + $0x140] sm:$0xff]
  %v909 = vld [vmem:[%s29 + $0x148] sm:$0xff]
  %v910 = vld [vmem:[%s29 + $0x150] sm:$0xff]
  %v911 = vld [vmem:[%s29 + $0x158] sm:$0xff]
  %v912 = vld [vmem:[%s29 + $0x160] sm:$0xff]
  %v913 = vld [vmem:[%s29 + $0x168] sm:$0xff]
  %v914 = vld [vmem:[%s29 + $0x170] sm:$0xff]
  %v915 = vld [vmem:[%s29 + $0x178] sm:$0xff]
  %v916 = vld [vmem:[%s29 + $0x180] sm:$0xff]
  %v917 = vld [vmem:[%s29 + $0x188] sm:$0xff]
  %v918 = vld [vmem:[%s29 + $0x190] sm:$0xff]
  %v919 = vld [vmem:[%s29 + $0x198] sm:$0xff]
  %v920 = vld [vmem:[%s29 + $0x1a0] sm:$0xff]
  %v921 = vld [vmem:[%s29 + $0x1a8] sm:$0xff]
  %v922 = vld [vmem:[%s29 + $0x1b0] sm:$0xff]
  %v923 = vld [vmem:[%s29 + $0x1b8] sm:$0xff]
  %v924 = vld [vmem:[%s29 + $0x1c0] sm:$0xff]
  %v925 = vld [vmem:[%s29 + $0x1c8] sm:$0xff]
  %v926 = vld [vmem:[%s29 + $0x1d0] sm:$0xff]
  %v927 = vld [vmem:[%s29 + $0x1d8] sm:$0xff]
  %v928 = vld [vmem:[%s29 + $0x1e0] sm:$0xff]
  %v929 = vld [vmem:[%s29 + $0x1e8] sm:$0xff]
  %v930 = vld [vmem:[%s29 + $0x1f0] sm:$0xff]
  %v931 = vld [vmem:[%s29 + $0x1f8] sm:$0xff]
  %v932 = vunpack.c.l.bf16 %v868
  %v933 = vunpack.c.h.bf16 %v868
  %v934 = vunpack.c.l.bf16 %v869
  %v935 = vunpack.c.h.bf16 %v869
  %v936 = vunpack.c.l.bf16 %v870
  %v937 = vunpack.c.h.bf16 %v870
  %v938 = vunpack.c.l.bf16 %v871
  %v939 = vunpack.c.h.bf16 %v871
  %v940 = vunpack.c.l.bf16 %v872
  %v941 = vunpack.c.h.bf16 %v872
  %v942 = vunpack.c.l.bf16 %v873
  %v943 = vunpack.c.h.bf16 %v873
  %v944 = vunpack.c.l.bf16 %v874
  %v945 = vunpack.c.h.bf16 %v874
  %v946 = vunpack.c.l.bf16 %v875
  %v947 = vunpack.c.h.bf16 %v875
  %v948 = vunpack.c.l.bf16 %v876
  %v949 = vunpack.c.h.bf16 %v876
  %v950 = vunpack.c.l.bf16 %v877
  %v951 = vunpack.c.h.bf16 %v877
  %v952 = vunpack.c.l.bf16 %v878
  %v953 = vunpack.c.h.bf16 %v878
  %v954 = vunpack.c.l.bf16 %v879
  %v955 = vunpack.c.h.bf16 %v879
  %v956 = vunpack.c.l.bf16 %v880
  %v957 = vunpack.c.h.bf16 %v880
  %v958 = vunpack.c.l.bf16 %v881
  %v959 = vunpack.c.h.bf16 %v881
  %v960 = vunpack.c.l.bf16 %v882
  %v961 = vunpack.c.h.bf16 %v882
  %v962 = vunpack.c.l.bf16 %v883
  %v963 = vunpack.c.h.bf16 %v883
  %v964 = vunpack.c.l.bf16 %v884
  %v965 = vunpack.c.h.bf16 %v884
  %v966 = vunpack.c.l.bf16 %v885
  %v967 = vunpack.c.h.bf16 %v885
  %v968 = vunpack.c.l.bf16 %v886
  %v969 = vunpack.c.h.bf16 %v886
  %v970 = vunpack.c.l.bf16 %v887
  %v971 = vunpack.c.h.bf16 %v887
  %v972 = vunpack.c.l.bf16 %v888
  %v973 = vunpack.c.h.bf16 %v888
  %v974 = vunpack.c.l.bf16 %v889
  %v975 = vunpack.c.h.bf16 %v889
  %v976 = vunpack.c.l.bf16 %v890
  %v977 = vunpack.c.h.bf16 %v890
  %v978 = vunpack.c.l.bf16 %v891
  %v979 = vunpack.c.h.bf16 %v891
  %v980 = vunpack.c.l.bf16 %v892
  %v981 = vunpack.c.h.bf16 %v892
  %v982 = vunpack.c.l.bf16 %v893
  %v983 = vunpack.c.h.bf16 %v893
  %v984 = vunpack.c.l.bf16 %v894
  %v985 = vunpack.c.h.bf16 %v894
  %v986 = vunpack.c.l.bf16 %v895
  %v987 = vunpack.c.h.bf16 %v895
  %v988 = vunpack.c.l.bf16 %v896
  %v989 = vunpack.c.h.bf16 %v896
  %v990 = vunpack.c.l.bf16 %v897
  %v991 = vunpack.c.h.bf16 %v897
  %v992 = vunpack.c.l.bf16 %v898
  %v993 = vunpack.c.h.bf16 %v898
  %v994 = vunpack.c.l.bf16 %v899
  %v995 = vunpack.c.h.bf16 %v899
  %v996 = vunpack.c.l.bf16 %v900
  %v997 = vunpack.c.h.bf16 %v900
  %v998 = vunpack.c.l.bf16 %v901
  %v999 = vunpack.c.h.bf16 %v901
  %v1000 = vunpack.c.l.bf16 %v902
  %v1001 = vunpack.c.h.bf16 %v902
  %v1002 = vunpack.c.l.bf16 %v903
  %v1003 = vunpack.c.h.bf16 %v903
  %v1004 = vunpack.c.l.bf16 %v904
  %v1005 = vunpack.c.h.bf16 %v904
  %v1006 = vunpack.c.l.bf16 %v905
  %v1007 = vunpack.c.h.bf16 %v905
  %v1008 = vunpack.c.l.bf16 %v906
  %v1009 = vunpack.c.h.bf16 %v906
  %v1010 = vunpack.c.l.bf16 %v907
  %v1011 = vunpack.c.h.bf16 %v907
  %v1012 = vunpack.c.l.bf16 %v908
  %v1013 = vunpack.c.h.bf16 %v908
  %v1014 = vunpack.c.l.bf16 %v909
  %v1015 = vunpack.c.h.bf16 %v909
  %v1016 = vunpack.c.l.bf16 %v910
  %v1017 = vunpack.c.h.bf16 %v910
  %v1018 = vunpack.c.l.bf16 %v911
  %v1019 = vunpack.c.h.bf16 %v911
  %v1020 = vunpack.c.l.bf16 %v912
  %v1021 = vunpack.c.h.bf16 %v912
  %v1022 = vunpack.c.l.bf16 %v913
  %v1023 = vunpack.c.h.bf16 %v913
  %v1024 = vunpack.c.l.bf16 %v914
  %v1025 = vunpack.c.h.bf16 %v914
  %v1026 = vunpack.c.l.bf16 %v915
  %v1027 = vunpack.c.h.bf16 %v915
  %v1028 = vunpack.c.l.bf16 %v916
  %v1029 = vunpack.c.h.bf16 %v916
  %v1030 = vunpack.c.l.bf16 %v917
  %v1031 = vunpack.c.h.bf16 %v917
  %v1032 = vunpack.c.l.bf16 %v918
  %v1033 = vunpack.c.h.bf16 %v918
  %v1034 = vunpack.c.l.bf16 %v919
  %v1035 = vunpack.c.h.bf16 %v919
  %v1036 = vunpack.c.l.bf16 %v920
  %v1037 = vunpack.c.h.bf16 %v920
  %v1038 = vunpack.c.l.bf16 %v921
  %v1039 = vunpack.c.h.bf16 %v921
  %v1040 = vunpack.c.l.bf16 %v922
  %v1041 = vunpack.c.h.bf16 %v922
  %v1042 = vunpack.c.l.bf16 %v923
  %v1043 = vunpack.c.h.bf16 %v923
  %v1044 = vunpack.c.l.bf16 %v924
  %v1045 = vunpack.c.h.bf16 %v924
  %v1046 = vunpack.c.l.bf16 %v925
  %v1047 = vunpack.c.h.bf16 %v925
  %v1048 = vunpack.c.l.bf16 %v926
  %v1049 = vunpack.c.h.bf16 %v926
  %v1050 = vunpack.c.l.bf16 %v927
  %v1051 = vunpack.c.h.bf16 %v927
  %v1052 = vunpack.c.l.bf16 %v928
  %v1053 = vunpack.c.h.bf16 %v928
  %v1054 = vunpack.c.l.bf16 %v929
  %v1055 = vunpack.c.h.bf16 %v929
  %v1056 = vunpack.c.l.bf16 %v930
  %v1057 = vunpack.c.h.bf16 %v930
  %v1058 = vunpack.c.l.bf16 %v931
  %v1059 = vunpack.c.h.bf16 %v931
  %v1060 = vld [vmem:[%s31] sm:$0xff]
  %v1061 = vld [vmem:[%s31 + $0x8] sm:$0xff]
  %v1064 = vperm.slane %v1060, 0
  %v1065 = vperm.slane %v1060, 1
  %v1066 = vperm.slane %v1060, 2
  %v1067 = vperm.slane %v1060, 3
  %v1068 = vperm.slane %v1060, 4
  %v1069 = vperm.slane %v1060, 5
  %v1070 = vperm.slane %v1060, 6
  %v1071 = vperm.slane %v1060, 7
  %v1072 = vperm.slane %v1061, 0
  %v1073 = vperm.slane %v1061, 1
  %v1074 = vperm.slane %v1061, 2
  %v1075 = vperm.slane %v1061, 3
  %v1076 = vperm.slane %v1061, 4
  %v1077 = vperm.slane %v1061, 5
  %v1078 = vperm.slane %v1061, 6
  %v1079 = vperm.slane %v1061, 7
  %v1097 = vsel %vm149, %v864, 0
  %v1100 = vsel %vm149, %v865, 0
  %v1103 = vsel %vm149, %v866, 0
  %v1106 = vsel %vm149, %v867, 0
  %1108 = vmatpush.msra.mxu0 0.0
  %1109 = vmatpush.msra.mxu0 0.0
  %1110 = vmatpush.msra.mxu0 0.0
  %1111 = vmatpush.msra.mxu0 0.0
  %1112 = vmatpush.msra.mxu0 0.0
  %1113 = vmatpush.msra.mxu0 0.0
  %1114 = vmatpush.msra.mxu0 0.0
  %1115 = vmatpush.msra.mxu0 0.0
  %1116 = vmatpush.msra.mxu0 %v1044
  %1117 = vmatpush.msra.mxu0 %v1028
  %1118 = vmatpush.msra.mxu0 %v1012
  %1119 = vmatpush.msra.mxu0 %v996
  %1120 = vmatpush.msra.mxu0 %v980
  %1121 = vmatpush.msra.mxu0 %v964
  %1122 = vmatpush.msra.mxu0 %v948
  %1123 = vmatpush.msra.mxu0 %v932
  %1124 = vmatmul.f32.gmra.mxu0 %v1097
  %v1125 = vpop.f32.mrf.mxu0
  %v1126 = vadd.f32 %v1064, %v1125
  %1127 = vmatmul.f32.gmra.mxu0 %v1100
  %v1128 = vpop.f32.mrf.mxu0
  %v1129 = vadd.f32 %v1064, %v1128
  %1130 = vmatmul.f32.gmra.mxu0 %v1103
  %v1131 = vpop.f32.mrf.mxu0
  %v1132 = vadd.f32 %v1064, %v1131
  %1133 = vmatmul.f32.gmra.mxu0 %v1106
  %v1134 = vpop.f32.mrf.mxu0
  %v1135 = vadd.f32 %v1064, %v1134
  %1136 = vdwg.mxu0
  %1137 = vmatpush.msra.mxu0 0.0
  %1138 = vmatpush.msra.mxu0 0.0
  %1139 = vmatpush.msra.mxu0 0.0
  %1140 = vmatpush.msra.mxu0 0.0
  %1141 = vmatpush.msra.mxu0 0.0
  %1142 = vmatpush.msra.mxu0 0.0
  %1143 = vmatpush.msra.mxu0 0.0
  %1144 = vmatpush.msra.mxu0 0.0
  %1145 = vmatpush.msra.mxu0 %v1045
  %1146 = vmatpush.msra.mxu0 %v1029
  %1147 = vmatpush.msra.mxu0 %v1013
  %1148 = vmatpush.msra.mxu0 %v997
  %1149 = vmatpush.msra.mxu0 %v981
  %1150 = vmatpush.msra.mxu0 %v965
  %1151 = vmatpush.msra.mxu0 %v949
  %1152 = vmatpush.msra.mxu0 %v933
  %1153 = vmatmul.f32.gmra.mxu0 %v1097
  %v1154 = vpop.f32.mrf.mxu0
  %v1155 = vadd.f32 %v1065, %v1154
  %1156 = vmatmul.f32.gmra.mxu0 %v1100
  %v1157 = vpop.f32.mrf.mxu0
  %v1158 = vadd.f32 %v1065, %v1157
  %1159 = vmatmul.f32.gmra.mxu0 %v1103
  %v1160 = vpop.f32.mrf.mxu0
  %v1161 = vadd.f32 %v1065, %v1160
  %1162 = vmatmul.f32.gmra.mxu0 %v1106
  %v1163 = vpop.f32.mrf.mxu0
  %v1164 = vadd.f32 %v1065, %v1163
  %1165 = vdwg.mxu0
  %1166 = vmatpush.msra.mxu0 0.0
  %1167 = vmatpush.msra.mxu0 0.0
  %1168 = vmatpush.msra.mxu0 0.0
  %1169 = vmatpush.msra.mxu0 0.0
  %1170 = vmatpush.msra.mxu0 0.0
  %1171 = vmatpush.msra.mxu0 0.0
  %1172 = vmatpush.msra.mxu0 0.0
  %1173 = vmatpush.msra.mxu0 0.0
  %1174 = vmatpush.msra.mxu0 %v1046
  %1175 = vmatpush.msra.mxu0 %v1030
  %1176 = vmatpush.msra.mxu0 %v1014
  %1177 = vmatpush.msra.mxu0 %v998
  %1178 = vmatpush.msra.mxu0 %v982
  %1179 = vmatpush.msra.mxu0 %v966
  %1180 = vmatpush.msra.mxu0 %v950
  %1181 = vmatpush.msra.mxu0 %v934
  %1182 = vmatmul.f32.gmra.mxu0 %v1097
  %v1183 = vpop.f32.mrf.mxu0
  %v1184 = vadd.f32 %v1066, %v1183
  %1185 = vmatmul.f32.gmra.mxu0 %v1100
  %v1186 = vpop.f32.mrf.mxu0
  %v1187 = vadd.f32 %v1066, %v1186
  %1188 = vmatmul.f32.gmra.mxu0 %v1103
  %v1189 = vpop.f32.mrf.mxu0
  %v1190 = vadd.f32 %v1066, %v1189
  %1191 = vmatmul.f32.gmra.mxu0 %v1106
  %v1192 = vpop.f32.mrf.mxu0
  %v1193 = vadd.f32 %v1066, %v1192
  %1194 = vdwg.mxu0
  %1195 = vmatpush.msra.mxu0 0.0
  %1196 = vmatpush.msra.mxu0 0.0
  %1197 = vmatpush.msra.mxu0 0.0
  %1198 = vmatpush.msra.mxu0 0.0
  %1199 = vmatpush.msra.mxu0 0.0
  %1200 = vmatpush.msra.mxu0 0.0
  %1201 = vmatpush.msra.mxu0 0.0
  %1202 = vmatpush.msra.mxu0 0.0
  %1203 = vmatpush.msra.mxu0 %v1047
  %1204 = vmatpush.msra.mxu0 %v1031
  %1205 = vmatpush.msra.mxu0 %v1015
  %1206 = vmatpush.msra.mxu0 %v999
  %1207 = vmatpush.msra.mxu0 %v983
  %1208 = vmatpush.msra.mxu0 %v967
  %1209 = vmatpush.msra.mxu0 %v951
  %1210 = vmatpush.msra.mxu0 %v935
  %1211 = vmatmul.f32.gmra.mxu0 %v1097
  %v1212 = vpop.f32.mrf.mxu0
  %v1213 = vadd.f32 %v1067, %v1212
  %1214 = vmatmul.f32.gmra.mxu0 %v1100
  %v1215 = vpop.f32.mrf.mxu0
  %v1216 = vadd.f32 %v1067, %v1215
  %1217 = vmatmul.f32.gmra.mxu0 %v1103
  %v1218 = vpop.f32.mrf.mxu0
  %v1219 = vadd.f32 %v1067, %v1218
  %1220 = vmatmul.f32.gmra.mxu0 %v1106
  %v1221 = vpop.f32.mrf.mxu0
  %v1222 = vadd.f32 %v1067, %v1221
  %1223 = vdwg.mxu0
  %1224 = vmatpush.msra.mxu0 0.0
  %1225 = vmatpush.msra.mxu0 0.0
  %1226 = vmatpush.msra.mxu0 0.0
  %1227 = vmatpush.msra.mxu0 0.0
  %1228 = vmatpush.msra.mxu0 0.0
  %1229 = vmatpush.msra.mxu0 0.0
  %1230 = vmatpush.msra.mxu0 0.0
  %1231 = vmatpush.msra.mxu0 0.0
  %1232 = vmatpush.msra.mxu0 %v1048
  %1233 = vmatpush.msra.mxu0 %v1032
  %1234 = vmatpush.msra.mxu0 %v1016
  %1235 = vmatpush.msra.mxu0 %v1000
  %1236 = vmatpush.msra.mxu0 %v984
  %1237 = vmatpush.msra.mxu0 %v968
  %1238 = vmatpush.msra.mxu0 %v952
  %1239 = vmatpush.msra.mxu0 %v936
  %1240 = vmatmul.f32.gmra.mxu0 %v1097
  %v1241 = vpop.f32.mrf.mxu0
  %v1242 = vadd.f32 %v1068, %v1241
  %1243 = vmatmul.f32.gmra.mxu0 %v1100
  %v1244 = vpop.f32.mrf.mxu0
  %v1245 = vadd.f32 %v1068, %v1244
  %1246 = vmatmul.f32.gmra.mxu0 %v1103
  %v1247 = vpop.f32.mrf.mxu0
  %v1248 = vadd.f32 %v1068, %v1247
  %1249 = vmatmul.f32.gmra.mxu0 %v1106
  %v1250 = vpop.f32.mrf.mxu0
  %v1251 = vadd.f32 %v1068, %v1250
  %1252 = vdwg.mxu0
  %1253 = vmatpush.msra.mxu0 0.0
  %1254 = vmatpush.msra.mxu0 0.0
  %1255 = vmatpush.msra.mxu0 0.0
  %1256 = vmatpush.msra.mxu0 0.0
  %1257 = vmatpush.msra.mxu0 0.0
  %1258 = vmatpush.msra.mxu0 0.0
  %1259 = vmatpush.msra.mxu0 0.0
  %1260 = vmatpush.msra.mxu0 0.0
  %1261 = vmatpush.msra.mxu0 %v1049
  %1262 = vmatpush.msra.mxu0 %v1033
  %1263 = vmatpush.msra.mxu0 %v1017
  %1264 = vmatpush.msra.mxu0 %v1001
  %1265 = vmatpush.msra.mxu0 %v985
  %1266 = vmatpush.msra.mxu0 %v969
  %1267 = vmatpush.msra.mxu0 %v953
  %1268 = vmatpush.msra.mxu0 %v937
  %1269 = vmatmul.f32.gmra.mxu0 %v1097
  %v1270 = vpop.f32.mrf.mxu0
  %v1271 = vadd.f32 %v1069, %v1270
  %1272 = vmatmul.f32.gmra.mxu0 %v1100
  %v1273 = vpop.f32.mrf.mxu0
  %v1274 = vadd.f32 %v1069, %v1273
  %1275 = vmatmul.f32.gmra.mxu0 %v1103
  %v1276 = vpop.f32.mrf.mxu0
  %v1277 = vadd.f32 %v1069, %v1276
  %1278 = vmatmul.f32.gmra.mxu0 %v1106
  %v1279 = vpop.f32.mrf.mxu0
  %v1280 = vadd.f32 %v1069, %v1279
  %1281 = vdwg.mxu0
  %1282 = vmatpush.msra.mxu0 0.0
  %1283 = vmatpush.msra.mxu0 0.0
  %1284 = vmatpush.msra.mxu0 0.0
  %1285 = vmatpush.msra.mxu0 0.0
  %1286 = vmatpush.msra.mxu0 0.0
  %1287 = vmatpush.msra.mxu0 0.0
  %1288 = vmatpush.msra.mxu0 0.0
  %1289 = vmatpush.msra.mxu0 0.0
  %1290 = vmatpush.msra.mxu0 %v1050
  %1291 = vmatpush.msra.mxu0 %v1034
  %1292 = vmatpush.msra.mxu0 %v1018
  %1293 = vmatpush.msra.mxu0 %v1002
  %1294 = vmatpush.msra.mxu0 %v986
  %1295 = vmatpush.msra.mxu0 %v970
  %1296 = vmatpush.msra.mxu0 %v954
  %1297 = vmatpush.msra.mxu0 %v938
  %1298 = vmatmul.f32.gmra.mxu0 %v1097
  %v1299 = vpop.f32.mrf.mxu0
  %v1300 = vadd.f32 %v1070, %v1299
  %1301 = vmatmul.f32.gmra.mxu0 %v1100
  %v1302 = vpop.f32.mrf.mxu0
  %v1303 = vadd.f32 %v1070, %v1302
  %1304 = vmatmul.f32.gmra.mxu0 %v1103
  %v1305 = vpop.f32.mrf.mxu0
  %v1306 = vadd.f32 %v1070, %v1305
  %1307 = vmatmul.f32.gmra.mxu0 %v1106
  %v1308 = vpop.f32.mrf.mxu0
  %v1309 = vadd.f32 %v1070, %v1308
  %1310 = vdwg.mxu0
  %1311 = vmatpush.msra.mxu0 0.0
  %1312 = vmatpush.msra.mxu0 0.0
  %1313 = vmatpush.msra.mxu0 0.0
  %1314 = vmatpush.msra.mxu0 0.0
  %1315 = vmatpush.msra.mxu0 0.0
  %1316 = vmatpush.msra.mxu0 0.0
  %1317 = vmatpush.msra.mxu0 0.0
  %1318 = vmatpush.msra.mxu0 0.0
  %1319 = vmatpush.msra.mxu0 %v1051
  %1320 = vmatpush.msra.mxu0 %v1035
  %1321 = vmatpush.msra.mxu0 %v1019
  %1322 = vmatpush.msra.mxu0 %v1003
  %1323 = vmatpush.msra.mxu0 %v987
  %1324 = vmatpush.msra.mxu0 %v971
  %1325 = vmatpush.msra.mxu0 %v955
  %1326 = vmatpush.msra.mxu0 %v939
  %1327 = vmatmul.f32.gmra.mxu0 %v1097
  %v1328 = vpop.f32.mrf.mxu0
  %v1329 = vadd.f32 %v1071, %v1328
  %1330 = vmatmul.f32.gmra.mxu0 %v1100
  %v1331 = vpop.f32.mrf.mxu0
  %v1332 = vadd.f32 %v1071, %v1331
  %1333 = vmatmul.f32.gmra.mxu0 %v1103
  %v1334 = vpop.f32.mrf.mxu0
  %v1335 = vadd.f32 %v1071, %v1334
  %1336 = vmatmul.f32.gmra.mxu0 %v1106
  %v1337 = vpop.f32.mrf.mxu0
  %v1338 = vadd.f32 %v1071, %v1337
  %1339 = vdwg.mxu0
  %1340 = vmatpush.msra.mxu0 0.0
  %1341 = vmatpush.msra.mxu0 0.0
  %1342 = vmatpush.msra.mxu0 0.0
  %1343 = vmatpush.msra.mxu0 0.0
  %1344 = vmatpush.msra.mxu0 0.0
  %1345 = vmatpush.msra.mxu0 0.0
  %1346 = vmatpush.msra.mxu0 0.0
  %1347 = vmatpush.msra.mxu0 0.0
  %1348 = vmatpush.msra.mxu0 %v1052
  %1349 = vmatpush.msra.mxu0 %v1036
  %1350 = vmatpush.msra.mxu0 %v1020
  %1351 = vmatpush.msra.mxu0 %v1004
  %1352 = vmatpush.msra.mxu0 %v988
  %1353 = vmatpush.msra.mxu0 %v972
  %1354 = vmatpush.msra.mxu0 %v956
  %1355 = vmatpush.msra.mxu0 %v940
  %1356 = vmatmul.f32.gmra.mxu0 %v1097
  %v1357 = vpop.f32.mrf.mxu0
  %v1358 = vadd.f32 %v1072, %v1357
  %1359 = vmatmul.f32.gmra.mxu0 %v1100
  %v1360 = vpop.f32.mrf.mxu0
  %v1361 = vadd.f32 %v1072, %v1360
  %1362 = vmatmul.f32.gmra.mxu0 %v1103
  %v1363 = vpop.f32.mrf.mxu0
  %v1364 = vadd.f32 %v1072, %v1363
  %1365 = vmatmul.f32.gmra.mxu0 %v1106
  %v1366 = vpop.f32.mrf.mxu0
  %v1367 = vadd.f32 %v1072, %v1366
  %1368 = vdwg.mxu0
  %1369 = vmatpush.msra.mxu0 0.0
  %1370 = vmatpush.msra.mxu0 0.0
  %1371 = vmatpush.msra.mxu0 0.0
  %1372 = vmatpush.msra.mxu0 0.0
  %1373 = vmatpush.msra.mxu0 0.0
  %1374 = vmatpush.msra.mxu0 0.0
  %1375 = vmatpush.msra.mxu0 0.0
  %1376 = vmatpush.msra.mxu0 0.0
  %1377 = vmatpush.msra.mxu0 %v1053
  %1378 = vmatpush.msra.mxu0 %v1037
  %1379 = vmatpush.msra.mxu0 %v1021
  %1380 = vmatpush.msra.mxu0 %v1005
  %1381 = vmatpush.msra.mxu0 %v989
  %1382 = vmatpush.msra.mxu0 %v973
  %1383 = vmatpush.msra.mxu0 %v957
  %1384 = vmatpush.msra.mxu0 %v941
  %1385 = vmatmul.f32.gmra.mxu0 %v1097
  %v1386 = vpop.f32.mrf.mxu0
  %v1387 = vadd.f32 %v1073, %v1386
  %1388 = vmatmul.f32.gmra.mxu0 %v1100
  %v1389 = vpop.f32.mrf.mxu0
  %v1390 = vadd.f32 %v1073, %v1389
  %1391 = vmatmul.f32.gmra.mxu0 %v1103
  %v1392 = vpop.f32.mrf.mxu0
  %v1393 = vadd.f32 %v1073, %v1392
  %1394 = vmatmul.f32.gmra.mxu0 %v1106
  %v1395 = vpop.f32.mrf.mxu0
  %v1396 = vadd.f32 %v1073, %v1395
  %1397 = vdwg.mxu0
  %1398 = vmatpush.msra.mxu0 0.0
  %1399 = vmatpush.msra.mxu0 0.0
  %1400 = vmatpush.msra.mxu0 0.0
  %1401 = vmatpush.msra.mxu0 0.0
  %1402 = vmatpush.msra.mxu0 0.0
  %1403 = vmatpush.msra.mxu0 0.0
  %1404 = vmatpush.msra.mxu0 0.0
  %1405 = vmatpush.msra.mxu0 0.0
  %1406 = vmatpush.msra.mxu0 %v1054
  %1407 = vmatpush.msra.mxu0 %v1038
  %1408 = vmatpush.msra.mxu0 %v1022
  %1409 = vmatpush.msra.mxu0 %v1006
  %1410 = vmatpush.msra.mxu0 %v990
  %1411 = vmatpush.msra.mxu0 %v974
  %1412 = vmatpush.msra.mxu0 %v958
  %1413 = vmatpush.msra.mxu0 %v942
  %1414 = vmatmul.f32.gmra.mxu0 %v1097
  %v1415 = vpop.f32.mrf.mxu0
  %v1416 = vadd.f32 %v1074, %v1415
  %1417 = vmatmul.f32.gmra.mxu0 %v1100
  %v1418 = vpop.f32.mrf.mxu0
  %v1419 = vadd.f32 %v1074, %v1418
  %1420 = vmatmul.f32.gmra.mxu0 %v1103
  %v1421 = vpop.f32.mrf.mxu0
  %v1422 = vadd.f32 %v1074, %v1421
  %1423 = vmatmul.f32.gmra.mxu0 %v1106
  %v1424 = vpop.f32.mrf.mxu0
  %v1425 = vadd.f32 %v1074, %v1424
  %1426 = vdwg.mxu0
  %1427 = vmatpush.msra.mxu0 0.0
  %1428 = vmatpush.msra.mxu0 0.0
  %1429 = vmatpush.msra.mxu0 0.0
  %1430 = vmatpush.msra.mxu0 0.0
  %1431 = vmatpush.msra.mxu0 0.0
  %1432 = vmatpush.msra.mxu0 0.0
  %1433 = vmatpush.msra.mxu0 0.0
  %1434 = vmatpush.msra.mxu0 0.0
  %1435 = vmatpush.msra.mxu0 %v1055
  %1436 = vmatpush.msra.mxu0 %v1039
  %1437 = vmatpush.msra.mxu0 %v1023
  %1438 = vmatpush.msra.mxu0 %v1007
  %1439 = vmatpush.msra.mxu0 %v991
  %1440 = vmatpush.msra.mxu0 %v975
  %1441 = vmatpush.msra.mxu0 %v959
  %1442 = vmatpush.msra.mxu0 %v943
  %1443 = vmatmul.f32.gmra.mxu0 %v1097
  %v1444 = vpop.f32.mrf.mxu0
  %v1445 = vadd.f32 %v1075, %v1444
  %1446 = vmatmul.f32.gmra.mxu0 %v1100
  %v1447 = vpop.f32.mrf.mxu0
  %v1448 = vadd.f32 %v1075, %v1447
  %1449 = vmatmul.f32.gmra.mxu0 %v1103
  %v1450 = vpop.f32.mrf.mxu0
  %v1451 = vadd.f32 %v1075, %v1450
  %1452 = vmatmul.f32.gmra.mxu0 %v1106
  %v1453 = vpop.f32.mrf.mxu0
  %v1454 = vadd.f32 %v1075, %v1453
  %1455 = vdwg.mxu0
  %1456 = vmatpush.msra.mxu0 0.0
  %1457 = vmatpush.msra.mxu0 0.0
  %1458 = vmatpush.msra.mxu0 0.0
  %1459 = vmatpush.msra.mxu0 0.0
  %1460 = vmatpush.msra.mxu0 0.0
  %1461 = vmatpush.msra.mxu0 0.0
  %1462 = vmatpush.msra.mxu0 0.0
  %1463 = vmatpush.msra.mxu0 0.0
  %1464 = vmatpush.msra.mxu0 %v1056
  %1465 = vmatpush.msra.mxu0 %v1040
  %1466 = vmatpush.msra.mxu0 %v1024
  %1467 = vmatpush.msra.mxu0 %v1008
  %1468 = vmatpush.msra.mxu0 %v992
  %1469 = vmatpush.msra.mxu0 %v976
  %1470 = vmatpush.msra.mxu0 %v960
  %1471 = vmatpush.msra.mxu0 %v944
  %1472 = vmatmul.f32.gmra.mxu0 %v1097
  %v1473 = vpop.f32.mrf.mxu0
  %v1474 = vadd.f32 %v1076, %v1473
  %1475 = vmatmul.f32.gmra.mxu0 %v1100
  %v1476 = vpop.f32.mrf.mxu0
  %v1477 = vadd.f32 %v1076, %v1476
  %1478 = vmatmul.f32.gmra.mxu0 %v1103
  %v1479 = vpop.f32.mrf.mxu0
  %v1480 = vadd.f32 %v1076, %v1479
  %1481 = vmatmul.f32.gmra.mxu0 %v1106
  %v1482 = vpop.f32.mrf.mxu0
  %v1483 = vadd.f32 %v1076, %v1482
  %1484 = vdwg.mxu0
  %1485 = vmatpush.msra.mxu0 0.0
  %1486 = vmatpush.msra.mxu0 0.0
  %1487 = vmatpush.msra.mxu0 0.0
  %1488 = vmatpush.msra.mxu0 0.0
  %1489 = vmatpush.msra.mxu0 0.0
  %1490 = vmatpush.msra.mxu0 0.0
  %1491 = vmatpush.msra.mxu0 0.0
  %1492 = vmatpush.msra.mxu0 0.0
  %1493 = vmatpush.msra.mxu0 %v1057
  %1494 = vmatpush.msra.mxu0 %v1041
  %1495 = vmatpush.msra.mxu0 %v1025
  %1496 = vmatpush.msra.mxu0 %v1009
  %1497 = vmatpush.msra.mxu0 %v993
  %1498 = vmatpush.msra.mxu0 %v977
  %1499 = vmatpush.msra.mxu0 %v961
  %1500 = vmatpush.msra.mxu0 %v945
  %1501 = vmatmul.f32.gmra.mxu0 %v1097
  %v1502 = vpop.f32.mrf.mxu0
  %v1503 = vadd.f32 %v1077, %v1502
  %1504 = vmatmul.f32.gmra.mxu0 %v1100
  %v1505 = vpop.f32.mrf.mxu0
  %v1506 = vadd.f32 %v1077, %v1505
  %1507 = vmatmul.f32.gmra.mxu0 %v1103
  %v1508 = vpop.f32.mrf.mxu0
  %v1509 = vadd.f32 %v1077, %v1508
  %1510 = vmatmul.f32.gmra.mxu0 %v1106
  %v1511 = vpop.f32.mrf.mxu0
  %v1512 = vadd.f32 %v1077, %v1511
  %1513 = vdwg.mxu0
  %1514 = vmatpush.msra.mxu0 0.0
  %1515 = vmatpush.msra.mxu0 0.0
  %1516 = vmatpush.msra.mxu0 0.0
  %1517 = vmatpush.msra.mxu0 0.0
  %1518 = vmatpush.msra.mxu0 0.0
  %1519 = vmatpush.msra.mxu0 0.0
  %1520 = vmatpush.msra.mxu0 0.0
  %1521 = vmatpush.msra.mxu0 0.0
  %1522 = vmatpush.msra.mxu0 %v1058
  %1523 = vmatpush.msra.mxu0 %v1042
  %1524 = vmatpush.msra.mxu0 %v1026
  %1525 = vmatpush.msra.mxu0 %v1010
  %1526 = vmatpush.msra.mxu0 %v994
  %1527 = vmatpush.msra.mxu0 %v978
  %1528 = vmatpush.msra.mxu0 %v962
  %1529 = vmatpush.msra.mxu0 %v946
  %1530 = vmatmul.f32.gmra.mxu0 %v1097
  %v1531 = vpop.f32.mrf.mxu0
  %v1532 = vadd.f32 %v1078, %v1531
  %1533 = vmatmul.f32.gmra.mxu0 %v1100
  %v1534 = vpop.f32.mrf.mxu0
  %v1535 = vadd.f32 %v1078, %v1534
  %1536 = vmatmul.f32.gmra.mxu0 %v1103
  %v1537 = vpop.f32.mrf.mxu0
  %v1538 = vadd.f32 %v1078, %v1537
  %1539 = vmatmul.f32.gmra.mxu0 %v1106
  %v1540 = vpop.f32.mrf.mxu0
  %v1541 = vadd.f32 %v1078, %v1540
  %1542 = vdwg.mxu0
  %1543 = vmatpush.msra.mxu0 0.0
  %1544 = vmatpush.msra.mxu0 0.0
  %1545 = vmatpush.msra.mxu0 0.0
  %1546 = vmatpush.msra.mxu0 0.0
  %1547 = vmatpush.msra.mxu0 0.0
  %1548 = vmatpush.msra.mxu0 0.0
  %1549 = vmatpush.msra.mxu0 0.0
  %1550 = vmatpush.msra.mxu0 0.0
  %1551 = vmatpush.msra.mxu0 %v1059
  %1552 = vmatpush.msra.mxu0 %v1043
  %1553 = vmatpush.msra.mxu0 %v1027
  %1554 = vmatpush.msra.mxu0 %v1011
  %1555 = vmatpush.msra.mxu0 %v995
  %1556 = vmatpush.msra.mxu0 %v979
  %1557 = vmatpush.msra.mxu0 %v963
  %1558 = vmatpush.msra.mxu0 %v947
  %1559 = vmatmul.f32.gmra.mxu0 %v1097
  %v1560 = vpop.f32.mrf.mxu0
  %v1561 = vadd.f32 %v1079, %v1560
  %1562 = vmatmul.f32.gmra.mxu0 %v1100
  %v1563 = vpop.f32.mrf.mxu0
  %v1564 = vadd.f32 %v1079, %v1563
  %1565 = vmatmul.f32.gmra.mxu0 %v1103
  %v1566 = vpop.f32.mrf.mxu0
  %v1567 = vadd.f32 %v1079, %v1566
  %1568 = vmatmul.f32.gmra.mxu0 %v1106
  %v1569 = vpop.f32.mrf.mxu0
  %v1570 = vadd.f32 %v1079, %v1569
  %1571 = vdwg.mxu0
  %v1572 = vmax.f32 %v1126, 0.0
  %v1573 = vmax.f32 %v1155, 0.0
  %v1574 = vmax.f32 %v1184, 0.0
  %v1575 = vmax.f32 %v1213, 0.0
  %v1576 = vmax.f32 %v1242, 0.0
  %v1577 = vmax.f32 %v1271, 0.0
  %v1578 = vmax.f32 %v1300, 0.0
  %v1579 = vmax.f32 %v1329, 0.0
  %v1580 = vmax.f32 %v1358, 0.0
  %v1581 = vmax.f32 %v1387, 0.0
  %v1582 = vmax.f32 %v1416, 0.0
  %v1583 = vmax.f32 %v1445, 0.0
  %v1584 = vmax.f32 %v1474, 0.0
  %v1585 = vmax.f32 %v1503, 0.0
  %v1586 = vmax.f32 %v1532, 0.0
  %v1587 = vmax.f32 %v1561, 0.0
  %v1588 = vmax.f32 %v1129, 0.0
  %v1589 = vmax.f32 %v1158, 0.0
  %v1590 = vmax.f32 %v1187, 0.0
  %v1591 = vmax.f32 %v1216, 0.0
  %v1592 = vmax.f32 %v1245, 0.0
  %v1593 = vmax.f32 %v1274, 0.0
  %v1594 = vmax.f32 %v1303, 0.0
  %v1595 = vmax.f32 %v1332, 0.0
  %v1596 = vmax.f32 %v1361, 0.0
  %v1597 = vmax.f32 %v1390, 0.0
  %v1598 = vmax.f32 %v1419, 0.0
  %v1599 = vmax.f32 %v1448, 0.0
  %v1600 = vmax.f32 %v1477, 0.0
  %v1601 = vmax.f32 %v1506, 0.0
  %v1602 = vmax.f32 %v1535, 0.0
  %v1603 = vmax.f32 %v1564, 0.0
  %v1604 = vmax.f32 %v1132, 0.0
  %v1605 = vmax.f32 %v1161, 0.0
  %v1606 = vmax.f32 %v1190, 0.0
  %v1607 = vmax.f32 %v1219, 0.0
  %v1608 = vmax.f32 %v1248, 0.0
  %v1609 = vmax.f32 %v1277, 0.0
  %v1610 = vmax.f32 %v1306, 0.0
  %v1611 = vmax.f32 %v1335, 0.0
  %v1612 = vmax.f32 %v1364, 0.0
  %v1613 = vmax.f32 %v1393, 0.0
  %v1614 = vmax.f32 %v1422, 0.0
  %v1615 = vmax.f32 %v1451, 0.0
  %v1616 = vmax.f32 %v1480, 0.0
  %v1617 = vmax.f32 %v1509, 0.0
  %v1618 = vmax.f32 %v1538, 0.0
  %v1619 = vmax.f32 %v1567, 0.0
  %v1620 = vmax.f32 %v1135, 0.0
  %v1621 = vmax.f32 %v1164, 0.0
  %v1622 = vmax.f32 %v1193, 0.0
  %v1623 = vmax.f32 %v1222, 0.0
  %v1624 = vmax.f32 %v1251, 0.0
  %v1625 = vmax.f32 %v1280, 0.0
  %v1626 = vmax.f32 %v1309, 0.0
  %v1627 = vmax.f32 %v1338, 0.0
  %v1628 = vmax.f32 %v1367, 0.0
  %v1629 = vmax.f32 %v1396, 0.0
  %v1630 = vmax.f32 %v1425, 0.0
  %v1631 = vmax.f32 %v1454, 0.0
  %v1632 = vmax.f32 %v1483, 0.0
  %v1633 = vmax.f32 %v1512, 0.0
  %v1634 = vmax.f32 %v1541, 0.0
  %v1635 = vmax.f32 %v1570, 0.0
  %v1636 = vld [vmem:[%s33] sm:$0xf]
  %v1637 = vld [vmem:[%s33 + $0x4] sm:$0xf]
  %v1638 = vld [vmem:[%s33 + $0x8] sm:$0xf]
  %v1639 = vld [vmem:[%s33 + $0xc] sm:$0xf]
  %v1640 = vld [vmem:[%s33 + $0x10] sm:$0xf]
  %v1641 = vld [vmem:[%s33 + $0x14] sm:$0xf]
  %v1642 = vld [vmem:[%s33 + $0x18] sm:$0xf]
  %v1643 = vld [vmem:[%s33 + $0x1c] sm:$0xf]
  %v1644 = vld [vmem:[%s33 + $0x20] sm:$0xf]
  %v1645 = vld [vmem:[%s33 + $0x24] sm:$0xf]
  %v1646 = vld [vmem:[%s33 + $0x28] sm:$0xf]
  %v1647 = vld [vmem:[%s33 + $0x2c] sm:$0xf]
  %v1648 = vld [vmem:[%s33 + $0x30] sm:$0xf]
  %v1649 = vld [vmem:[%s33 + $0x34] sm:$0xf]
  %v1650 = vld [vmem:[%s33 + $0x38] sm:$0xf]
  %v1651 = vld [vmem:[%s33 + $0x3c] sm:$0xf]
  %v1652 = vld [vmem:[%s33 + $0x40] sm:$0xf]
  %v1653 = vld [vmem:[%s33 + $0x44] sm:$0xf]
  %v1654 = vld [vmem:[%s33 + $0x48] sm:$0xf]
  %v1655 = vld [vmem:[%s33 + $0x4c] sm:$0xf]
  %v1656 = vld [vmem:[%s33 + $0x50] sm:$0xf]
  %v1657 = vld [vmem:[%s33 + $0x54] sm:$0xf]
  %v1658 = vld [vmem:[%s33 + $0x58] sm:$0xf]
  %v1659 = vld [vmem:[%s33 + $0x5c] sm:$0xf]
  %v1660 = vld [vmem:[%s33 + $0x60] sm:$0xf]
  %v1661 = vld [vmem:[%s33 + $0x64] sm:$0xf]
  %v1662 = vld [vmem:[%s33 + $0x68] sm:$0xf]
  %v1663 = vld [vmem:[%s33 + $0x6c] sm:$0xf]
  %v1664 = vld [vmem:[%s33 + $0x70] sm:$0xf]
  %v1665 = vld [vmem:[%s33 + $0x74] sm:$0xf]
  %v1666 = vld [vmem:[%s33 + $0x78] sm:$0xf]
  %v1667 = vld [vmem:[%s33 + $0x7c] sm:$0xf]
  %v1668 = vld [vmem:[%s33 + $0x80] sm:$0xf]
  %v1669 = vld [vmem:[%s33 + $0x84] sm:$0xf]
  %v1670 = vld [vmem:[%s33 + $0x88] sm:$0xf]
  %v1671 = vld [vmem:[%s33 + $0x8c] sm:$0xf]
  %v1672 = vld [vmem:[%s33 + $0x90] sm:$0xf]
  %v1673 = vld [vmem:[%s33 + $0x94] sm:$0xf]
  %v1674 = vld [vmem:[%s33 + $0x98] sm:$0xf]
  %v1675 = vld [vmem:[%s33 + $0x9c] sm:$0xf]
  %v1676 = vld [vmem:[%s33 + $0xa0] sm:$0xf]
  %v1677 = vld [vmem:[%s33 + $0xa4] sm:$0xf]
  %v1678 = vld [vmem:[%s33 + $0xa8] sm:$0xf]
  %v1679 = vld [vmem:[%s33 + $0xac] sm:$0xf]
  %v1680 = vld [vmem:[%s33 + $0xb0] sm:$0xf]
  %v1681 = vld [vmem:[%s33 + $0xb4] sm:$0xf]
  %v1682 = vld [vmem:[%s33 + $0xb8] sm:$0xf]
  %v1683 = vld [vmem:[%s33 + $0xbc] sm:$0xf]
  %v1684 = vld [vmem:[%s33 + $0xc0] sm:$0xf]
  %v1685 = vld [vmem:[%s33 + $0xc4] sm:$0xf]
  %v1686 = vld [vmem:[%s33 + $0xc8] sm:$0xf]
  %v1687 = vld [vmem:[%s33 + $0xcc] sm:$0xf]
  %v1688 = vld [vmem:[%s33 + $0xd0] sm:$0xf]
  %v1689 = vld [vmem:[%s33 + $0xd4] sm:$0xf]
  %v1690 = vld [vmem:[%s33 + $0xd8] sm:$0xf]
  %v1691 = vld [vmem:[%s33 + $0xdc] sm:$0xf]
  %v1692 = vld [vmem:[%s33 + $0xe0] sm:$0xf]
  %v1693 = vld [vmem:[%s33 + $0xe4] sm:$0xf]
  %v1694 = vld [vmem:[%s33 + $0xe8] sm:$0xf]
  %v1695 = vld [vmem:[%s33 + $0xec] sm:$0xf]
  %v1696 = vld [vmem:[%s33 + $0xf0] sm:$0xf]
  %v1697 = vld [vmem:[%s33 + $0xf4] sm:$0xf]
  %v1698 = vld [vmem:[%s33 + $0xf8] sm:$0xf]
  %v1699 = vld [vmem:[%s33 + $0xfc] sm:$0xf]
  %v1700 = vld [vmem:[%s33 + $0x100] sm:$0xf]
  %v1701 = vld [vmem:[%s33 + $0x104] sm:$0xf]
  %v1702 = vld [vmem:[%s33 + $0x108] sm:$0xf]
  %v1703 = vld [vmem:[%s33 + $0x10c] sm:$0xf]
  %v1704 = vld [vmem:[%s33 + $0x110] sm:$0xf]
  %v1705 = vld [vmem:[%s33 + $0x114] sm:$0xf]
  %v1706 = vld [vmem:[%s33 + $0x118] sm:$0xf]
  %v1707 = vld [vmem:[%s33 + $0x11c] sm:$0xf]
  %v1708 = vld [vmem:[%s33 + $0x120] sm:$0xf]
  %v1709 = vld [vmem:[%s33 + $0x124] sm:$0xf]
  %v1710 = vld [vmem:[%s33 + $0x128] sm:$0xf]
  %v1711 = vld [vmem:[%s33 + $0x12c] sm:$0xf]
  %v1712 = vld [vmem:[%s33 + $0x130] sm:$0xf]
  %v1713 = vld [vmem:[%s33 + $0x134] sm:$0xf]
  %v1714 = vld [vmem:[%s33 + $0x138] sm:$0xf]
  %v1715 = vld [vmem:[%s33 + $0x13c] sm:$0xf]
  %v1716 = vld [vmem:[%s33 + $0x140] sm:$0xf]
  %v1717 = vld [vmem:[%s33 + $0x144] sm:$0xf]
  %v1718 = vld [vmem:[%s33 + $0x148] sm:$0xf]
  %v1719 = vld [vmem:[%s33 + $0x14c] sm:$0xf]
  %v1720 = vld [vmem:[%s33 + $0x150] sm:$0xf]
  %v1721 = vld [vmem:[%s33 + $0x154] sm:$0xf]
  %v1722 = vld [vmem:[%s33 + $0x158] sm:$0xf]
  %v1723 = vld [vmem:[%s33 + $0x15c] sm:$0xf]
  %v1724 = vld [vmem:[%s33 + $0x160] sm:$0xf]
  %v1725 = vld [vmem:[%s33 + $0x164] sm:$0xf]
  %v1726 = vld [vmem:[%s33 + $0x168] sm:$0xf]
  %v1727 = vld [vmem:[%s33 + $0x16c] sm:$0xf]
  %v1728 = vld [vmem:[%s33 + $0x170] sm:$0xf]
  %v1729 = vld [vmem:[%s33 + $0x174] sm:$0xf]
  %v1730 = vld [vmem:[%s33 + $0x178] sm:$0xf]
  %v1731 = vld [vmem:[%s33 + $0x17c] sm:$0xf]
  %v1732 = vld [vmem:[%s33 + $0x180] sm:$0xf]
  %v1733 = vld [vmem:[%s33 + $0x184] sm:$0xf]
  %v1734 = vld [vmem:[%s33 + $0x188] sm:$0xf]
  %v1735 = vld [vmem:[%s33 + $0x18c] sm:$0xf]
  %v1736 = vld [vmem:[%s33 + $0x190] sm:$0xf]
  %v1737 = vld [vmem:[%s33 + $0x194] sm:$0xf]
  %v1738 = vld [vmem:[%s33 + $0x198] sm:$0xf]
  %v1739 = vld [vmem:[%s33 + $0x19c] sm:$0xf]
  %v1740 = vld [vmem:[%s33 + $0x1a0] sm:$0xf]
  %v1741 = vld [vmem:[%s33 + $0x1a4] sm:$0xf]
  %v1742 = vld [vmem:[%s33 + $0x1a8] sm:$0xf]
  %v1743 = vld [vmem:[%s33 + $0x1ac] sm:$0xf]
  %v1744 = vld [vmem:[%s33 + $0x1b0] sm:$0xf]
  %v1745 = vld [vmem:[%s33 + $0x1b4] sm:$0xf]
  %v1746 = vld [vmem:[%s33 + $0x1b8] sm:$0xf]
  %v1747 = vld [vmem:[%s33 + $0x1bc] sm:$0xf]
  %v1748 = vld [vmem:[%s33 + $0x1c0] sm:$0xf]
  %v1749 = vld [vmem:[%s33 + $0x1c4] sm:$0xf]
  %v1750 = vld [vmem:[%s33 + $0x1c8] sm:$0xf]
  %v1751 = vld [vmem:[%s33 + $0x1cc] sm:$0xf]
  %v1752 = vld [vmem:[%s33 + $0x1d0] sm:$0xf]
  %v1753 = vld [vmem:[%s33 + $0x1d4] sm:$0xf]
  %v1754 = vld [vmem:[%s33 + $0x1d8] sm:$0xf]
  %v1755 = vld [vmem:[%s33 + $0x1dc] sm:$0xf]
  %v1756 = vld [vmem:[%s33 + $0x1e0] sm:$0xf]
  %v1757 = vld [vmem:[%s33 + $0x1e4] sm:$0xf]
  %v1758 = vld [vmem:[%s33 + $0x1e8] sm:$0xf]
  %v1759 = vld [vmem:[%s33 + $0x1ec] sm:$0xf]
  %v1760 = vld [vmem:[%s33 + $0x1f0] sm:$0xf]
  %v1761 = vld [vmem:[%s33 + $0x1f4] sm:$0xf]
  %v1762 = vld [vmem:[%s33 + $0x1f8] sm:$0xf]
  %v1763 = vld [vmem:[%s33 + $0x1fc] sm:$0xf]
  %v1764 = vld [vmem:[%s33 + $0x200] sm:$0xf]
  %v1765 = vld [vmem:[%s33 + $0x204] sm:$0xf]
  %v1766 = vld [vmem:[%s33 + $0x208] sm:$0xf]
  %v1767 = vld [vmem:[%s33 + $0x20c] sm:$0xf]
  %v1768 = vld [vmem:[%s33 + $0x210] sm:$0xf]
  %v1769 = vld [vmem:[%s33 + $0x214] sm:$0xf]
  %v1770 = vld [vmem:[%s33 + $0x218] sm:$0xf]
  %v1771 = vld [vmem:[%s33 + $0x21c] sm:$0xf]
  %v1772 = vld [vmem:[%s33 + $0x220] sm:$0xf]
  %v1773 = vld [vmem:[%s33 + $0x224] sm:$0xf]
  %v1774 = vld [vmem:[%s33 + $0x228] sm:$0xf]
  %v1775 = vld [vmem:[%s33 + $0x22c] sm:$0xf]
  %v1776 = vld [vmem:[%s33 + $0x230] sm:$0xf]
  %v1777 = vld [vmem:[%s33 + $0x234] sm:$0xf]
  %v1778 = vld [vmem:[%s33 + $0x238] sm:$0xf]
  %v1779 = vld [vmem:[%s33 + $0x23c] sm:$0xf]
  %v1780 = vld [vmem:[%s33 + $0x240] sm:$0xf]
  %v1781 = vld [vmem:[%s33 + $0x244] sm:$0xf]
  %v1782 = vld [vmem:[%s33 + $0x248] sm:$0xf]
  %v1783 = vld [vmem:[%s33 + $0x24c] sm:$0xf]
  %v1784 = vld [vmem:[%s33 + $0x250] sm:$0xf]
  %v1785 = vld [vmem:[%s33 + $0x254] sm:$0xf]
  %v1786 = vld [vmem:[%s33 + $0x258] sm:$0xf]
  %v1787 = vld [vmem:[%s33 + $0x25c] sm:$0xf]
  %v1788 = vld [vmem:[%s33 + $0x260] sm:$0xf]
  %v1789 = vld [vmem:[%s33 + $0x264] sm:$0xf]
  %v1790 = vld [vmem:[%s33 + $0x268] sm:$0xf]
  %v1791 = vld [vmem:[%s33 + $0x26c] sm:$0xf]
  %v1792 = vld [vmem:[%s33 + $0x270] sm:$0xf]
  %v1793 = vld [vmem:[%s33 + $0x274] sm:$0xf]
  %v1794 = vld [vmem:[%s33 + $0x278] sm:$0xf]
  %v1795 = vld [vmem:[%s33 + $0x27c] sm:$0xf]
  %v1796 = vld [vmem:[%s33 + $0x280] sm:$0xf]
  %v1797 = vld [vmem:[%s33 + $0x284] sm:$0xf]
  %v1798 = vld [vmem:[%s33 + $0x288] sm:$0xf]
  %v1799 = vld [vmem:[%s33 + $0x28c] sm:$0xf]
  %v1800 = vld [vmem:[%s33 + $0x290] sm:$0xf]
  %v1801 = vld [vmem:[%s33 + $0x294] sm:$0xf]
  %v1802 = vld [vmem:[%s33 + $0x298] sm:$0xf]
  %v1803 = vld [vmem:[%s33 + $0x29c] sm:$0xf]
  %v1804 = vld [vmem:[%s33 + $0x2a0] sm:$0xf]
  %v1805 = vld [vmem:[%s33 + $0x2a4] sm:$0xf]
  %v1806 = vld [vmem:[%s33 + $0x2a8] sm:$0xf]
  %v1807 = vld [vmem:[%s33 + $0x2ac] sm:$0xf]
  %v1808 = vld [vmem:[%s33 + $0x2b0] sm:$0xf]
  %v1809 = vld [vmem:[%s33 + $0x2b4] sm:$0xf]
  %v1810 = vld [vmem:[%s33 + $0x2b8] sm:$0xf]
  %v1811 = vld [vmem:[%s33 + $0x2bc] sm:$0xf]
  %v1812 = vld [vmem:[%s33 + $0x2c0] sm:$0xf]
  %v1813 = vld [vmem:[%s33 + $0x2c4] sm:$0xf]
  %v1814 = vld [vmem:[%s33 + $0x2c8] sm:$0xf]
  %v1815 = vld [vmem:[%s33 + $0x2cc] sm:$0xf]
  %v1816 = vld [vmem:[%s33 + $0x2d0] sm:$0xf]
  %v1817 = vld [vmem:[%s33 + $0x2d4] sm:$0xf]
  %v1818 = vld [vmem:[%s33 + $0x2d8] sm:$0xf]
  %v1819 = vld [vmem:[%s33 + $0x2dc] sm:$0xf]
  %v1820 = vld [vmem:[%s33 + $0x2e0] sm:$0xf]
  %v1821 = vld [vmem:[%s33 + $0x2e4] sm:$0xf]
  %v1822 = vld [vmem:[%s33 + $0x2e8] sm:$0xf]
  %v1823 = vld [vmem:[%s33 + $0x2ec] sm:$0xf]
  %v1824 = vld [vmem:[%s33 + $0x2f0] sm:$0xf]
  %v1825 = vld [vmem:[%s33 + $0x2f4] sm:$0xf]
  %v1826 = vld [vmem:[%s33 + $0x2f8] sm:$0xf]
  %v1827 = vld [vmem:[%s33 + $0x2fc] sm:$0xf]
  %v1828 = vld [vmem:[%s33 + $0x300] sm:$0xf]
  %v1829 = vld [vmem:[%s33 + $0x304] sm:$0xf]
  %v1830 = vld [vmem:[%s33 + $0x308] sm:$0xf]
  %v1831 = vld [vmem:[%s33 + $0x30c] sm:$0xf]
  %v1832 = vld [vmem:[%s33 + $0x310] sm:$0xf]
  %v1833 = vld [vmem:[%s33 + $0x314] sm:$0xf]
  %v1834 = vld [vmem:[%s33 + $0x318] sm:$0xf]
  %v1835 = vld [vmem:[%s33 + $0x31c] sm:$0xf]
  %v1836 = vld [vmem:[%s33 + $0x320] sm:$0xf]
  %v1837 = vld [vmem:[%s33 + $0x324] sm:$0xf]
  %v1838 = vld [vmem:[%s33 + $0x328] sm:$0xf]
  %v1839 = vld [vmem:[%s33 + $0x32c] sm:$0xf]
  %v1840 = vld [vmem:[%s33 + $0x330] sm:$0xf]
  %v1841 = vld [vmem:[%s33 + $0x334] sm:$0xf]
  %v1842 = vld [vmem:[%s33 + $0x338] sm:$0xf]
  %v1843 = vld [vmem:[%s33 + $0x33c] sm:$0xf]
  %v1844 = vld [vmem:[%s33 + $0x340] sm:$0xf]
  %v1845 = vld [vmem:[%s33 + $0x344] sm:$0xf]
  %v1846 = vld [vmem:[%s33 + $0x348] sm:$0xf]
  %v1847 = vld [vmem:[%s33 + $0x34c] sm:$0xf]
  %v1848 = vld [vmem:[%s33 + $0x350] sm:$0xf]
  %v1849 = vld [vmem:[%s33 + $0x354] sm:$0xf]
  %v1850 = vld [vmem:[%s33 + $0x358] sm:$0xf]
  %v1851 = vld [vmem:[%s33 + $0x35c] sm:$0xf]
  %v1852 = vld [vmem:[%s33 + $0x360] sm:$0xf]
  %v1853 = vld [vmem:[%s33 + $0x364] sm:$0xf]
  %v1854 = vld [vmem:[%s33 + $0x368] sm:$0xf]
  %v1855 = vld [vmem:[%s33 + $0x36c] sm:$0xf]
  %v1856 = vld [vmem:[%s33 + $0x370] sm:$0xf]
  %v1857 = vld [vmem:[%s33 + $0x374] sm:$0xf]
  %v1858 = vld [vmem:[%s33 + $0x378] sm:$0xf]
  %v1859 = vld [vmem:[%s33 + $0x37c] sm:$0xf]
  %v1860 = vld [vmem:[%s33 + $0x380] sm:$0xf]
  %v1861 = vld [vmem:[%s33 + $0x384] sm:$0xf]
  %v1862 = vld [vmem:[%s33 + $0x388] sm:$0xf]
  %v1863 = vld [vmem:[%s33 + $0x38c] sm:$0xf]
  %v1864 = vld [vmem:[%s33 + $0x390] sm:$0xf]
  %v1865 = vld [vmem:[%s33 + $0x394] sm:$0xf]
  %v1866 = vld [vmem:[%s33 + $0x398] sm:$0xf]
  %v1867 = vld [vmem:[%s33 + $0x39c] sm:$0xf]
  %v1868 = vld [vmem:[%s33 + $0x3a0] sm:$0xf]
  %v1869 = vld [vmem:[%s33 + $0x3a4] sm:$0xf]
  %v1870 = vld [vmem:[%s33 + $0x3a8] sm:$0xf]
  %v1871 = vld [vmem:[%s33 + $0x3ac] sm:$0xf]
  %v1872 = vld [vmem:[%s33 + $0x3b0] sm:$0xf]
  %v1873 = vld [vmem:[%s33 + $0x3b4] sm:$0xf]
  %v1874 = vld [vmem:[%s33 + $0x3b8] sm:$0xf]
  %v1875 = vld [vmem:[%s33 + $0x3bc] sm:$0xf]
  %v1876 = vld [vmem:[%s33 + $0x3c0] sm:$0xf]
  %v1877 = vld [vmem:[%s33 + $0x3c4] sm:$0xf]
  %v1878 = vld [vmem:[%s33 + $0x3c8] sm:$0xf]
  %v1879 = vld [vmem:[%s33 + $0x3cc] sm:$0xf]
  %v1880 = vld [vmem:[%s33 + $0x3d0] sm:$0xf]
  %v1881 = vld [vmem:[%s33 + $0x3d4] sm:$0xf]
  %v1882 = vld [vmem:[%s33 + $0x3d8] sm:$0xf]
  %v1883 = vld [vmem:[%s33 + $0x3dc] sm:$0xf]
  %v1884 = vld [vmem:[%s33 + $0x3e0] sm:$0xf]
  %v1885 = vld [vmem:[%s33 + $0x3e4] sm:$0xf]
  %v1886 = vld [vmem:[%s33 + $0x3e8] sm:$0xf]
  %v1887 = vld [vmem:[%s33 + $0x3ec] sm:$0xf]
  %v1888 = vld [vmem:[%s33 + $0x3f0] sm:$0xf]
  %v1889 = vld [vmem:[%s33 + $0x3f4] sm:$0xf]
  %v1890 = vld [vmem:[%s33 + $0x3f8] sm:$0xf]
  %v1891 = vld [vmem:[%s33 + $0x3fc] sm:$0xf]
  %v1892 = vunpack.c.l.bf16 %v1636
  %v1893 = vunpack.c.l.bf16 %v1637
  %v1894 = vunpack.c.l.bf16 %v1638
  %v1895 = vunpack.c.l.bf16 %v1639
  %v1896 = vunpack.c.l.bf16 %v1640
  %v1897 = vunpack.c.l.bf16 %v1641
  %v1898 = vunpack.c.l.bf16 %v1642
  %v1899 = vunpack.c.l.bf16 %v1643
  %v1900 = vunpack.c.l.bf16 %v1644
  %v1901 = vunpack.c.l.bf16 %v1645
  %v1902 = vunpack.c.l.bf16 %v1646
  %v1903 = vunpack.c.l.bf16 %v1647
  %v1904 = vunpack.c.l.bf16 %v1648
  %v1905 = vunpack.c.l.bf16 %v1649
  %v1906 = vunpack.c.l.bf16 %v1650
  %v1907 = vunpack.c.l.bf16 %v1651
  %v1908 = vunpack.c.l.bf16 %v1652
  %v1909 = vunpack.c.l.bf16 %v1653
  %v1910 = vunpack.c.l.bf16 %v1654
  %v1911 = vunpack.c.l.bf16 %v1655
  %v1912 = vunpack.c.l.bf16 %v1656
  %v1913 = vunpack.c.l.bf16 %v1657
  %v1914 = vunpack.c.l.bf16 %v1658
  %v1915 = vunpack.c.l.bf16 %v1659
  %v1916 = vunpack.c.l.bf16 %v1660
  %v1917 = vunpack.c.l.bf16 %v1661
  %v1918 = vunpack.c.l.bf16 %v1662
  %v1919 = vunpack.c.l.bf16 %v1663
  %v1920 = vunpack.c.l.bf16 %v1664
  %v1921 = vunpack.c.l.bf16 %v1665
  %v1922 = vunpack.c.l.bf16 %v1666
  %v1923 = vunpack.c.l.bf16 %v1667
  %v1924 = vunpack.c.l.bf16 %v1668
  %v1925 = vunpack.c.l.bf16 %v1669
  %v1926 = vunpack.c.l.bf16 %v1670
  %v1927 = vunpack.c.l.bf16 %v1671
  %v1928 = vunpack.c.l.bf16 %v1672
  %v1929 = vunpack.c.l.bf16 %v1673
  %v1930 = vunpack.c.l.bf16 %v1674
  %v1931 = vunpack.c.l.bf16 %v1675
  %v1932 = vunpack.c.l.bf16 %v1676
  %v1933 = vunpack.c.l.bf16 %v1677
  %v1934 = vunpack.c.l.bf16 %v1678
  %v1935 = vunpack.c.l.bf16 %v1679
  %v1936 = vunpack.c.l.bf16 %v1680
  %v1937 = vunpack.c.l.bf16 %v1681
  %v1938 = vunpack.c.l.bf16 %v1682
  %v1939 = vunpack.c.l.bf16 %v1683
  %v1940 = vunpack.c.l.bf16 %v1684
  %v1941 = vunpack.c.l.bf16 %v1685
  %v1942 = vunpack.c.l.bf16 %v1686
  %v1943 = vunpack.c.l.bf16 %v1687
  %v1944 = vunpack.c.l.bf16 %v1688
  %v1945 = vunpack.c.l.bf16 %v1689
  %v1946 = vunpack.c.l.bf16 %v1690
  %v1947 = vunpack.c.l.bf16 %v1691
  %v1948 = vunpack.c.l.bf16 %v1692
  %v1949 = vunpack.c.l.bf16 %v1693
  %v1950 = vunpack.c.l.bf16 %v1694
  %v1951 = vunpack.c.l.bf16 %v1695
  %v1952 = vunpack.c.l.bf16 %v1696
  %v1953 = vunpack.c.l.bf16 %v1697
  %v1954 = vunpack.c.l.bf16 %v1698
  %v1955 = vunpack.c.l.bf16 %v1699
  %v1956 = vunpack.c.l.bf16 %v1700
  %v1957 = vunpack.c.l.bf16 %v1701
  %v1958 = vunpack.c.l.bf16 %v1702
  %v1959 = vunpack.c.l.bf16 %v1703
  %v1960 = vunpack.c.l.bf16 %v1704
  %v1961 = vunpack.c.l.bf16 %v1705
  %v1962 = vunpack.c.l.bf16 %v1706
  %v1963 = vunpack.c.l.bf16 %v1707
  %v1964 = vunpack.c.l.bf16 %v1708
  %v1965 = vunpack.c.l.bf16 %v1709
  %v1966 = vunpack.c.l.bf16 %v1710
  %v1967 = vunpack.c.l.bf16 %v1711
  %v1968 = vunpack.c.l.bf16 %v1712
  %v1969 = vunpack.c.l.bf16 %v1713
  %v1970 = vunpack.c.l.bf16 %v1714
  %v1971 = vunpack.c.l.bf16 %v1715
  %v1972 = vunpack.c.l.bf16 %v1716
  %v1973 = vunpack.c.l.bf16 %v1717
  %v1974 = vunpack.c.l.bf16 %v1718
  %v1975 = vunpack.c.l.bf16 %v1719
  %v1976 = vunpack.c.l.bf16 %v1720
  %v1977 = vunpack.c.l.bf16 %v1721
  %v1978 = vunpack.c.l.bf16 %v1722
  %v1979 = vunpack.c.l.bf16 %v1723
  %v1980 = vunpack.c.l.bf16 %v1724
  %v1981 = vunpack.c.l.bf16 %v1725
  %v1982 = vunpack.c.l.bf16 %v1726
  %v1983 = vunpack.c.l.bf16 %v1727
  %v1984 = vunpack.c.l.bf16 %v1728
  %v1985 = vunpack.c.l.bf16 %v1729
  %v1986 = vunpack.c.l.bf16 %v1730
  %v1987 = vunpack.c.l.bf16 %v1731
  %v1988 = vunpack.c.l.bf16 %v1732
  %v1989 = vunpack.c.l.bf16 %v1733
  %v1990 = vunpack.c.l.bf16 %v1734
  %v1991 = vunpack.c.l.bf16 %v1735
  %v1992 = vunpack.c.l.bf16 %v1736
  %v1993 = vunpack.c.l.bf16 %v1737
  %v1994 = vunpack.c.l.bf16 %v1738
  %v1995 = vunpack.c.l.bf16 %v1739
  %v1996 = vunpack.c.l.bf16 %v1740
  %v1997 = vunpack.c.l.bf16 %v1741
  %v1998 = vunpack.c.l.bf16 %v1742
  %v1999 = vunpack.c.l.bf16 %v1743
  %v2000 = vunpack.c.l.bf16 %v1744
  %v2001 = vunpack.c.l.bf16 %v1745
  %v2002 = vunpack.c.l.bf16 %v1746
  %v2003 = vunpack.c.l.bf16 %v1747
  %v2004 = vunpack.c.l.bf16 %v1748
  %v2005 = vunpack.c.l.bf16 %v1749
  %v2006 = vunpack.c.l.bf16 %v1750
  %v2007 = vunpack.c.l.bf16 %v1751
  %v2008 = vunpack.c.l.bf16 %v1752
  %v2009 = vunpack.c.l.bf16 %v1753
  %v2010 = vunpack.c.l.bf16 %v1754
  %v2011 = vunpack.c.l.bf16 %v1755
  %v2012 = vunpack.c.l.bf16 %v1756
  %v2013 = vunpack.c.l.bf16 %v1757
  %v2014 = vunpack.c.l.bf16 %v1758
  %v2015 = vunpack.c.l.bf16 %v1759
  %v2016 = vunpack.c.l.bf16 %v1760
  %v2017 = vunpack.c.l.bf16 %v1761
  %v2018 = vunpack.c.l.bf16 %v1762
  %v2019 = vunpack.c.l.bf16 %v1763
  %v2020 = vunpack.c.l.bf16 %v1764
  %v2021 = vunpack.c.l.bf16 %v1765
  %v2022 = vunpack.c.l.bf16 %v1766
  %v2023 = vunpack.c.l.bf16 %v1767
  %v2024 = vunpack.c.l.bf16 %v1768
  %v2025 = vunpack.c.l.bf16 %v1769
  %v2026 = vunpack.c.l.bf16 %v1770
  %v2027 = vunpack.c.l.bf16 %v1771
  %v2028 = vunpack.c.l.bf16 %v1772
  %v2029 = vunpack.c.l.bf16 %v1773
  %v2030 = vunpack.c.l.bf16 %v1774
  %v2031 = vunpack.c.l.bf16 %v1775
  %v2032 = vunpack.c.l.bf16 %v1776
  %v2033 = vunpack.c.l.bf16 %v1777
  %v2034 = vunpack.c.l.bf16 %v1778
  %v2035 = vunpack.c.l.bf16 %v1779
  %v2036 = vunpack.c.l.bf16 %v1780
  %v2037 = vunpack.c.l.bf16 %v1781
  %v2038 = vunpack.c.l.bf16 %v1782
  %v2039 = vunpack.c.l.bf16 %v1783
  %v2040 = vunpack.c.l.bf16 %v1784
  %v2041 = vunpack.c.l.bf16 %v1785
  %v2042 = vunpack.c.l.bf16 %v1786
  %v2043 = vunpack.c.l.bf16 %v1787
  %v2044 = vunpack.c.l.bf16 %v1788
  %v2045 = vunpack.c.l.bf16 %v1789
  %v2046 = vunpack.c.l.bf16 %v1790
  %v2047 = vunpack.c.l.bf16 %v1791
  %v2048 = vunpack.c.l.bf16 %v1792
  %v2049 = vunpack.c.l.bf16 %v1793
  %v2050 = vunpack.c.l.bf16 %v1794
  %v2051 = vunpack.c.l.bf16 %v1795
  %v2052 = vunpack.c.l.bf16 %v1796
  %v2053 = vunpack.c.l.bf16 %v1797
  %v2054 = vunpack.c.l.bf16 %v1798
  %v2055 = vunpack.c.l.bf16 %v1799
  %v2056 = vunpack.c.l.bf16 %v1800
  %v2057 = vunpack.c.l.bf16 %v1801
  %v2058 = vunpack.c.l.bf16 %v1802
  %v2059 = vunpack.c.l.bf16 %v1803
  %v2060 = vunpack.c.l.bf16 %v1804
  %v2061 = vunpack.c.l.bf16 %v1805
  %v2062 = vunpack.c.l.bf16 %v1806
  %v2063 = vunpack.c.l.bf16 %v1807
  %v2064 = vunpack.c.l.bf16 %v1808
  %v2065 = vunpack.c.l.bf16 %v1809
  %v2066 = vunpack.c.l.bf16 %v1810
  %v2067 = vunpack.c.l.bf16 %v1811
  %v2068 = vunpack.c.l.bf16 %v1812
  %v2069 = vunpack.c.l.bf16 %v1813
  %v2070 = vunpack.c.l.bf16 %v1814
  %v2071 = vunpack.c.l.bf16 %v1815
  %v2072 = vunpack.c.l.bf16 %v1816
  %v2073 = vunpack.c.l.bf16 %v1817
  %v2074 = vunpack.c.l.bf16 %v1818
  %v2075 = vunpack.c.l.bf16 %v1819
  %v2076 = vunpack.c.l.bf16 %v1820
  %v2077 = vunpack.c.l.bf16 %v1821
  %v2078 = vunpack.c.l.bf16 %v1822
  %v2079 = vunpack.c.l.bf16 %v1823
  %v2080 = vunpack.c.l.bf16 %v1824
  %v2081 = vunpack.c.l.bf16 %v1825
  %v2082 = vunpack.c.l.bf16 %v1826
  %v2083 = vunpack.c.l.bf16 %v1827
  %v2084 = vunpack.c.l.bf16 %v1828
  %v2085 = vunpack.c.l.bf16 %v1829
  %v2086 = vunpack.c.l.bf16 %v1830
  %v2087 = vunpack.c.l.bf16 %v1831
  %v2088 = vunpack.c.l.bf16 %v1832
  %v2089 = vunpack.c.l.bf16 %v1833
  %v2090 = vunpack.c.l.bf16 %v1834
  %v2091 = vunpack.c.l.bf16 %v1835
  %v2092 = vunpack.c.l.bf16 %v1836
  %v2093 = vunpack.c.l.bf16 %v1837
  %v2094 = vunpack.c.l.bf16 %v1838
  %v2095 = vunpack.c.l.bf16 %v1839
  %v2096 = vunpack.c.l.bf16 %v1840
  %v2097 = vunpack.c.l.bf16 %v1841
  %v2098 = vunpack.c.l.bf16 %v1842
  %v2099 = vunpack.c.l.bf16 %v1843
  %v2100 = vunpack.c.l.bf16 %v1844
  %v2101 = vunpack.c.l.bf16 %v1845
  %v2102 = vunpack.c.l.bf16 %v1846
  %v2103 = vunpack.c.l.bf16 %v1847
  %v2104 = vunpack.c.l.bf16 %v1848
  %v2105 = vunpack.c.l.bf16 %v1849
  %v2106 = vunpack.c.l.bf16 %v1850
  %v2107 = vunpack.c.l.bf16 %v1851
  %v2108 = vunpack.c.l.bf16 %v1852
  %v2109 = vunpack.c.l.bf16 %v1853
  %v2110 = vunpack.c.l.bf16 %v1854
  %v2111 = vunpack.c.l.bf16 %v1855
  %v2112 = vunpack.c.l.bf16 %v1856
  %v2113 = vunpack.c.l.bf16 %v1857
  %v2114 = vunpack.c.l.bf16 %v1858
  %v2115 = vunpack.c.l.bf16 %v1859
  %v2116 = vunpack.c.l.bf16 %v1860
  %v2117 = vunpack.c.l.bf16 %v1861
  %v2118 = vunpack.c.l.bf16 %v1862
  %v2119 = vunpack.c.l.bf16 %v1863
  %v2120 = vunpack.c.l.bf16 %v1864
  %v2121 = vunpack.c.l.bf16 %v1865
  %v2122 = vunpack.c.l.bf16 %v1866
  %v2123 = vunpack.c.l.bf16 %v1867
  %v2124 = vunpack.c.l.bf16 %v1868
  %v2125 = vunpack.c.l.bf16 %v1869
  %v2126 = vunpack.c.l.bf16 %v1870
  %v2127 = vunpack.c.l.bf16 %v1871
  %v2128 = vunpack.c.l.bf16 %v1872
  %v2129 = vunpack.c.l.bf16 %v1873
  %v2130 = vunpack.c.l.bf16 %v1874
  %v2131 = vunpack.c.l.bf16 %v1875
  %v2132 = vunpack.c.l.bf16 %v1876
  %v2133 = vunpack.c.l.bf16 %v1877
  %v2134 = vunpack.c.l.bf16 %v1878
  %v2135 = vunpack.c.l.bf16 %v1879
  %v2136 = vunpack.c.l.bf16 %v1880
  %v2137 = vunpack.c.l.bf16 %v1881
  %v2138 = vunpack.c.l.bf16 %v1882
  %v2139 = vunpack.c.l.bf16 %v1883
  %v2140 = vunpack.c.l.bf16 %v1884
  %v2141 = vunpack.c.l.bf16 %v1885
  %v2142 = vunpack.c.l.bf16 %v1886
  %v2143 = vunpack.c.l.bf16 %v1887
  %v2144 = vunpack.c.l.bf16 %v1888
  %v2145 = vunpack.c.l.bf16 %v1889
  %v2146 = vunpack.c.l.bf16 %v1890
  %v2147 = vunpack.c.l.bf16 %v1891
  %v2148 = vld [vmem:[%s35] sm:$0x1]
  %v2150 = vperm.slane %v2148, 0
  %2152 = vmatpush.msra.mxu0 %v1907
  %2153 = vmatpush.msra.mxu0 %v1906
  %2154 = vmatpush.msra.mxu0 %v1905
  %2155 = vmatpush.msra.mxu0 %v1904
  %2156 = vmatpush.msra.mxu0 %v1903
  %2157 = vmatpush.msra.mxu0 %v1902
  %2158 = vmatpush.msra.mxu0 %v1901
  %2159 = vmatpush.msra.mxu0 %v1900
  %2160 = vmatpush.msra.mxu0 %v1899
  %2161 = vmatpush.msra.mxu0 %v1898
  %2162 = vmatpush.msra.mxu0 %v1897
  %2163 = vmatpush.msra.mxu0 %v1896
  %2164 = vmatpush.msra.mxu0 %v1895
  %2165 = vmatpush.msra.mxu0 %v1894
  %2166 = vmatpush.msra.mxu0 %v1893
  %2167 = vmatpush.msra.mxu0 %v1892
  %2168 = vmatmul.f32.gmra.mxu0 %v1572
  %v2169 = vpop.f32.mrf.mxu0
  %v2170 = vadd.f32 %v2150, %v2169
  %2171 = vmatmul.f32.gmra.mxu0 %v1588
  %v2172 = vpop.f32.mrf.mxu0
  %v2173 = vadd.f32 %v2150, %v2172
  %2174 = vmatmul.f32.gmra.mxu0 %v1604
  %v2175 = vpop.f32.mrf.mxu0
  %v2176 = vadd.f32 %v2150, %v2175
  %2177 = vmatmul.f32.gmra.mxu0 %v1620
  %v2178 = vpop.f32.mrf.mxu0
  %v2179 = vadd.f32 %v2150, %v2178
  %2180 = vdwg.mxu0
  %2181 = vmatpush.msra.mxu0 %v1923
  %2182 = vmatpush.msra.mxu0 %v1922
  %2183 = vmatpush.msra.mxu0 %v1921
  %2184 = vmatpush.msra.mxu0 %v1920
  %2185 = vmatpush.msra.mxu0 %v1919
  %2186 = vmatpush.msra.mxu0 %v1918
  %2187 = vmatpush.msra.mxu0 %v1917
  %2188 = vmatpush.msra.mxu0 %v1916
  %2189 = vmatpush.msra.mxu0 %v1915
  %2190 = vmatpush.msra.mxu0 %v1914
  %2191 = vmatpush.msra.mxu0 %v1913
  %2192 = vmatpush.msra.mxu0 %v1912
  %2193 = vmatpush.msra.mxu0 %v1911
  %2194 = vmatpush.msra.mxu0 %v1910
  %2195 = vmatpush.msra.mxu0 %v1909
  %2196 = vmatpush.msra.mxu0 %v1908
  %2197 = vmatmul.f32.gmra.mxu0 %v1573
  %v2198 = vpop.f32.mrf.mxu0
  %v2199 = vadd.f32 %v2170, %v2198
  %2200 = vmatmul.f32.gmra.mxu0 %v1589
  %v2201 = vpop.f32.mrf.mxu0
  %v2202 = vadd.f32 %v2173, %v2201
  %2203 = vmatmul.f32.gmra.mxu0 %v1605
  %v2204 = vpop.f32.mrf.mxu0
  %v2205 = vadd.f32 %v2176, %v2204
  %2206 = vmatmul.f32.gmra.mxu0 %v1621
  %v2207 = vpop.f32.mrf.mxu0
  %v2208 = vadd.f32 %v2179, %v2207
  %2209 = vdwg.mxu0
  %2210 = vmatpush.msra.mxu0 %v1939
  %2211 = vmatpush.msra.mxu0 %v1938
  %2212 = vmatpush.msra.mxu0 %v1937
  %2213 = vmatpush.msra.mxu0 %v1936
  %2214 = vmatpush.msra.mxu0 %v1935
  %2215 = vmatpush.msra.mxu0 %v1934
  %2216 = vmatpush.msra.mxu0 %v1933
  %2217 = vmatpush.msra.mxu0 %v1932
  %2218 = vmatpush.msra.mxu0 %v1931
  %2219 = vmatpush.msra.mxu0 %v1930
  %2220 = vmatpush.msra.mxu0 %v1929
  %2221 = vmatpush.msra.mxu0 %v1928
  %2222 = vmatpush.msra.mxu0 %v1927
  %2223 = vmatpush.msra.mxu0 %v1926
  %2224 = vmatpush.msra.mxu0 %v1925
  %2225 = vmatpush.msra.mxu0 %v1924
  %2226 = vmatmul.f32.gmra.mxu0 %v1574
  %v2227 = vpop.f32.mrf.mxu0
  %v2228 = vadd.f32 %v2199, %v2227
  %2229 = vmatmul.f32.gmra.mxu0 %v1590
  %v2230 = vpop.f32.mrf.mxu0
  %v2231 = vadd.f32 %v2202, %v2230
  %2232 = vmatmul.f32.gmra.mxu0 %v1606
  %v2233 = vpop.f32.mrf.mxu0
  %v2234 = vadd.f32 %v2205, %v2233
  %2235 = vmatmul.f32.gmra.mxu0 %v1622
  %v2236 = vpop.f32.mrf.mxu0
  %v2237 = vadd.f32 %v2208, %v2236
  %2238 = vdwg.mxu0
  %2239 = vmatpush.msra.mxu0 %v1955
  %2240 = vmatpush.msra.mxu0 %v1954
  %2241 = vmatpush.msra.mxu0 %v1953
  %2242 = vmatpush.msra.mxu0 %v1952
  %2243 = vmatpush.msra.mxu0 %v1951
  %2244 = vmatpush.msra.mxu0 %v1950
  %2245 = vmatpush.msra.mxu0 %v1949
  %2246 = vmatpush.msra.mxu0 %v1948
  %2247 = vmatpush.msra.mxu0 %v1947
  %2248 = vmatpush.msra.mxu0 %v1946
  %2249 = vmatpush.msra.mxu0 %v1945
  %2250 = vmatpush.msra.mxu0 %v1944
  %2251 = vmatpush.msra.mxu0 %v1943
  %2252 = vmatpush.msra.mxu0 %v1942
  %2253 = vmatpush.msra.mxu0 %v1941
  %2254 = vmatpush.msra.mxu0 %v1940
  %2255 = vmatmul.f32.gmra.mxu0 %v1575
  %v2256 = vpop.f32.mrf.mxu0
  %v2257 = vadd.f32 %v2228, %v2256
  %2258 = vmatmul.f32.gmra.mxu0 %v1591
  %v2259 = vpop.f32.mrf.mxu0
  %v2260 = vadd.f32 %v2231, %v2259
  %2261 = vmatmul.f32.gmra.mxu0 %v1607
  %v2262 = vpop.f32.mrf.mxu0
  %v2263 = vadd.f32 %v2234, %v2262
  %2264 = vmatmul.f32.gmra.mxu0 %v1623
  %v2265 = vpop.f32.mrf.mxu0
  %v2266 = vadd.f32 %v2237, %v2265
  %2267 = vdwg.mxu0
  %2268 = vmatpush.msra.mxu0 %v1971
  %2269 = vmatpush.msra.mxu0 %v1970
  %2270 = vmatpush.msra.mxu0 %v1969
  %2271 = vmatpush.msra.mxu0 %v1968
  %2272 = vmatpush.msra.mxu0 %v1967
  %2273 = vmatpush.msra.mxu0 %v1966
  %2274 = vmatpush.msra.mxu0 %v1965
  %2275 = vmatpush.msra.mxu0 %v1964
  %2276 = vmatpush.msra.mxu0 %v1963
  %2277 = vmatpush.msra.mxu0 %v1962
  %2278 = vmatpush.msra.mxu0 %v1961
  %2279 = vmatpush.msra.mxu0 %v1960
  %2280 = vmatpush.msra.mxu0 %v1959
  %2281 = vmatpush.msra.mxu0 %v1958
  %2282 = vmatpush.msra.mxu0 %v1957
  %2283 = vmatpush.msra.mxu0 %v1956
  %2284 = vmatmul.f32.gmra.mxu0 %v1576
  %v2285 = vpop.f32.mrf.mxu0
  %v2286 = vadd.f32 %v2257, %v2285
  %2287 = vmatmul.f32.gmra.mxu0 %v1592
  %v2288 = vpop.f32.mrf.mxu0
  %v2289 = vadd.f32 %v2260, %v2288
  %2290 = vmatmul.f32.gmra.mxu0 %v1608
  %v2291 = vpop.f32.mrf.mxu0
  %v2292 = vadd.f32 %v2263, %v2291
  %2293 = vmatmul.f32.gmra.mxu0 %v1624
  %v2294 = vpop.f32.mrf.mxu0
  %v2295 = vadd.f32 %v2266, %v2294
  %2296 = vdwg.mxu0
  %2297 = vmatpush.msra.mxu0 %v1987
  %2298 = vmatpush.msra.mxu0 %v1986
  %2299 = vmatpush.msra.mxu0 %v1985
  %2300 = vmatpush.msra.mxu0 %v1984
  %2301 = vmatpush.msra.mxu0 %v1983
  %2302 = vmatpush.msra.mxu0 %v1982
  %2303 = vmatpush.msra.mxu0 %v1981
  %2304 = vmatpush.msra.mxu0 %v1980
  %2305 = vmatpush.msra.mxu0 %v1979
  %2306 = vmatpush.msra.mxu0 %v1978
  %2307 = vmatpush.msra.mxu0 %v1977
  %2308 = vmatpush.msra.mxu0 %v1976
  %2309 = vmatpush.msra.mxu0 %v1975
  %2310 = vmatpush.msra.mxu0 %v1974
  %2311 = vmatpush.msra.mxu0 %v1973
  %2312 = vmatpush.msra.mxu0 %v1972
  %2313 = vmatmul.f32.gmra.mxu0 %v1577
  %v2314 = vpop.f32.mrf.mxu0
  %v2315 = vadd.f32 %v2286, %v2314
  %2316 = vmatmul.f32.gmra.mxu0 %v1593
  %v2317 = vpop.f32.mrf.mxu0
  %v2318 = vadd.f32 %v2289, %v2317
  %2319 = vmatmul.f32.gmra.mxu0 %v1609
  %v2320 = vpop.f32.mrf.mxu0
  %v2321 = vadd.f32 %v2292, %v2320
  %2322 = vmatmul.f32.gmra.mxu0 %v1625
  %v2323 = vpop.f32.mrf.mxu0
  %v2324 = vadd.f32 %v2295, %v2323
  %2325 = vdwg.mxu0
  %2326 = vmatpush.msra.mxu0 %v2003
  %2327 = vmatpush.msra.mxu0 %v2002
  %2328 = vmatpush.msra.mxu0 %v2001
  %2329 = vmatpush.msra.mxu0 %v2000
  %2330 = vmatpush.msra.mxu0 %v1999
  %2331 = vmatpush.msra.mxu0 %v1998
  %2332 = vmatpush.msra.mxu0 %v1997
  %2333 = vmatpush.msra.mxu0 %v1996
  %2334 = vmatpush.msra.mxu0 %v1995
  %2335 = vmatpush.msra.mxu0 %v1994
  %2336 = vmatpush.msra.mxu0 %v1993
  %2337 = vmatpush.msra.mxu0 %v1992
  %2338 = vmatpush.msra.mxu0 %v1991
  %2339 = vmatpush.msra.mxu0 %v1990
  %2340 = vmatpush.msra.mxu0 %v1989
  %2341 = vmatpush.msra.mxu0 %v1988
  %2342 = vmatmul.f32.gmra.mxu0 %v1578
  %v2343 = vpop.f32.mrf.mxu0
  %v2344 = vadd.f32 %v2315, %v2343
  %2345 = vmatmul.f32.gmra.mxu0 %v1594
  %v2346 = vpop.f32.mrf.mxu0
  %v2347 = vadd.f32 %v2318, %v2346
  %2348 = vmatmul.f32.gmra.mxu0 %v1610
  %v2349 = vpop.f32.mrf.mxu0
  %v2350 = vadd.f32 %v2321, %v2349
  %2351 = vmatmul.f32.gmra.mxu0 %v1626
  %v2352 = vpop.f32.mrf.mxu0
  %v2353 = vadd.f32 %v2324, %v2352
  %2354 = vdwg.mxu0
  %2355 = vmatpush.msra.mxu0 %v2019
  %2356 = vmatpush.msra.mxu0 %v2018
  %2357 = vmatpush.msra.mxu0 %v2017
  %2358 = vmatpush.msra.mxu0 %v2016
  %2359 = vmatpush.msra.mxu0 %v2015
  %2360 = vmatpush.msra.mxu0 %v2014
  %2361 = vmatpush.msra.mxu0 %v2013
  %2362 = vmatpush.msra.mxu0 %v2012
  %2363 = vmatpush.msra.mxu0 %v2011
  %2364 = vmatpush.msra.mxu0 %v2010
  %2365 = vmatpush.msra.mxu0 %v2009
  %2366 = vmatpush.msra.mxu0 %v2008
  %2367 = vmatpush.msra.mxu0 %v2007
  %2368 = vmatpush.msra.mxu0 %v2006
  %2369 = vmatpush.msra.mxu0 %v2005
  %2370 = vmatpush.msra.mxu0 %v2004
  %2371 = vmatmul.f32.gmra.mxu0 %v1579
  %v2372 = vpop.f32.mrf.mxu0
  %v2373 = vadd.f32 %v2344, %v2372
  %2374 = vmatmul.f32.gmra.mxu0 %v1595
  %v2375 = vpop.f32.mrf.mxu0
  %v2376 = vadd.f32 %v2347, %v2375
  %2377 = vmatmul.f32.gmra.mxu0 %v1611
  %v2378 = vpop.f32.mrf.mxu0
  %v2379 = vadd.f32 %v2350, %v2378
  %2380 = vmatmul.f32.gmra.mxu0 %v1627
  %v2381 = vpop.f32.mrf.mxu0
  %v2382 = vadd.f32 %v2353, %v2381
  %2383 = vdwg.mxu0
  %2384 = vmatpush.msra.mxu0 %v2035
  %2385 = vmatpush.msra.mxu0 %v2034
  %2386 = vmatpush.msra.mxu0 %v2033
  %2387 = vmatpush.msra.mxu0 %v2032
  %2388 = vmatpush.msra.mxu0 %v2031
  %2389 = vmatpush.msra.mxu0 %v2030
  %2390 = vmatpush.msra.mxu0 %v2029
  %2391 = vmatpush.msra.mxu0 %v2028
  %2392 = vmatpush.msra.mxu0 %v2027
  %2393 = vmatpush.msra.mxu0 %v2026
  %2394 = vmatpush.msra.mxu0 %v2025
  %2395 = vmatpush.msra.mxu0 %v2024
  %2396 = vmatpush.msra.mxu0 %v2023
  %2397 = vmatpush.msra.mxu0 %v2022
  %2398 = vmatpush.msra.mxu0 %v2021
  %2399 = vmatpush.msra.mxu0 %v2020
  %2400 = vmatmul.f32.gmra.mxu0 %v1580
  %v2401 = vpop.f32.mrf.mxu0
  %v2402 = vadd.f32 %v2373, %v2401
  %2403 = vmatmul.f32.gmra.mxu0 %v1596
  %v2404 = vpop.f32.mrf.mxu0
  %v2405 = vadd.f32 %v2376, %v2404
  %2406 = vmatmul.f32.gmra.mxu0 %v1612
  %v2407 = vpop.f32.mrf.mxu0
  %v2408 = vadd.f32 %v2379, %v2407
  %2409 = vmatmul.f32.gmra.mxu0 %v1628
  %v2410 = vpop.f32.mrf.mxu0
  %v2411 = vadd.f32 %v2382, %v2410
  %2412 = vdwg.mxu0
  %2413 = vmatpush.msra.mxu0 %v2051
  %2414 = vmatpush.msra.mxu0 %v2050
  %2415 = vmatpush.msra.mxu0 %v2049
  %2416 = vmatpush.msra.mxu0 %v2048
  %2417 = vmatpush.msra.mxu0 %v2047
  %2418 = vmatpush.msra.mxu0 %v2046
  %2419 = vmatpush.msra.mxu0 %v2045
  %2420 = vmatpush.msra.mxu0 %v2044
  %2421 = vmatpush.msra.mxu0 %v2043
  %2422 = vmatpush.msra.mxu0 %v2042
  %2423 = vmatpush.msra.mxu0 %v2041
  %2424 = vmatpush.msra.mxu0 %v2040
  %2425 = vmatpush.msra.mxu0 %v2039
  %2426 = vmatpush.msra.mxu0 %v2038
  %2427 = vmatpush.msra.mxu0 %v2037
  %2428 = vmatpush.msra.mxu0 %v2036
  %2429 = vmatmul.f32.gmra.mxu0 %v1581
  %v2430 = vpop.f32.mrf.mxu0
  %v2431 = vadd.f32 %v2402, %v2430
  %2432 = vmatmul.f32.gmra.mxu0 %v1597
  %v2433 = vpop.f32.mrf.mxu0
  %v2434 = vadd.f32 %v2405, %v2433
  %2435 = vmatmul.f32.gmra.mxu0 %v1613
  %v2436 = vpop.f32.mrf.mxu0
  %v2437 = vadd.f32 %v2408, %v2436
  %2438 = vmatmul.f32.gmra.mxu0 %v1629
  %v2439 = vpop.f32.mrf.mxu0
  %v2440 = vadd.f32 %v2411, %v2439
  %2441 = vdwg.mxu0
  %2442 = vmatpush.msra.mxu0 %v2067
  %2443 = vmatpush.msra.mxu0 %v2066
  %2444 = vmatpush.msra.mxu0 %v2065
  %2445 = vmatpush.msra.mxu0 %v2064
  %2446 = vmatpush.msra.mxu0 %v2063
  %2447 = vmatpush.msra.mxu0 %v2062
  %2448 = vmatpush.msra.mxu0 %v2061
  %2449 = vmatpush.msra.mxu0 %v2060
  %2450 = vmatpush.msra.mxu0 %v2059
  %2451 = vmatpush.msra.mxu0 %v2058
  %2452 = vmatpush.msra.mxu0 %v2057
  %2453 = vmatpush.msra.mxu0 %v2056
  %2454 = vmatpush.msra.mxu0 %v2055
  %2455 = vmatpush.msra.mxu0 %v2054
  %2456 = vmatpush.msra.mxu0 %v2053
  %2457 = vmatpush.msra.mxu0 %v2052
  %2458 = vmatmul.f32.gmra.mxu0 %v1582
  %v2459 = vpop.f32.mrf.mxu0
  %v2460 = vadd.f32 %v2431, %v2459
  %2461 = vmatmul.f32.gmra.mxu0 %v1598
  %v2462 = vpop.f32.mrf.mxu0
  %v2463 = vadd.f32 %v2434, %v2462
  %2464 = vmatmul.f32.gmra.mxu0 %v1614
  %v2465 = vpop.f32.mrf.mxu0
  %v2466 = vadd.f32 %v2437, %v2465
  %2467 = vmatmul.f32.gmra.mxu0 %v1630
  %v2468 = vpop.f32.mrf.mxu0
  %v2469 = vadd.f32 %v2440, %v2468
  %2470 = vdwg.mxu0
  %2471 = vmatpush.msra.mxu0 %v2083
  %2472 = vmatpush.msra.mxu0 %v2082
  %2473 = vmatpush.msra.mxu0 %v2081
  %2474 = vmatpush.msra.mxu0 %v2080
  %2475 = vmatpush.msra.mxu0 %v2079
  %2476 = vmatpush.msra.mxu0 %v2078
  %2477 = vmatpush.msra.mxu0 %v2077
  %2478 = vmatpush.msra.mxu0 %v2076
  %2479 = vmatpush.msra.mxu0 %v2075
  %2480 = vmatpush.msra.mxu0 %v2074
  %2481 = vmatpush.msra.mxu0 %v2073
  %2482 = vmatpush.msra.mxu0 %v2072
  %2483 = vmatpush.msra.mxu0 %v2071
  %2484 = vmatpush.msra.mxu0 %v2070
  %2485 = vmatpush.msra.mxu0 %v2069
  %2486 = vmatpush.msra.mxu0 %v2068
  %2487 = vmatmul.f32.gmra.mxu0 %v1583
  %v2488 = vpop.f32.mrf.mxu0
  %v2489 = vadd.f32 %v2460, %v2488
  %2490 = vmatmul.f32.gmra.mxu0 %v1599
  %v2491 = vpop.f32.mrf.mxu0
  %v2492 = vadd.f32 %v2463, %v2491
  %2493 = vmatmul.f32.gmra.mxu0 %v1615
  %v2494 = vpop.f32.mrf.mxu0
  %v2495 = vadd.f32 %v2466, %v2494
  %2496 = vmatmul.f32.gmra.mxu0 %v1631
  %v2497 = vpop.f32.mrf.mxu0
  %v2498 = vadd.f32 %v2469, %v2497
  %2499 = vdwg.mxu0
  %2500 = vmatpush.msra.mxu0 %v2099
  %2501 = vmatpush.msra.mxu0 %v2098
  %2502 = vmatpush.msra.mxu0 %v2097
  %2503 = vmatpush.msra.mxu0 %v2096
  %2504 = vmatpush.msra.mxu0 %v2095
  %2505 = vmatpush.msra.mxu0 %v2094
  %2506 = vmatpush.msra.mxu0 %v2093
  %2507 = vmatpush.msra.mxu0 %v2092
  %2508 = vmatpush.msra.mxu0 %v2091
  %2509 = vmatpush.msra.mxu0 %v2090
  %2510 = vmatpush.msra.mxu0 %v2089
  %2511 = vmatpush.msra.mxu0 %v2088
  %2512 = vmatpush.msra.mxu0 %v2087
  %2513 = vmatpush.msra.mxu0 %v2086
  %2514 = vmatpush.msra.mxu0 %v2085
  %2515 = vmatpush.msra.mxu0 %v2084
  %2516 = vmatmul.f32.gmra.mxu0 %v1584
  %v2517 = vpop.f32.mrf.mxu0
  %v2518 = vadd.f32 %v2489, %v2517
  %2519 = vmatmul.f32.gmra.mxu0 %v1600
  %v2520 = vpop.f32.mrf.mxu0
  %v2521 = vadd.f32 %v2492, %v2520
  %2522 = vmatmul.f32.gmra.mxu0 %v1616
  %v2523 = vpop.f32.mrf.mxu0
  %v2524 = vadd.f32 %v2495, %v2523
  %2525 = vmatmul.f32.gmra.mxu0 %v1632
  %v2526 = vpop.f32.mrf.mxu0
  %v2527 = vadd.f32 %v2498, %v2526
  %2528 = vdwg.mxu0
  %2529 = vmatpush.msra.mxu0 %v2115
  %2530 = vmatpush.msra.mxu0 %v2114
  %2531 = vmatpush.msra.mxu0 %v2113
  %2532 = vmatpush.msra.mxu0 %v2112
  %2533 = vmatpush.msra.mxu0 %v2111
  %2534 = vmatpush.msra.mxu0 %v2110
  %2535 = vmatpush.msra.mxu0 %v2109
  %2536 = vmatpush.msra.mxu0 %v2108
  %2537 = vmatpush.msra.mxu0 %v2107
  %2538 = vmatpush.msra.mxu0 %v2106
  %2539 = vmatpush.msra.mxu0 %v2105
  %2540 = vmatpush.msra.mxu0 %v2104
  %2541 = vmatpush.msra.mxu0 %v2103
  %2542 = vmatpush.msra.mxu0 %v2102
  %2543 = vmatpush.msra.mxu0 %v2101
  %2544 = vmatpush.msra.mxu0 %v2100
  %2545 = vmatmul.f32.gmra.mxu0 %v1585
  %v2546 = vpop.f32.mrf.mxu0
  %v2547 = vadd.f32 %v2518, %v2546
  %2548 = vmatmul.f32.gmra.mxu0 %v1601
  %v2549 = vpop.f32.mrf.mxu0
  %v2550 = vadd.f32 %v2521, %v2549
  %2551 = vmatmul.f32.gmra.mxu0 %v1617
  %v2552 = vpop.f32.mrf.mxu0
  %v2553 = vadd.f32 %v2524, %v2552
  %2554 = vmatmul.f32.gmra.mxu0 %v1633
  %v2555 = vpop.f32.mrf.mxu0
  %v2556 = vadd.f32 %v2527, %v2555
  %2557 = vdwg.mxu0
  %2558 = vmatpush.msra.mxu0 %v2131
  %2559 = vmatpush.msra.mxu0 %v2130
  %2560 = vmatpush.msra.mxu0 %v2129
  %2561 = vmatpush.msra.mxu0 %v2128
  %2562 = vmatpush.msra.mxu0 %v2127
  %2563 = vmatpush.msra.mxu0 %v2126
  %2564 = vmatpush.msra.mxu0 %v2125
  %2565 = vmatpush.msra.mxu0 %v2124
  %2566 = vmatpush.msra.mxu0 %v2123
  %2567 = vmatpush.msra.mxu0 %v2122
  %2568 = vmatpush.msra.mxu0 %v2121
  %2569 = vmatpush.msra.mxu0 %v2120
  %2570 = vmatpush.msra.mxu0 %v2119
  %2571 = vmatpush.msra.mxu0 %v2118
  %2572 = vmatpush.msra.mxu0 %v2117
  %2573 = vmatpush.msra.mxu0 %v2116
  %2574 = vmatmul.f32.gmra.mxu0 %v1586
  %v2575 = vpop.f32.mrf.mxu0
  %v2576 = vadd.f32 %v2547, %v2575
  %2577 = vmatmul.f32.gmra.mxu0 %v1602
  %v2578 = vpop.f32.mrf.mxu0
  %v2579 = vadd.f32 %v2550, %v2578
  %2580 = vmatmul.f32.gmra.mxu0 %v1618
  %v2581 = vpop.f32.mrf.mxu0
  %v2582 = vadd.f32 %v2553, %v2581
  %2583 = vmatmul.f32.gmra.mxu0 %v1634
  %v2584 = vpop.f32.mrf.mxu0
  %v2585 = vadd.f32 %v2556, %v2584
  %2586 = vdwg.mxu0
  %2587 = vmatpush.msra.mxu0 %v2147
  %2588 = vmatpush.msra.mxu0 %v2146
  %2589 = vmatpush.msra.mxu0 %v2145
  %2590 = vmatpush.msra.mxu0 %v2144
  %2591 = vmatpush.msra.mxu0 %v2143
  %2592 = vmatpush.msra.mxu0 %v2142
  %2593 = vmatpush.msra.mxu0 %v2141
  %2594 = vmatpush.msra.mxu0 %v2140
  %2595 = vmatpush.msra.mxu0 %v2139
  %2596 = vmatpush.msra.mxu0 %v2138
  %2597 = vmatpush.msra.mxu0 %v2137
  %2598 = vmatpush.msra.mxu0 %v2136
  %2599 = vmatpush.msra.mxu0 %v2135
  %2600 = vmatpush.msra.mxu0 %v2134
  %2601 = vmatpush.msra.mxu0 %v2133
  %2602 = vmatpush.msra.mxu0 %v2132
  %2603 = vmatmul.f32.gmra.mxu0 %v1587
  %v2604 = vpop.f32.mrf.mxu0
  %v2605 = vadd.f32 %v2576, %v2604
  %2606 = vmatmul.f32.gmra.mxu0 %v1603
  %v2607 = vpop.f32.mrf.mxu0
  %v2608 = vadd.f32 %v2579, %v2607
  %2609 = vmatmul.f32.gmra.mxu0 %v1619
  %v2610 = vpop.f32.mrf.mxu0
  %v2611 = vadd.f32 %v2582, %v2610
  %2612 = vmatmul.f32.gmra.mxu0 %v1635
  %v2613 = vpop.f32.mrf.mxu0
  %v2614 = vadd.f32 %v2585, %v2613
  %2615 = vdwg.mxu0
  %v2616 = vadd.f32 %v864, %v2605
  %v2617 = vadd.f32 %v865, %v2608
  %v2618 = vadd.f32 %v866, %v2611
  %v2619 = vadd.f32 %v867, %v2614
  %v2620 = vld [vmem:[%s37] sm:$0x1]
  %v2621 = vld [vmem:[%s39] sm:$0x1]
  %v2622 = vsel %vm149, %v2616, 0.0
  %2623 = vadd.xlane.f32.xlu0 %v2622
  %v2624 = vpop.xlane.xlu0 %2623
  %v2625 = vsel %vm149, %v2617, 0.0
  %2626 = vadd.xlane.f32.xlu0 %v2625
  %v2627 = vpop.xlane.xlu0 %2626
  %v2628 = vsel %vm149, %v2618, 0.0
  %2629 = vadd.xlane.f32.xlu0 %v2628
  %v2630 = vpop.xlane.xlu0 %2629
  %v2631 = vsel %vm149, %v2619, 0.0
  %2632 = vadd.xlane.f32.xlu0 %v2631
  %v2633 = vpop.xlane.xlu0 %2632
  %v2634 = vmul.f32 %v2624, %v777
  %v2635 = vmul.f32 %v2627, %v777
  %v2636 = vmul.f32 %v2630, %v777
  %v2637 = vmul.f32 %v2633, %v777
  %v2638 = vsub.f32 %v2616, %v2634
  %v2639 = vsub.f32 %v2617, %v2635
  %v2640 = vsub.f32 %v2618, %v2636
  %v2641 = vsub.f32 %v2619, %v2637
  %v2642 = vmul.f32 %v2638, %v2638
  %v2643 = vmul.f32 %v2639, %v2639
  %v2644 = vmul.f32 %v2640, %v2640
  %v2645 = vmul.f32 %v2641, %v2641
  %v2646 = vsel %vm149, %v2642, 0.0
  %2647 = vadd.xlane.f32.xlu0 %v2646
  %v2648 = vpop.xlane.xlu0 %2647
  %v2649 = vsel %vm149, %v2643, 0.0
  %2650 = vadd.xlane.f32.xlu0 %v2649
  %v2651 = vpop.xlane.xlu0 %2650
  %v2652 = vsel %vm149, %v2644, 0.0
  %2653 = vadd.xlane.f32.xlu0 %v2652
  %v2654 = vpop.xlane.xlu0 %2653
  %v2655 = vsel %vm149, %v2645, 0.0
  %2656 = vadd.xlane.f32.xlu0 %v2655
  %v2657 = vpop.xlane.xlu0 %2656
  %v2658 = vmul.f32 %v2648, %v777
  %v2659 = vmul.f32 %v2651, %v777
  %v2660 = vmul.f32 %v2654, %v777
  %v2661 = vmul.f32 %v2657, %v777
  %v2662 = vadd.f32 %v2658, 1e-05
  %v2663 = vadd.f32 %v2659, 1e-05
  %v2664 = vadd.f32 %v2660, 1e-05
  %v2665 = vadd.f32 %v2661, 1e-05
  %v2666 = vrsqrt.pop %v2662
  %v2667 = vmul.f32 %v2666, %v2662
  %v2668 = vmul.f32 %v2667, %v2666
  %v2669 = vmul.f32 0.5, %v2668
  %v2670 = vsub.f32 1.5, %v2669
  %v2671 = vmul.f32 %v2666, %v2670
  %vm2672 = vweird.f32 %v2662
  %vm2673 = vweird.f32 %v2666
  %vm2674 = vmor %vm2672, %vm2673
  %v2675 = vsel %vm2674, %v2666, %v2671
  %v2676 = vrsqrt.pop %v2663
  %v2677 = vmul.f32 %v2676, %v2663
  %v2678 = vmul.f32 %v2677, %v2676
  %v2679 = vmul.f32 0.5, %v2678
  %v2680 = vsub.f32 1.5, %v2679
  %v2681 = vmul.f32 %v2676, %v2680
  %vm2682 = vweird.f32 %v2663
  %vm2683 = vweird.f32 %v2676
  %vm2684 = vmor %vm2682, %vm2683
  %v2685 = vsel %vm2684, %v2676, %v2681
  %v2686 = vrsqrt.pop %v2664
  %v2687 = vmul.f32 %v2686, %v2664
  %v2688 = vmul.f32 %v2687, %v2686
  %v2689 = vmul.f32 0.5, %v2688
  %v2690 = vsub.f32 1.5, %v2689
  %v2691 = vmul.f32 %v2686, %v2690
  %vm2692 = vweird.f32 %v2664
  %vm2693 = vweird.f32 %v2686
  %vm2694 = vmor %vm2692, %vm2693
  %v2695 = vsel %vm2694, %v2686, %v2691
  %v2696 = vrsqrt.pop %v2665
  %v2697 = vmul.f32 %v2696, %v2665
  %v2698 = vmul.f32 %v2697, %v2696
  %v2699 = vmul.f32 0.5, %v2698
  %v2700 = vsub.f32 1.5, %v2699
  %v2701 = vmul.f32 %v2696, %v2700
  %vm2702 = vweird.f32 %v2665
  %vm2703 = vweird.f32 %v2696
  %vm2704 = vmor %vm2702, %vm2703
  %v2705 = vsel %vm2704, %v2696, %v2701
  %v2706 = vmul.f32 %v2638, %v2675
  %v2707 = vmul.f32 %v2639, %v2685
  %v2708 = vmul.f32 %v2640, %v2695
  %v2709 = vmul.f32 %v2641, %v2705
  %v2711 = vperm.slane %v2620, 0
  %v2713 = vmul.f32 %v2706, %v2711
  %v2714 = vmul.f32 %v2707, %v2711
  %v2715 = vmul.f32 %v2708, %v2711
  %v2716 = vmul.f32 %v2709, %v2711
  %v2718 = vperm.slane %v2621, 0
  %v2720 = vadd.f32 %v2713, %v2718
  %v2721 = vadd.f32 %v2714, %v2718
  %v2722 = vadd.f32 %v2715, %v2718
  %v2723 = vadd.f32 %v2716, %v2718
  %2724 = vst.msk [vmem:[#allocation2] sm:$0xff] %vm149, %v2720
  %2725 = vst.msk [vmem:[#allocation2 + $0x8] sm:$0xff] %vm149, %v2721
  %2726 = vst.msk [vmem:[#allocation2 + $0x10] sm:$0xff] %vm149, %v2722
  %2727 = vst.msk [vmem:[#allocation2 + $0x18] sm:$0xff] %vm149, %v2723
  %v2728 = vld [vmem:[%s43] sm:$0x1]
  %v2730 = vperm.slane %v2728, 0
  %v2732 = vadd.f32 %v2730, 0.0
  %v2733 = vld [vmem:[%s51] sm:$0x1]
  %v2735 = vperm.slane %v2733, 0
  %v2737 = vadd.f32 %v2735, 0.0
  %v2738 = vld [vmem:[#allocation2] ss:$8 sm:$0xf]
  %v2739 = vld [vmem:[%s41] sm:$0xff]
  %v2740 = vld [vmem:[%s41 + $0x8] sm:$0xff]
  %v2741 = vld [vmem:[%s41 + $0x10] sm:$0xff]
  %v2742 = vld [vmem:[%s41 + $0x18] sm:$0xff]
  %v2743 = vld [vmem:[%s41 + $0x20] sm:$0xff]
  %v2744 = vld [vmem:[%s41 + $0x28] sm:$0xff]
  %v2745 = vld [vmem:[%s41 + $0x30] sm:$0xff]
  %v2746 = vld [vmem:[%s41 + $0x38] sm:$0xff]
  %v2748 = vsel %vm149, %v2738, 0
  %2750 = vmatpush.msra.mxu0 0.0
  %2751 = vmatpush.msra.mxu0 0.0
  %2752 = vmatpush.msra.mxu0 0.0
  %2753 = vmatpush.msra.mxu0 0.0
  %2754 = vmatpush.msra.mxu0 0.0
  %2755 = vmatpush.msra.mxu0 0.0
  %2756 = vmatpush.msra.mxu0 0.0
  %2757 = vmatpush.msra.mxu0 0.0
  %2758 = vmatpush.msra.mxu0 %v2746
  %2759 = vmatpush.msra.mxu0 %v2745
  %2760 = vmatpush.msra.mxu0 %v2744
  %2761 = vmatpush.msra.mxu0 %v2743
  %2762 = vmatpush.msra.mxu0 %v2742
  %2763 = vmatpush.msra.mxu0 %v2741
  %2764 = vmatpush.msra.mxu0 %v2740
  %2765 = vmatpush.msra.mxu0 %v2739
  %2766 = vmatmul.f32.gmra.mxu0 %v2748
  %v2767 = vpop.f32.mrf.mxu0
  %v2768 = vadd.f32 0.0, %v2767
  %2769 = vdwg.mxu0
  %v2770 = vadd.f32 %v2732, %v2768
  %v2771 = vld [vmem:[%s49] sm:$0xff]
  %v2772 = vld [vmem:[%s49 + $0x8] sm:$0xff]
  %v2773 = vld [vmem:[%s49 + $0x10] sm:$0xff]
  %v2774 = vld [vmem:[%s49 + $0x18] sm:$0xff]
  %v2775 = vld [vmem:[%s49 + $0x20] sm:$0xff]
  %v2776 = vld [vmem:[%s49 + $0x28] sm:$0xff]
  %v2777 = vld [vmem:[%s49 + $0x30] sm:$0xff]
  %v2778 = vld [vmem:[%s49 + $0x38] sm:$0xff]
  %2779 = vmatpush.msra.mxu0 0.0
  %2780 = vmatpush.msra.mxu0 0.0
  %2781 = vmatpush.msra.mxu0 0.0
  %2782 = vmatpush.msra.mxu0 0.0
  %2783 = vmatpush.msra.mxu0 0.0
  %2784 = vmatpush.msra.mxu0 0.0
  %2785 = vmatpush.msra.mxu0 0.0
  %2786 = vmatpush.msra.mxu0 0.0
  %2787 = vmatpush.msra.mxu0 %v2778
  %2788 = vmatpush.msra.mxu0 %v2777
  %2789 = vmatpush.msra.mxu0 %v2776
  %2790 = vmatpush.msra.mxu0 %v2775
  %2791 = vmatpush.msra.mxu0 %v2774
  %2792 = vmatpush.msra.mxu0 %v2773
  %2793 = vmatpush.msra.mxu0 %v2772
  %2794 = vmatpush.msra.mxu0 %v2771
  %2795 = vmatmul.f32.gmra.mxu0 %v2748
  %v2796 = vpop.f32.mrf.mxu0
  %v2797 = vadd.f32 0.0, %v2796
  %2798 = vdwg.mxu0
  %v2799 = vadd.f32 %v2737, %v2797
  %s2800 = scalar_lea.vmem [#allocation2], 1
  %v2801 = vld [vmem:[%s2800] ss:$8 sm:$0xf]
  %s2802 = scalar_lea.vmem %s41, 64
  %v2803 = vld [vmem:[%s2802] sm:$0xff]
  %v2804 = vld [vmem:[%s2802 + $0x8] sm:$0xff]
  %v2805 = vld [vmem:[%s2802 + $0x10] sm:$0xff]
  %v2806 = vld [vmem:[%s2802 + $0x18] sm:$0xff]
  %v2807 = vld [vmem:[%s2802 + $0x20] sm:$0xff]
  %v2808 = vld [vmem:[%s2802 + $0x28] sm:$0xff]
  %v2809 = vld [vmem:[%s2802 + $0x30] sm:$0xff]
  %v2810 = vld [vmem:[%s2802 + $0x38] sm:$0xff]
  %v2812 = vsel %vm149, %v2801, 0
  %2814 = vmatpush.msra.mxu0 0.0
  %2815 = vmatpush.msra.mxu0 0.0
  %2816 = vmatpush.msra.mxu0 0.0
  %2817 = vmatpush.msra.mxu0 0.0
  %2818 = vmatpush.msra.mxu0 0.0
  %2819 = vmatpush.msra.mxu0 0.0
  %2820 = vmatpush.msra.mxu0 0.0
  %2821 = vmatpush.msra.mxu0 0.0
  %2822 = vmatpush.msra.mxu0 %v2810
  %2823 = vmatpush.msra.mxu0 %v2809
  %2824 = vmatpush.msra.mxu0 %v2808
  %2825 = vmatpush.msra.mxu0 %v2807
  %2826 = vmatpush.msra.mxu0 %v2806
  %2827 = vmatpush.msra.mxu0 %v2805
  %2828 = vmatpush.msra.mxu0 %v2804
  %2829 = vmatpush.msra.mxu0 %v2803
  %2830 = vmatmul.f32.gmra.mxu0 %v2812
  %v2831 = vpop.f32.mrf.mxu0
  %v2832 = vadd.f32 0.0, %v2831
  %2833 = vdwg.mxu0
  %v2834 = vadd.f32 %v2770, %v2832
  %s2835 = scalar_lea.vmem %s49, 64
  %v2836 = vld [vmem:[%s2835] sm:$0xff]
  %v2837 = vld [vmem:[%s2835 + $0x8] sm:$0xff]
  %v2838 = vld [vmem:[%s2835 + $0x10] sm:$0xff]
  %v2839 = vld [vmem:[%s2835 + $0x18] sm:$0xff]
  %v2840 = vld [vmem:[%s2835 + $0x20] sm:$0xff]
  %v2841 = vld [vmem:[%s2835 + $0x28] sm:$0xff]
  %v2842 = vld [vmem:[%s2835 + $0x30] sm:$0xff]
  %v2843 = vld [vmem:[%s2835 + $0x38] sm:$0xff]
  %2844 = vmatpush.msra.mxu0 0.0
  %2845 = vmatpush.msra.mxu0 0.0
  %2846 = vmatpush.msra.mxu0 0.0
  %2847 = vmatpush.msra.mxu0 0.0
  %2848 = vmatpush.msra.mxu0 0.0
  %2849 = vmatpush.msra.mxu0 0.0
  %2850 = vmatpush.msra.mxu0 0.0
  %2851 = vmatpush.msra.mxu0 0.0
  %2852 = vmatpush.msra.mxu0 %v2843
  %2853 = vmatpush.msra.mxu0 %v2842
  %2854 = vmatpush.msra.mxu0 %v2841
  %2855 = vmatpush.msra.mxu0 %v2840
  %2856 = vmatpush.msra.mxu0 %v2839
  %2857 = vmatpush.msra.mxu0 %v2838
  %2858 = vmatpush.msra.mxu0 %v2837
  %2859 = vmatpush.msra.mxu0 %v2836
  %2860 = vmatmul.f32.gmra.mxu0 %v2812
  %v2861 = vpop.f32.mrf.mxu0
  %v2862 = vadd.f32 0.0, %v2861
  %2863 = vdwg.mxu0
  %v2864 = vadd.f32 %v2799, %v2862
  %s2865 = scalar_lea.vmem [#allocation2], 2
  %v2866 = vld [vmem:[%s2865] ss:$8 sm:$0xf]
  %s2867 = scalar_lea.vmem %s41, 128
  %v2868 = vld [vmem:[%s2867] sm:$0xff]
  %v2869 = vld [vmem:[%s2867 + $0x8] sm:$0xff]
  %v2870 = vld [vmem:[%s2867 + $0x10] sm:$0xff]
  %v2871 = vld [vmem:[%s2867 + $0x18] sm:$0xff]
  %v2872 = vld [vmem:[%s2867 + $0x20] sm:$0xff]
  %v2873 = vld [vmem:[%s2867 + $0x28] sm:$0xff]
  %v2874 = vld [vmem:[%s2867 + $0x30] sm:$0xff]
  %v2875 = vld [vmem:[%s2867 + $0x38] sm:$0xff]
  %v2877 = vsel %vm149, %v2866, 0
  %2879 = vmatpush.msra.mxu0 0.0
  %2880 = vmatpush.msra.mxu0 0.0
  %2881 = vmatpush.msra.mxu0 0.0
  %2882 = vmatpush.msra.mxu0 0.0
  %2883 = vmatpush.msra.mxu0 0.0
  %2884 = vmatpush.msra.mxu0 0.0
  %2885 = vmatpush.msra.mxu0 0.0
  %2886 = vmatpush.msra.mxu0 0.0
  %2887 = vmatpush.msra.mxu0 %v2875
  %2888 = vmatpush.msra.mxu0 %v2874
  %2889 = vmatpush.msra.mxu0 %v2873
  %2890 = vmatpush.msra.mxu0 %v2872
  %2891 = vmatpush.msra.mxu0 %v2871
  %2892 = vmatpush.msra.mxu0 %v2870
  %2893 = vmatpush.msra.mxu0 %v2869
  %2894 = vmatpush.msra.mxu0 %v2868
  %2895 = vmatmul.f32.gmra.mxu0 %v2877
  %v2896 = vpop.f32.mrf.mxu0
  %v2897 = vadd.f32 0.0, %v2896
  %2898 = vdwg.mxu0
  %v2899 = vadd.f32 %v2834, %v2897
  %s2900 = scalar_lea.vmem %s49, 128
  %v2901 = vld [vmem:[%s2900] sm:$0xff]
  %v2902 = vld [vmem:[%s2900 + $0x8] sm:$0xff]
  %v2903 = vld [vmem:[%s2900 + $0x10] sm:$0xff]
  %v2904 = vld [vmem:[%s2900 + $0x18] sm:$0xff]
  %v2905 = vld [vmem:[%s2900 + $0x20] sm:$0xff]
  %v2906 = vld [vmem:[%s2900 + $0x28] sm:$0xff]
  %v2907 = vld [vmem:[%s2900 + $0x30] sm:$0xff]
  %v2908 = vld [vmem:[%s2900 + $0x38] sm:$0xff]
  %2909 = vmatpush.msra.mxu0 0.0
  %2910 = vmatpush.msra.mxu0 0.0
  %2911 = vmatpush.msra.mxu0 0.0
  %2912 = vmatpush.msra.mxu0 0.0
  %2913 = vmatpush.msra.mxu0 0.0
  %2914 = vmatpush.msra.mxu0 0.0
  %2915 = vmatpush.msra.mxu0 0.0
  %2916 = vmatpush.msra.mxu0 0.0
  %2917 = vmatpush.msra.mxu0 %v2908
  %2918 = vmatpush.msra.mxu0 %v2907
  %2919 = vmatpush.msra.mxu0 %v2906
  %2920 = vmatpush.msra.mxu0 %v2905
  %2921 = vmatpush.msra.mxu0 %v2904
  %2922 = vmatpush.msra.mxu0 %v2903
  %2923 = vmatpush.msra.mxu0 %v2902
  %2924 = vmatpush.msra.mxu0 %v2901
  %2925 = vmatmul.f32.gmra.mxu0 %v2877
  %v2926 = vpop.f32.mrf.mxu0
  %v2927 = vadd.f32 0.0, %v2926
  %2928 = vdwg.mxu0
  %v2929 = vadd.f32 %v2864, %v2927
  %s2930 = scalar_lea.vmem [#allocation2], 3
  %v2931 = vld [vmem:[%s2930] ss:$8 sm:$0xf]
  %s2932 = scalar_lea.vmem %s41, 192
  %v2933 = vld [vmem:[%s2932] sm:$0xff]
  %v2934 = vld [vmem:[%s2932 + $0x8] sm:$0xff]
  %v2935 = vld [vmem:[%s2932 + $0x10] sm:$0xff]
  %v2936 = vld [vmem:[%s2932 + $0x18] sm:$0xff]
  %v2937 = vld [vmem:[%s2932 + $0x20] sm:$0xff]
  %v2938 = vld [vmem:[%s2932 + $0x28] sm:$0xff]
  %v2939 = vld [vmem:[%s2932 + $0x30] sm:$0xff]
  %v2940 = vld [vmem:[%s2932 + $0x38] sm:$0xff]
  %v2942 = vsel %vm149, %v2931, 0
  %2944 = vmatpush.msra.mxu0 0.0
  %2945 = vmatpush.msra.mxu0 0.0
  %2946 = vmatpush.msra.mxu0 0.0
  %2947 = vmatpush.msra.mxu0 0.0
  %2948 = vmatpush.msra.mxu0 0.0
  %2949 = vmatpush.msra.mxu0 0.0
  %2950 = vmatpush.msra.mxu0 0.0
  %2951 = vmatpush.msra.mxu0 0.0
  %2952 = vmatpush.msra.mxu0 %v2940
  %2953 = vmatpush.msra.mxu0 %v2939
  %2954 = vmatpush.msra.mxu0 %v2938
  %2955 = vmatpush.msra.mxu0 %v2937
  %2956 = vmatpush.msra.mxu0 %v2936
  %2957 = vmatpush.msra.mxu0 %v2935
  %2958 = vmatpush.msra.mxu0 %v2934
  %2959 = vmatpush.msra.mxu0 %v2933
  %2960 = vmatmul.f32.gmra.mxu0 %v2942
  %v2961 = vpop.f32.mrf.mxu0
  %v2962 = vadd.f32 0.0, %v2961
  %2963 = vdwg.mxu0
  %v2964 = vadd.f32 %v2899, %v2962
  %s2965 = scalar_lea.vmem %s49, 192
  %v2966 = vld [vmem:[%s2965] sm:$0xff]
  %v2967 = vld [vmem:[%s2965 + $0x8] sm:$0xff]
  %v2968 = vld [vmem:[%s2965 + $0x10] sm:$0xff]
  %v2969 = vld [vmem:[%s2965 + $0x18] sm:$0xff]
  %v2970 = vld [vmem:[%s2965 + $0x20] sm:$0xff]
  %v2971 = vld [vmem:[%s2965 + $0x28] sm:$0xff]
  %v2972 = vld [vmem:[%s2965 + $0x30] sm:$0xff]
  %v2973 = vld [vmem:[%s2965 + $0x38] sm:$0xff]
  %2974 = vmatpush.msra.mxu0 0.0
  %2975 = vmatpush.msra.mxu0 0.0
  %2976 = vmatpush.msra.mxu0 0.0
  %2977 = vmatpush.msra.mxu0 0.0
  %2978 = vmatpush.msra.mxu0 0.0
  %2979 = vmatpush.msra.mxu0 0.0
  %2980 = vmatpush.msra.mxu0 0.0
  %2981 = vmatpush.msra.mxu0 0.0
  %2982 = vmatpush.msra.mxu0 %v2973
  %2983 = vmatpush.msra.mxu0 %v2972
  %2984 = vmatpush.msra.mxu0 %v2971
  %2985 = vmatpush.msra.mxu0 %v2970
  %2986 = vmatpush.msra.mxu0 %v2969
  %2987 = vmatpush.msra.mxu0 %v2968
  %2988 = vmatpush.msra.mxu0 %v2967
  %2989 = vmatpush.msra.mxu0 %v2966
  %2990 = vmatmul.f32.gmra.mxu0 %v2942
  %v2991 = vpop.f32.mrf.mxu0
  %v2992 = vadd.f32 0.0, %v2991
  %2993 = vdwg.mxu0
  %v2994 = vadd.f32 %v2929, %v2992
  %s2995 = scalar_lea.vmem [#allocation2], 4
  %v2996 = vld [vmem:[%s2995] ss:$8 sm:$0xf]
  %s2997 = scalar_lea.vmem %s41, 256
  %v2998 = vld [vmem:[%s2997] sm:$0xff]
  %v2999 = vld [vmem:[%s2997 + $0x8] sm:$0xff]
  %v3000 = vld [vmem:[%s2997 + $0x10] sm:$0xff]
  %v3001 = vld [vmem:[%s2997 + $0x18] sm:$0xff]
  %v3002 = vld [vmem:[%s2997 + $0x20] sm:$0xff]
  %v3003 = vld [vmem:[%s2997 + $0x28] sm:$0xff]
  %v3004 = vld [vmem:[%s2997 + $0x30] sm:$0xff]
  %v3005 = vld [vmem:[%s2997 + $0x38] sm:$0xff]
  %v3007 = vsel %vm149, %v2996, 0
  %3009 = vmatpush.msra.mxu0 0.0
  %3010 = vmatpush.msra.mxu0 0.0
  %3011 = vmatpush.msra.mxu0 0.0
  %3012 = vmatpush.msra.mxu0 0.0
  %3013 = vmatpush.msra.mxu0 0.0
  %3014 = vmatpush.msra.mxu0 0.0
  %3015 = vmatpush.msra.mxu0 0.0
  %3016 = vmatpush.msra.mxu0 0.0
  %3017 = vmatpush.msra.mxu0 %v3005
  %3018 = vmatpush.msra.mxu0 %v3004
  %3019 = vmatpush.msra.mxu0 %v3003
  %3020 = vmatpush.msra.mxu0 %v3002
  %3021 = vmatpush.msra.mxu0 %v3001
  %3022 = vmatpush.msra.mxu0 %v3000
  %3023 = vmatpush.msra.mxu0 %v2999
  %3024 = vmatpush.msra.mxu0 %v2998
  %3025 = vmatmul.f32.gmra.mxu0 %v3007
  %v3026 = vpop.f32.mrf.mxu0
  %v3027 = vadd.f32 0.0, %v3026
  %3028 = vdwg.mxu0
  %v3029 = vadd.f32 %v2964, %v3027
  %s3030 = scalar_lea.vmem %s49, 256
  %v3031 = vld [vmem:[%s3030] sm:$0xff]
  %v3032 = vld [vmem:[%s3030 + $0x8] sm:$0xff]
  %v3033 = vld [vmem:[%s3030 + $0x10] sm:$0xff]
  %v3034 = vld [vmem:[%s3030 + $0x18] sm:$0xff]
  %v3035 = vld [vmem:[%s3030 + $0x20] sm:$0xff]
  %v3036 = vld [vmem:[%s3030 + $0x28] sm:$0xff]
  %v3037 = vld [vmem:[%s3030 + $0x30] sm:$0xff]
  %v3038 = vld [vmem:[%s3030 + $0x38] sm:$0xff]
  %3039 = vmatpush.msra.mxu0 0.0
  %3040 = vmatpush.msra.mxu0 0.0
  %3041 = vmatpush.msra.mxu0 0.0
  %3042 = vmatpush.msra.mxu0 0.0
  %3043 = vmatpush.msra.mxu0 0.0
  %3044 = vmatpush.msra.mxu0 0.0
  %3045 = vmatpush.msra.mxu0 0.0
  %3046 = vmatpush.msra.mxu0 0.0
  %3047 = vmatpush.msra.mxu0 %v3038
  %3048 = vmatpush.msra.mxu0 %v3037
  %3049 = vmatpush.msra.mxu0 %v3036
  %3050 = vmatpush.msra.mxu0 %v3035
  %3051 = vmatpush.msra.mxu0 %v3034
  %3052 = vmatpush.msra.mxu0 %v3033
  %3053 = vmatpush.msra.mxu0 %v3032
  %3054 = vmatpush.msra.mxu0 %v3031
  %3055 = vmatmul.f32.gmra.mxu0 %v3007
  %v3056 = vpop.f32.mrf.mxu0
  %v3057 = vadd.f32 0.0, %v3056
  %3058 = vdwg.mxu0
  %v3059 = vadd.f32 %v2994, %v3057
  %s3060 = scalar_lea.vmem [#allocation2], 5
  %v3061 = vld [vmem:[%s3060] ss:$8 sm:$0xf]
  %s3062 = scalar_lea.vmem %s41, 320
  %v3063 = vld [vmem:[%s3062] sm:$0xff]
  %v3064 = vld [vmem:[%s3062 + $0x8] sm:$0xff]
  %v3065 = vld [vmem:[%s3062 + $0x10] sm:$0xff]
  %v3066 = vld [vmem:[%s3062 + $0x18] sm:$0xff]
  %v3067 = vld [vmem:[%s3062 + $0x20] sm:$0xff]
  %v3068 = vld [vmem:[%s3062 + $0x28] sm:$0xff]
  %v3069 = vld [vmem:[%s3062 + $0x30] sm:$0xff]
  %v3070 = vld [vmem:[%s3062 + $0x38] sm:$0xff]
  %v3072 = vsel %vm149, %v3061, 0
  %3074 = vmatpush.msra.mxu0 0.0
  %3075 = vmatpush.msra.mxu0 0.0
  %3076 = vmatpush.msra.mxu0 0.0
  %3077 = vmatpush.msra.mxu0 0.0
  %3078 = vmatpush.msra.mxu0 0.0
  %3079 = vmatpush.msra.mxu0 0.0
  %3080 = vmatpush.msra.mxu0 0.0
  %3081 = vmatpush.msra.mxu0 0.0
  %3082 = vmatpush.msra.mxu0 %v3070
  %3083 = vmatpush.msra.mxu0 %v3069
  %3084 = vmatpush.msra.mxu0 %v3068
  %3085 = vmatpush.msra.mxu0 %v3067
  %3086 = vmatpush.msra.mxu0 %v3066
  %3087 = vmatpush.msra.mxu0 %v3065
  %3088 = vmatpush.msra.mxu0 %v3064
  %3089 = vmatpush.msra.mxu0 %v3063
  %3090 = vmatmul.f32.gmra.mxu0 %v3072
  %v3091 = vpop.f32.mrf.mxu0
  %v3092 = vadd.f32 0.0, %v3091
  %3093 = vdwg.mxu0
  %v3094 = vadd.f32 %v3029, %v3092
  %s3095 = scalar_lea.vmem %s49, 320
  %v3096 = vld [vmem:[%s3095] sm:$0xff]
  %v3097 = vld [vmem:[%s3095 + $0x8] sm:$0xff]
  %v3098 = vld [vmem:[%s3095 + $0x10] sm:$0xff]
  %v3099 = vld [vmem:[%s3095 + $0x18] sm:$0xff]
  %v3100 = vld [vmem:[%s3095 + $0x20] sm:$0xff]
  %v3101 = vld [vmem:[%s3095 + $0x28] sm:$0xff]
  %v3102 = vld [vmem:[%s3095 + $0x30] sm:$0xff]
  %v3103 = vld [vmem:[%s3095 + $0x38] sm:$0xff]
  %3104 = vmatpush.msra.mxu0 0.0
  %3105 = vmatpush.msra.mxu0 0.0
  %3106 = vmatpush.msra.mxu0 0.0
  %3107 = vmatpush.msra.mxu0 0.0
  %3108 = vmatpush.msra.mxu0 0.0
  %3109 = vmatpush.msra.mxu0 0.0
  %3110 = vmatpush.msra.mxu0 0.0
  %3111 = vmatpush.msra.mxu0 0.0
  %3112 = vmatpush.msra.mxu0 %v3103
  %3113 = vmatpush.msra.mxu0 %v3102
  %3114 = vmatpush.msra.mxu0 %v3101
  %3115 = vmatpush.msra.mxu0 %v3100
  %3116 = vmatpush.msra.mxu0 %v3099
  %3117 = vmatpush.msra.mxu0 %v3098
  %3118 = vmatpush.msra.mxu0 %v3097
  %3119 = vmatpush.msra.mxu0 %v3096
  %3120 = vmatmul.f32.gmra.mxu0 %v3072
  %v3121 = vpop.f32.mrf.mxu0
  %v3122 = vadd.f32 0.0, %v3121
  %3123 = vdwg.mxu0
  %v3124 = vadd.f32 %v3059, %v3122
  %s3125 = scalar_lea.vmem [#allocation2], 6
  %v3126 = vld [vmem:[%s3125] ss:$8 sm:$0xf]
  %s3127 = scalar_lea.vmem %s41, 384
  %v3128 = vld [vmem:[%s3127] sm:$0xff]
  %v3129 = vld [vmem:[%s3127 + $0x8] sm:$0xff]
  %v3130 = vld [vmem:[%s3127 + $0x10] sm:$0xff]
  %v3131 = vld [vmem:[%s3127 + $0x18] sm:$0xff]
  %v3132 = vld [vmem:[%s3127 + $0x20] sm:$0xff]
  %v3133 = vld [vmem:[%s3127 + $0x28] sm:$0xff]
  %v3134 = vld [vmem:[%s3127 + $0x30] sm:$0xff]
  %v3135 = vld [vmem:[%s3127 + $0x38] sm:$0xff]
  %v3137 = vsel %vm149, %v3126, 0
  %3139 = vmatpush.msra.mxu0 0.0
  %3140 = vmatpush.msra.mxu0 0.0
  %3141 = vmatpush.msra.mxu0 0.0
  %3142 = vmatpush.msra.mxu0 0.0
  %3143 = vmatpush.msra.mxu0 0.0
  %3144 = vmatpush.msra.mxu0 0.0
  %3145 = vmatpush.msra.mxu0 0.0
  %3146 = vmatpush.msra.mxu0 0.0
  %3147 = vmatpush.msra.mxu0 %v3135
  %3148 = vmatpush.msra.mxu0 %v3134
  %3149 = vmatpush.msra.mxu0 %v3133
  %3150 = vmatpush.msra.mxu0 %v3132
  %3151 = vmatpush.msra.mxu0 %v3131
  %3152 = vmatpush.msra.mxu0 %v3130
  %3153 = vmatpush.msra.mxu0 %v3129
  %3154 = vmatpush.msra.mxu0 %v3128
  %3155 = vmatmul.f32.gmra.mxu0 %v3137
  %v3156 = vpop.f32.mrf.mxu0
  %v3157 = vadd.f32 0.0, %v3156
  %3158 = vdwg.mxu0
  %v3159 = vadd.f32 %v3094, %v3157
  %s3160 = scalar_lea.vmem %s49, 384
  %v3161 = vld [vmem:[%s3160] sm:$0xff]
  %v3162 = vld [vmem:[%s3160 + $0x8] sm:$0xff]
  %v3163 = vld [vmem:[%s3160 + $0x10] sm:$0xff]
  %v3164 = vld [vmem:[%s3160 + $0x18] sm:$0xff]
  %v3165 = vld [vmem:[%s3160 + $0x20] sm:$0xff]
  %v3166 = vld [vmem:[%s3160 + $0x28] sm:$0xff]
  %v3167 = vld [vmem:[%s3160 + $0x30] sm:$0xff]
  %v3168 = vld [vmem:[%s3160 + $0x38] sm:$0xff]
  %3169 = vmatpush.msra.mxu0 0.0
  %3170 = vmatpush.msra.mxu0 0.0
  %3171 = vmatpush.msra.mxu0 0.0
  %3172 = vmatpush.msra.mxu0 0.0
  %3173 = vmatpush.msra.mxu0 0.0
  %3174 = vmatpush.msra.mxu0 0.0
  %3175 = vmatpush.msra.mxu0 0.0
  %3176 = vmatpush.msra.mxu0 0.0
  %3177 = vmatpush.msra.mxu0 %v3168
  %3178 = vmatpush.msra.mxu0 %v3167
  %3179 = vmatpush.msra.mxu0 %v3166
  %3180 = vmatpush.msra.mxu0 %v3165
  %3181 = vmatpush.msra.mxu0 %v3164
  %3182 = vmatpush.msra.mxu0 %v3163
  %3183 = vmatpush.msra.mxu0 %v3162
  %3184 = vmatpush.msra.mxu0 %v3161
  %3185 = vmatmul.f32.gmra.mxu0 %v3137
  %v3186 = vpop.f32.mrf.mxu0
  %v3187 = vadd.f32 0.0, %v3186
  %3188 = vdwg.mxu0
  %v3189 = vadd.f32 %v3124, %v3187
  %s3190 = scalar_lea.vmem [#allocation2], 7
  %v3191 = vld [vmem:[%s3190] ss:$8 sm:$0xf]
  %s3192 = scalar_lea.vmem %s41, 448
  %v3193 = vld [vmem:[%s3192] sm:$0xff]
  %v3194 = vld [vmem:[%s3192 + $0x8] sm:$0xff]
  %v3195 = vld [vmem:[%s3192 + $0x10] sm:$0xff]
  %v3196 = vld [vmem:[%s3192 + $0x18] sm:$0xff]
  %v3197 = vld [vmem:[%s3192 + $0x20] sm:$0xff]
  %v3198 = vld [vmem:[%s3192 + $0x28] sm:$0xff]
  %v3199 = vld [vmem:[%s3192 + $0x30] sm:$0xff]
  %v3200 = vld [vmem:[%s3192 + $0x38] sm:$0xff]
  %v3202 = vsel %vm149, %v3191, 0
  %3204 = vmatpush.msra.mxu0 0.0
  %3205 = vmatpush.msra.mxu0 0.0
  %3206 = vmatpush.msra.mxu0 0.0
  %3207 = vmatpush.msra.mxu0 0.0
  %3208 = vmatpush.msra.mxu0 0.0
  %3209 = vmatpush.msra.mxu0 0.0
  %3210 = vmatpush.msra.mxu0 0.0
  %3211 = vmatpush.msra.mxu0 0.0
  %3212 = vmatpush.msra.mxu0 %v3200
  %3213 = vmatpush.msra.mxu0 %v3199
  %3214 = vmatpush.msra.mxu0 %v3198
  %3215 = vmatpush.msra.mxu0 %v3197
  %3216 = vmatpush.msra.mxu0 %v3196
  %3217 = vmatpush.msra.mxu0 %v3195
  %3218 = vmatpush.msra.mxu0 %v3194
  %3219 = vmatpush.msra.mxu0 %v3193
  %3220 = vmatmul.f32.gmra.mxu0 %v3202
  %v3221 = vpop.f32.mrf.mxu0
  %v3222 = vadd.f32 0.0, %v3221
  %3223 = vdwg.mxu0
  %v3224 = vadd.f32 %v3159, %v3222
  %s3225 = scalar_lea.vmem %s49, 448
  %v3226 = vld [vmem:[%s3225] sm:$0xff]
  %v3227 = vld [vmem:[%s3225 + $0x8] sm:$0xff]
  %v3228 = vld [vmem:[%s3225 + $0x10] sm:$0xff]
  %v3229 = vld [vmem:[%s3225 + $0x18] sm:$0xff]
  %v3230 = vld [vmem:[%s3225 + $0x20] sm:$0xff]
  %v3231 = vld [vmem:[%s3225 + $0x28] sm:$0xff]
  %v3232 = vld [vmem:[%s3225 + $0x30] sm:$0xff]
  %v3233 = vld [vmem:[%s3225 + $0x38] sm:$0xff]
  %3234 = vmatpush.msra.mxu0 0.0
  %3235 = vmatpush.msra.mxu0 0.0
  %3236 = vmatpush.msra.mxu0 0.0
  %3237 = vmatpush.msra.mxu0 0.0
  %3238 = vmatpush.msra.mxu0 0.0
  %3239 = vmatpush.msra.mxu0 0.0
  %3240 = vmatpush.msra.mxu0 0.0
  %3241 = vmatpush.msra.mxu0 0.0
  %3242 = vmatpush.msra.mxu0 %v3233
  %3243 = vmatpush.msra.mxu0 %v3232
  %3244 = vmatpush.msra.mxu0 %v3231
  %3245 = vmatpush.msra.mxu0 %v3230
  %3246 = vmatpush.msra.mxu0 %v3229
  %3247 = vmatpush.msra.mxu0 %v3228
  %3248 = vmatpush.msra.mxu0 %v3227
  %3249 = vmatpush.msra.mxu0 %v3226
  %3250 = vmatmul.f32.gmra.mxu0 %v3202
  %v3251 = vpop.f32.mrf.mxu0
  %v3252 = vadd.f32 0.0, %v3251
  %3253 = vdwg.mxu0
  %v3254 = vadd.f32 %v3189, %v3252
  %v3255 = vtanh.pop %v3224
  %v3256 = vld [vmem:[%s45] sm:$0xff]
  %v3257 = vld [vmem:[%s45 + $0x8] sm:$0xff]
  %v3258 = vld [vmem:[%s45 + $0x10] sm:$0xff]
  %v3259 = vld [vmem:[%s45 + $0x18] sm:$0xff]
  %v3260 = vld [vmem:[%s45 + $0x20] sm:$0xff]
  %v3261 = vld [vmem:[%s45 + $0x28] sm:$0xff]
  %v3262 = vld [vmem:[%s45 + $0x30] sm:$0xff]
  %v3263 = vld [vmem:[%s45 + $0x38] sm:$0xff]
  %v3264 = vld [vmem:[%s47] sm:$0x1]
  %v3266 = vperm.slane %v3264, 0
  %v3269 = vsel %vm149, %v3255, 0
  %3271 = vmatpush.msra.mxu0 0.0
  %3272 = vmatpush.msra.mxu0 0.0
  %3273 = vmatpush.msra.mxu0 0.0
  %3274 = vmatpush.msra.mxu0 0.0
  %3275 = vmatpush.msra.mxu0 0.0
  %3276 = vmatpush.msra.mxu0 0.0
  %3277 = vmatpush.msra.mxu0 0.0
  %3278 = vmatpush.msra.mxu0 0.0
  %3279 = vmatpush.msra.mxu0 %v3263
  %3280 = vmatpush.msra.mxu0 %v3262
  %3281 = vmatpush.msra.mxu0 %v3261
  %3282 = vmatpush.msra.mxu0 %v3260
  %3283 = vmatpush.msra.mxu0 %v3259
  %3284 = vmatpush.msra.mxu0 %v3258
  %3285 = vmatpush.msra.mxu0 %v3257
  %3286 = vmatpush.msra.mxu0 %v3256
  %3287 = vmatmul.f32.gmra.mxu0 %v3269
  %v3288 = vpop.f32.mrf.mxu0
  %v3289 = vadd.f32 %v3266, %v3288
  %3290 = vdwg.mxu0
  %v3291 = vtanh.pop %v3289
  %v3292 = vtanh.pop %v3254
  %v3293 = vld [vmem:[%s53] sm:$0xff]
  %v3294 = vld [vmem:[%s53 + $0x8] sm:$0xff]
  %v3295 = vld [vmem:[%s53 + $0x10] sm:$0xff]
  %v3296 = vld [vmem:[%s53 + $0x18] sm:$0xff]
  %v3297 = vld [vmem:[%s53 + $0x20] sm:$0xff]
  %v3298 = vld [vmem:[%s53 + $0x28] sm:$0xff]
  %v3299 = vld [vmem:[%s53 + $0x30] sm:$0xff]
  %v3300 = vld [vmem:[%s53 + $0x38] sm:$0xff]
  %v3301 = vld [vmem:[%s55] sm:$0x1]
  %v3303 = vperm.slane %v3301, 0
  %v3306 = vsel %vm149, %v3292, 0
  %3308 = vmatpush.msra.mxu0 0.0
  %3309 = vmatpush.msra.mxu0 0.0
  %3310 = vmatpush.msra.mxu0 0.0
  %3311 = vmatpush.msra.mxu0 0.0
  %3312 = vmatpush.msra.mxu0 0.0
  %3313 = vmatpush.msra.mxu0 0.0
  %3314 = vmatpush.msra.mxu0 0.0
  %3315 = vmatpush.msra.mxu0 0.0
  %3316 = vmatpush.msra.mxu0 %v3300
  %3317 = vmatpush.msra.mxu0 %v3299
  %3318 = vmatpush.msra.mxu0 %v3298
  %3319 = vmatpush.msra.mxu0 %v3297
  %3320 = vmatpush.msra.mxu0 %v3296
  %3321 = vmatpush.msra.mxu0 %v3295
  %3322 = vmatpush.msra.mxu0 %v3294
  %3323 = vmatpush.msra.mxu0 %v3293
  %3324 = vmatmul.f32.gmra.mxu0 %v3306
  %v3325 = vpop.f32.mrf.mxu0
  %v3326 = vadd.f32 %v3303, %v3325
  %3327 = vdwg.mxu0
  %v3328 = vtanh.pop %v3326
  %v3329 = vld [vmem:[%s57] sm:$0xff]
  %v3330 = vld [vmem:[%s57 + $0x8] sm:$0xff]
  %v3331 = vld [vmem:[%s57 + $0x10] sm:$0xff]
  %v3332 = vld [vmem:[%s57 + $0x18] sm:$0xff]
  %v3333 = vld [vmem:[%s57 + $0x20] sm:$0xff]
  %v3334 = vld [vmem:[%s57 + $0x28] sm:$0xff]
  %v3335 = vld [vmem:[%s57 + $0x30] sm:$0xff]
  %v3336 = vld [vmem:[%s57 + $0x38] sm:$0xff]
  %v3337 = vld [vmem:[#allocation3] sm:$0x1]
  %v3339 = vperm.slane %v3337, 0
  %v3342 = vsel %vm149, %v3328, 0
  %3344 = vmatpush.msra.mxu0 0.0
  %3345 = vmatpush.msra.mxu0 0.0
  %3346 = vmatpush.msra.mxu0 0.0
  %3347 = vmatpush.msra.mxu0 0.0
  %3348 = vmatpush.msra.mxu0 0.0
  %3349 = vmatpush.msra.mxu0 0.0
  %3350 = vmatpush.msra.mxu0 0.0
  %3351 = vmatpush.msra.mxu0 0.0
  %3352 = vmatpush.msra.mxu0 %v3336
  %3353 = vmatpush.msra.mxu0 %v3335
  %3354 = vmatpush.msra.mxu0 %v3334
  %3355 = vmatpush.msra.mxu0 %v3333
  %3356 = vmatpush.msra.mxu0 %v3332
  %3357 = vmatpush.msra.mxu0 %v3331
  %3358 = vmatpush.msra.mxu0 %v3330
  %3359 = vmatpush.msra.mxu0 %v3329
  %3360 = vmatmul.f32.gmra.mxu0 %v3342
  %v3361 = vpop.f32.mrf.mxu0
  %v3362 = vadd.f32 %v3339, %v3361
  %3363 = vdwg.mxu0
  %3365 = vrot.lane.b32.xlu0 %v3291, 64
  %v3366 = vpop.permute.xlu0 %3365
  %vm3368 = vcmask 7168
  %v3369 = vsel %vm3368, %v3362, 0.0
  %v3370 = vsel %vm149, %v3369, %v3366
  %3371 = vst [vmem:[%s61] sm:$0xf] %v3370
  // Predicated region
  $region122: #{transformer_base_forward.1} parent=0 // pred_check
    _
  $region123: #{transformer_base_forward.1} parent=0 // pred_check_branch
    %3373 = sbr.rel (0) target = $region125
  $region124: #{transformer_base_forward.1} parent=0 // pred_region
    _
  $region125: #{transformer_base_forward.1} parent=0 // pred_fallthru
    _
  // Predicated region
  $region126: #{transformer_base_forward.1} parent=0 // pred_check
    _
  $region127: #{transformer_base_forward.1} parent=0 // pred_check_branch
    %3375 = sbr.rel (0) target = $region129
  $region128: #{transformer_base_forward.1} parent=0 // pred_region
    _
  $region129: #{transformer_base_forward.1} parent=0 // pred_fallthru
    _

</llo_original>
